<compile_context>
chip_gen: v5e
topology: v5e:2x2
jax: 0.10.0
libtpu: 0.0.40
codegen_flags: <defaults>
</compile_context>

<pallas_src>
import math
import functools

import jax
import jax.numpy as jnp
from jax import lax
from jax.experimental import pallas as pl
from jax.experimental.pallas import tpu as pltpu


# ------------------------- in-kernel helper math -------------------------

def _layer_norm(y, g, b, eps):
    mu = jnp.mean(y, axis=-1, keepdims=True)
    var = jnp.mean(jnp.square(y - mu), axis=-1, keepdims=True)
    return (y - mu) * lax.rsqrt(var + eps) * g + b


def _mha(xq, xkv, wq, bq, wkv, bkv, wo, bo, bias, *, nhead, scale):
    """Multi-head attention for one batch element.
    f32 activations, bf16 MXU operands, f32 accumulation."""
    H = xq.shape[1]
    dh = H // nhead

    q = jnp.dot(xq.astype(jnp.bfloat16), wq,
                preferred_element_type=jnp.float32) + bq            # (Tq, H)
    kvp = jnp.dot(xkv.astype(jnp.bfloat16), wkv,
                  preferred_element_type=jnp.float32) + bkv         # (Tk, 2H)
    k = kvp[:, :H]
    v = kvp[:, H:]

    heads = []
    for h in range(nhead):                       # static unroll, nhead is small
        lo = h * dh
        qh = q[:, lo:lo + dh].astype(jnp.bfloat16)                  # (Tq, dh)
        kh = k[:, lo:lo + dh].astype(jnp.bfloat16)                  # (Tk, dh)
        vh = v[:, lo:lo + dh].astype(jnp.bfloat16)                  # (Tk, dh)
        s = lax.dot_general(qh, kh, (((1,), (1,)), ((), ())),
                            preferred_element_type=jnp.float32) * scale
        if bias is not None:
            s = s + bias
        m = jnp.max(s, axis=-1, keepdims=True)
        p = jnp.exp(s - m)
        denom = jnp.sum(p, axis=-1, keepdims=True)
        p = p * pl.reciprocal(denom, approx=True)                   # EUP slot
        heads.append(jnp.dot(p.astype(jnp.bfloat16), vh,
                             preferred_element_type=jnp.float32))
    attn = jnp.concatenate(heads, axis=-1)                          # (Tq, H)
    return jnp.dot(attn.astype(jnp.bfloat16), wo,
                   preferred_element_type=jnp.float32) + bo


# ----------------------------- Pallas kernels -----------------------------

def _fusion_pe_kernel(x_ref, w_ref, b_ref, pe_ref, o_ref, *, scale):
    # fusion Linear + ReLU + *sqrt(H) + positional-encoding add, fused.
    # x: (T, H+Dv) f32, w: (H+Dv, H) bf16, b: (1, H) f32, pe: (T, H) f32
    y = jnp.dot(x_ref[...].astype(jnp.bfloat16), w_ref[...],
                preferred_element_type=jnp.float32) + b_ref[...]
    y = jnp.maximum(y, 0.0) * scale
    o_ref[...] = (y + pe_ref[...]).astype(o_ref.dtype)


def _decoder_layer_kernel(*refs, nhead, scale, eps, has_bias):
    # One full post-norm TransformerDecoderLayer per grid step (one batch elt):
    #   self-attn + res + LN1 ; cross-attn + res + LN2 ; FFN + res + LN3.
    if has_bias:
        (x_ref, mem_ref, bias_ref,
         sq_w, sq_b, skv_w, skv_b, so_w, so_b, g1, b1,
         cq_w, cq_b, ckv_w, ckv_b, co_w, co_b, g2, b2,
         f1_w, f1_b, f2_w, f2_b, g3, b3, o_ref) = refs
    else:
        (x_ref, mem_ref,
         sq_w, sq_b, skv_w, skv_b, so_w, so_b, g1, b1,
         cq_w, cq_b, ckv_w, ckv_b, co_w, co_b, g2, b2,
         f1_w, f1_b, f2_w, f2_b, g3, b3, o_ref) = refs
        bias_ref = None

    x = x_ref[...]                                   # (T, H) f32
    memx = mem_ref[...]                              # (S, H) f32
    bias = bias_ref[0] if has_bias else None         # (T, T) additive, finite

    # ---- self-attention + residual + LayerNorm1 ----
    sa = _mha(x, x, sq_w[...], sq_b[...], skv_w[...], skv_b[...],
              so_w[...], so_b[...], bias, nhead=nhead, scale=scale)
    x = _layer_norm(x + sa, g1[...], b1[...], eps)

    # ---- cross-attention (no bias) + residual + LayerNorm2 ----
    ca = _mha(x, memx, cq_w[...], cq_b[...], ckv_w[...], ckv_b[...],
              co_w[...], co_b[...], None, nhead=nhead, scale=scale)
    x = _layer_norm(x + ca, g2[...], b2[...], eps)

    # ---- FFN (Linear -> ReLU -> Linear, intermediate stays in VMEM) ----
    h = jnp.dot(x.astype(jnp.bfloat16), f1_w[...],
                preferred_element_type=jnp.float32) + f1_b[...]     # (T, dff)
    h = jnp.maximum(h, 0.0)
    ff = jnp.dot(h.astype(jnp.bfloat16), f2_w[...],
                 preferred_element_type=jnp.float32) + f2_b[...]    # (T, H)
    x = _layer_norm(x + ff, g3[...], b3[...], eps)

    o_ref[...] = x.astype(o_ref.dtype)


def _linear_kernel(x_ref, w_ref, b_ref, o_ref):
    y = jnp.dot(x_ref[...].astype(jnp.bfloat16), w_ref[...],
                preferred_element_type=jnp.float32) + b_ref[...]
    o_ref[...] = y.astype(o_ref.dtype)


# ----------------------------- kernel wrappers -----------------------------

def pallas_fusion_pe(fused_in, w, b, pe, scale, B, T):
    M, K = fused_in.shape                            # (B*T, H+Dv)
    H = w.shape[1]
    return pl.pallas_call(
        functools.partial(_fusion_pe_kernel, scale=scale),
        out_shape=jax.ShapeDtypeStruct((M, H), jnp.float32),
        grid_spec=pltpu.PrefetchScalarGridSpec(
            num_scalar_prefetch=0,
            grid=(B,),
            in_specs=[pl.BlockSpec((T, K), lambda b_: (b_, 0)),
                      pl.BlockSpec((K, H), lambda b_: (0, 0)),
                      pl.BlockSpec((1, H), lambda b_: (0, 0)),
                      pl.BlockSpec((T, H), lambda b_: (0, 0))],
            out_specs=pl.BlockSpec((T, H), lambda b_: (b_, 0))),
        compiler_params=pltpu.CompilerParams(
            dimension_semantics=("parallel",)),
    )(fused_in, w, b.reshape(1, H), pe)


def pallas_decoder_layer(x_flat, mem_flat, bias, lp, B, T, S, nhead, eps=1e-5):
    """x_flat: (B*T, H)  mem_flat: (B*S, H)  bias: (B, T, T) or None."""
    H = x_flat.shape[1]
    dh = H // nhead
    scale = 1.0 / math.sqrt(dh)
    has_bias = bias is not None
    dff = lp["ff_w1"].shape[1]
    sa, ca = lp["self_attn"], lp["cross_attn"]

    in_specs = [pl.BlockSpec((T, H), lambda b_: (b_, 0)),      # x
                pl.BlockSpec((S, H), lambda b_: (b_, 0))]      # mem
    args = [x_flat, mem_flat]
    if has_bias:
        in_specs.append(pl.BlockSpec((1, T, T), lambda b_: (b_, 0, 0)))
        args.append(bias)

    # Weights / biases / LN params: constant index_map => single DMA, resident.
    weight_args = [
        (sa["wq"], (H, H)), (sa["bq"].reshape(1, H), (1, H)),
        (sa["wkv"], (H, 2 * H)), (sa["bkv"].reshape(1, 2 * H), (1, 2 * H)),
        (sa["wo"], (H, H)), (sa["bo"].reshape(1, H), (1, H)),
        (lp["ln1_g"].reshape(1, H), (1, H)), (lp["ln1_b"].reshape(1, H), (1, H)),
        (ca["wq"], (H, H)), (ca["bq"].reshape(1, H), (1, H)),
        (ca["wkv"], (H, 2 * H)), (ca["bkv"].reshape(1, 2 * H), (1, 2 * H)),
        (ca["wo"], (H, H)), (ca["bo"].reshape(1, H), (1, H)),
        (lp["ln2_g"].reshape(1, H), (1, H)), (lp["ln2_b"].reshape(1, H), (1, H)),
        (lp["ff_w1"], (H, dff)), (lp["ff_b1"].reshape(1, dff), (1, dff)),
        (lp["ff_w2"], (dff, H)), (lp["ff_b2"].reshape(1, H), (1, H)),
        (lp["ln3_g"].reshape(1, H), (1, H)), (lp["ln3_b"].reshape(1, H), (1, H)),
    ]
    for arr, shp in weight_args:
        in_specs.append(pl.BlockSpec(shp, lambda b_: (0, 0)))
        args.append(arr)

    kern = functools.partial(_decoder_layer_kernel, nhead=nhead, scale=scale,
                             eps=eps, has_bias=has_bias)
    return pl.pallas_call(
        kern,
        out_shape=jax.ShapeDtypeStruct((B * T, H), jnp.float32),
        grid_spec=pltpu.PrefetchScalarGridSpec(
            num_scalar_prefetch=0,
            grid=(B,),
            in_specs=in_specs,
            out_specs=pl.BlockSpec((T, H), lambda b_: (b_, 0))),
        compiler_params=pltpu.CompilerParams(
            dimension_semantics=("parallel",)),
    )(*args)


def pallas_linear(x, w, b):
    M, K = x.shape
    N = w.shape[1]
    return pl.pallas_call(
        _linear_kernel,
        out_shape=jax.ShapeDtypeStruct((M, N), jnp.float32),
        grid_spec=pltpu.PrefetchScalarGridSpec(
            num_scalar_prefetch=0,
            grid=(1,),
            in_specs=[pl.BlockSpec((M, K), lambda i: (0, 0)),
                      pl.BlockSpec((K, N), lambda i: (0, 0)),
                      pl.BlockSpec((1, N), lambda i: (0, 0))],
            out_specs=pl.BlockSpec((M, N), lambda i: (0, 0))),
    )(x, w, b.reshape(1, N))


# ----------------------------- model forward -----------------------------

def model_forward(params, mem, vis, tgt_ids, tgt_mask=None, tgt_pad_mask=None,
                  *, nhead=8):
    """mem: (B, S, H)  vis: (B, 1, Dv)  tgt_ids: (B, T) int32
       tgt_mask: (T, T) additive float mask (0 / -1e9), or None."""
    B, T = tgt_ids.shape
    H = params["emb"].shape[1]
    S = mem.shape[1]
    Dv = vis.shape[-1]

    # embedding lookup (gather) + concat with broadcast vision - JAX glue
    emb = params["emb"][tgt_ids]                               # (B, T, H)
    vis_rep = jnp.broadcast_to(vis, (B, T, Dv))                # (B, T, Dv)
    fused_in = jnp.concatenate([emb, vis_rep], axis=2)         # (B, T, H+Dv)
    fused_in = fused_in.reshape(B * T, H + Dv)

    # fusion Linear + ReLU * sqrt(H) + PE add (single fused pallas_call)
    x = pallas_fusion_pe(fused_in, params["fusion_w"], params["fusion_b"],
                         params["pe"][:T], math.sqrt(H), B, T)  # (B*T, H)

    # self-attention additive bias (finite mask values; None => skipped DMA)
    if tgt_mask is None and tgt_pad_mask is None:
        self_bias = None
    else:
        self_bias = jnp.zeros((B, T, T), jnp.float32)
        if tgt_mask is not None:
            self_bias = self_bias + tgt_mask[None].astype(jnp.float32)
        if tgt_pad_mask is not None:
            self_bias = self_bias + jnp.where(tgt_pad_mask[:, None, :],
                                              jnp.float32(-1e9),
                                              jnp.float32(0.0))

    mem_flat = mem.reshape(B * S, H)

    # post-norm TransformerDecoderLayers (norm_first=False), dropout = identity
    # one fused pallas_call per layer
    for lp in params["layers"]:
        x = pallas_decoder_layer(x, mem_flat, self_bias, lp, B, T, S, nhead)

    out = pallas_linear(x, params["out_w"], params["out_b"])
    return out.reshape(B, T, params["out_w"].shape[1])


def get_tgt_mask(size):
    # finite large-negative instead of -inf (avoids NaN with fully-masked rows
    # and is safe w.r.t. reduced-precision paths)
    mask = jnp.tril(jnp.ones((size, size), jnp.float32))
    return jnp.where(mask == 0, jnp.float32(-1e9), jnp.float32(0.0))


# ----------------------------- parameter init -----------------------------

def init_params(key, d_audio, d_vision, d_out, depth, max_target_len,
                dim_feedforward=2048):
    d_audio_L, H = d_audio
    Dv = d_vision
    scale = 0.05
    counter = [0]

    def nrm(shape, dtype=jnp.float32):
        counter[0] += 1
        k = jax.random.fold_in(key, counter[0])
        return (jax.random.normal(k, shape, jnp.float32) * scale).astype(dtype)

    # positional encoding table (same formula as PositionalEncoding)
    pos = jnp.arange(max_target_len, dtype=jnp.float32)[:, None]
    div = jnp.exp(jnp.arange(0, H, 2, dtype=jnp.float32) *
                  (-math.log(10000.0) / H))
    pe = jnp.zeros((max_target_len, H), jnp.float32)
    pe = pe.at[:, 0::2].set(jnp.sin(pos * div))
    pe = pe.at[:, 1::2].set(jnp.cos(pos * div))

    wdt = jnp.bfloat16  # matmul weights stored in bf16 (f32 accumulation)

    def attn_params():
        return dict(wq=nrm((H, H), wdt), bq=nrm((H,)),
                    wkv=nrm((H, 2 * H), wdt), bkv=nrm((2 * H,)),
                    wo=nrm((H, H), wdt), bo=nrm((H,)))

    layers = []
    for _ in range(depth):
        layers.append(dict(
            self_attn=attn_params(),
            cross_attn=attn_params(),
            ff_w1=nrm((H, dim_feedforward), wdt), ff_b1=nrm((dim_feedforward,)),
            ff_w2=nrm((dim_feedforward, H), wdt), ff_b2=nrm((H,)),
            ln1_g=jnp.ones((H,), jnp.float32), ln1_b=jnp.zeros((H,), jnp.float32),
            ln2_g=jnp.ones((H,), jnp.float32), ln2_b=jnp.zeros((H,), jnp.float32),
            ln3_g=jnp.ones((H,), jnp.float32), ln3_b=jnp.zeros((H,), jnp.float32),
        ))

    return dict(
        emb=nrm((d_out, H)),
        fusion_w=nrm((H + Dv, H), wdt), fusion_b=nrm((H,)),
        pe=pe,
        layers=layers,
        out_w=nrm((H, d_out), wdt), out_b=nrm((d_out,)),
    )


# ----------------------------- main -----------------------------

if __name__ == "__main__":
    # small shapes: d_audio=[L=8, H=64], d_vision=32, d_out=16, depth=2,
    # nhead=8 (head_dim=8), batch=2, target seq len=8, max_target_len=32
    B, T = 2, 8
    d_audio = [8, 64]
    d_vision = 32
    d_out = 16
    depth = 2
    max_target_len = 32

    key = jax.random.PRNGKey(0)
    k_param, k_mem, k_vis, k_tgt = jax.random.split(key, 4)

    params = init_params(k_param, d_audio, d_vision, d_out, depth,
                         max_target_len)

    mem = jax.random.normal(k_mem, (B, d_audio[0], d_audio[1]), jnp.float32)
    vis = jax.random.normal(k_vis, (B, 1, d_vision), jnp.float32)
    tgt = jax.random.randint(k_tgt, (B, T), 0, d_out, dtype=jnp.int32)
    tgt_mask = get_tgt_mask(T)

    # TODO(synk): dropout is treated as identity (eval-mode semantics); pad
    # mask supported via additive bias but not exercised here.
    fwd = jax.jit(functools.partial(model_forward, nhead=8))
    out = fwd(params, mem, vis, tgt, tgt_mask, None)
    out = jax.block_until_ready(out)

    assert out.shape == (B, T, d_out), out.shape
    assert bool(jnp.all(jnp.isfinite(out)))
    print("KERNEL_OK")
</pallas_src>

<mosaic_0001>
module attributes {stable_mosaic.version = 11 : i64} {
  func.func @_fusion_pe_kernel(%arg0: i32, %arg1: memref<8x96xf32, #tpu.memory_space<vmem>>, %arg2: memref<96x64xbf16, #tpu.memory_space<vmem>>, %arg3: memref<1x64xf32, #tpu.memory_space<vmem>>, %arg4: memref<8x64xf32, #tpu.memory_space<vmem>>, %arg5: memref<8x64xf32, #tpu.memory_space<vmem>>) attributes {dimension_semantics = [#tpu.dimension_semantics<parallel>], iteration_bounds = array<i64: 2>, scalar_prefetch = 0 : i64, scratch_operands = 0 : i64, tpu.core_type = #tpu.core_type<tc>, window_params = [{transform_indices = @transform_0, window_bounds = array<i64: 8, 96>}, {pipeline_mode = #tpu.pipeline_mode<synchronous>, transform_indices = @transform_1, window_bounds = array<i64: 96, 64>}, {pipeline_mode = #tpu.pipeline_mode<synchronous>, transform_indices = @transform_2, window_bounds = array<i64: 1, 64>}, {pipeline_mode = #tpu.pipeline_mode<synchronous>, transform_indices = @transform_3, window_bounds = array<i64: 8, 64>}, {transform_indices = @transform_4, window_bounds = array<i64: 8, 64>}]} {
    %c0 = arith.constant 0 : index
    %c0_0 = arith.constant 0 : index
    %0 = vector.load %arg1[%c0, %c0_0] : memref<8x96xf32, #tpu.memory_space<vmem>>, vector<8x96xf32>
    %1 = arith.truncf %0 : vector<8x96xf32> to vector<8x96xbf16>
    %c0_1 = arith.constant 0 : index
    %c0_2 = arith.constant 0 : index
    %2 = vector.load %arg2[%c0_1, %c0_2] : memref<96x64xbf16, #tpu.memory_space<vmem>>, vector<96x64xbf16>
    %cst = arith.constant dense<0.000000e+00> : vector<8x64xf32>
    %3 = tpu.matmul %1, %2, %cst {dimension_numbers = #tpu.dot_dimension_numbers<[1], [0], [0], [1], [0, 0, 1, 1], [], []>} : vector<8x96xbf16>, vector<96x64xbf16>, vector<8x64xf32> -> vector<8x64xf32>
    %c0_3 = arith.constant 0 : index
    %c0_4 = arith.constant 0 : index
    %4 = vector.load %arg3[%c0_3, %c0_4] : memref<1x64xf32, #tpu.memory_space<vmem>>, vector<1x64xf32>
    %5 = vector.broadcast %4 : vector<1x64xf32> to vector<8x64xf32>
    %6 = arith.addf %3, %5 : vector<8x64xf32>
    %cst_5 = arith.constant 0.000000e+00 : f32
    %7 = vector.broadcast %cst_5 : f32 to vector<8x64xf32>
    %8 = arith.maximumf %6, %7 : vector<8x64xf32>
    %cst_6 = arith.constant 8.000000e+00 : f32
    %9 = vector.broadcast %cst_6 : f32 to vector<8x64xf32>
    %10 = arith.mulf %8, %9 : vector<8x64xf32>
    %c0_7 = arith.constant 0 : index
    %c0_8 = arith.constant 0 : index
    %11 = vector.load %arg4[%c0_7, %c0_8] : memref<8x64xf32, #tpu.memory_space<vmem>>, vector<8x64xf32>
    %12 = arith.addf %10, %11 : vector<8x64xf32>
    %c0_9 = arith.constant 0 : index
    %c0_10 = arith.constant 0 : index
    %13 = vector.load %arg5[%c0_9, %c0_10] : memref<8x64xf32, #tpu.memory_space<vmem>>, vector<8x64xf32>
    tpu.vector_store %arg5[%c0_9, %c0_10], %12 {strides = array<i32>} : memref<8x64xf32, #tpu.memory_space<vmem>>, vector<8x64xf32>,
    return
  }
  func.func @transform_0(%arg0: i32) -> (i32, i32) {
    %c0_i32 = arith.constant 0 : i32
    %c0_i32_0 = arith.constant 0 : i32
    return %arg0, %c0_i32 : i32, i32
  }
  func.func @transform_1(%arg0: i32) -> (i32, i32) {
    %c0_i32 = arith.constant 0 : i32
    %c0_i32_0 = arith.constant 0 : i32
    %c0_i32_1 = arith.constant 0 : i32
    return %c0_i32, %c0_i32_0 : i32, i32
  }
  func.func @transform_2(%arg0: i32) -> (i32, i32) {
    %c0_i32 = arith.constant 0 : i32
    %c0_i32_0 = arith.constant 0 : i32
    %c0_i32_1 = arith.constant 0 : i32
    return %c0_i32, %c0_i32_0 : i32, i32
  }
  func.func @transform_3(%arg0: i32) -> (i32, i32) {
    %c0_i32 = arith.constant 0 : i32
    %c0_i32_0 = arith.constant 0 : i32
    %c0_i32_1 = arith.constant 0 : i32
    return %c0_i32, %c0_i32_0 : i32, i32
  }
  func.func @transform_4(%arg0: i32) -> (i32, i32) {
    %c0_i32 = arith.constant 0 : i32
    %c0_i32_0 = arith.constant 0 : i32
    return %arg0, %c0_i32 : i32, i32
  }
}

module attributes {stable_mosaic.version = 11 : i64} {
  func.func @_decoder_layer_kernel(%arg0: i32, %arg1: memref<8x64xf32, #tpu.memory_space<vmem>>, %arg2: memref<8x64xf32, #tpu.memory_space<vmem>>, %arg3: memref<1x8x8xf32, #tpu.memory_space<vmem>>, %arg4: memref<64x64xbf16, #tpu.memory_space<vmem>>, %arg5: memref<1x64xf32, #tpu.memory_space<vmem>>, %arg6: memref<64x128xbf16, #tpu.memory_space<vmem>>, %arg7: memref<1x128xf32, #tpu.memory_space<vmem>>, %arg8: memref<64x64xbf16, #tpu.memory_space<vmem>>, %arg9: memref<1x64xf32, #tpu.memory_space<vmem>>, %arg10: memref<1x64xf32, #tpu.memory_space<vmem>>, %arg11: memref<1x64xf32, #tpu.memory_space<vmem>>, %arg12: memref<64x64xbf16, #tpu.memory_space<vmem>>, %arg13: memref<1x64xf32, #tpu.memory_space<vmem>>, %arg14: memref<64x128xbf16, #tpu.memory_space<vmem>>, %arg15: memref<1x128xf32, #tpu.memory_space<vmem>>, %arg16: memref<64x64xbf16, #tpu.memory_space<vmem>>, %arg17: memref<1x64xf32, #tpu.memory_space<vmem>>, %arg18: memref<1x64xf32, #tpu.memory_space<vmem>>, %arg19: memref<1x64xf32, #tpu.memory_space<vmem>>, %arg20: memref<64x2048xbf16, #tpu.memory_space<vmem>>, %arg21: memref<1x2048xf32, #tpu.memory_space<vmem>>, %arg22: memref<2048x64xbf16, #tpu.memory_space<vmem>>, %arg23: memref<1x64xf32, #tpu.memory_space<vmem>>, %arg24: memref<1x64xf32, #tpu.memory_space<vmem>>, %arg25: memref<1x64xf32, #tpu.memory_space<vmem>>, %arg26: memref<8x64xf32, #tpu.memory_space<vmem>>) attributes {dimension_semantics = [#tpu.dimension_semantics<parallel>], iteration_bounds = array<i64: 2>, scalar_prefetch = 0 : i64, scratch_operands = 0 : i64, tpu.core_type = #tpu.core_type<tc>, window_params = [{transform_indices = @transform_0, window_bounds = array<i64: 8, 64>}, {transform_indices = @transform_1, window_bounds = array<i64: 8, 64>}, {transform_indices = @transform_2, window_bounds = array<i64: 1, 8, 8>}, {pipeline_mode = #tpu.pipeline_mode<synchronous>, transform_indices = @transform_3, window_bounds = array<i64: 64, 64>}, {pipeline_mode = #tpu.pipeline_mode<synchronous>, transform_indices = @transform_4, window_bounds = array<i64: 1, 64>}, {pipeline_mode = #tpu.pipeline_mode<synchronous>, transform_indices = @transform_5, window_bounds = array<i64: 64, 128>}, {pipeline_mode = #tpu.pipeline_mode<synchronous>, transform_indices = @transform_6, window_bounds = array<i64: 1, 128>}, {pipeline_mode = #tpu.pipeline_mode<synchronous>, transform_indices = @transform_7, window_bounds = array<i64: 64, 64>}, {pipeline_mode = #tpu.pipeline_mode<synchronous>, transform_indices = @transform_8, window_bounds = array<i64: 1, 64>}, {pipeline_mode = #tpu.pipeline_mode<synchronous>, transform_indices = @transform_9, window_bounds = array<i64: 1, 64>}, {pipeline_mode = #tpu.pipeline_mode<synchronous>, transform_indices = @transform_10, window_bounds = array<i64: 1, 64>}, {pipeline_mode = #tpu.pipeline_mode<synchronous>, transform_indices = @transform_11, window_bounds = array<i64: 64, 64>}, {pipeline_mode = #tpu.pipeline_mode<synchronous>, transform_indices = @transform_12, window_bounds = array<i64: 1, 64>}, {pipeline_mode = #tpu.pipeline_mode<synchronous>, transform_indices = @transform_13, window_bounds = array<i64: 64, 128>}, {pipeline_mode = #tpu.pipeline_mode<synchronous>, transform_indices = @transform_14, window_bounds = array<i64: 1, 128>}, {pipeline_mode = #tpu.pipeline_mode<synchronous>, transform_indices = @transform_15, window_bounds = array<i64: 64, 64>}, {pipeline_mode = #tpu.pipeline_mode<synchronous>, transform_indices = @transform_16, window_bounds = array<i64: 1, 64>}, {pipeline_mode = #tpu.pipeline_mode<synchronous>, transform_indices = @transform_17, window_bounds = array<i64: 1, 64>}, {pipeline_mode = #tpu.pipeline_mode<synchronous>, transform_indices = @transform_18, window_bounds = array<i64: 1, 64>}, {pipeline_mode = #tpu.pipeline_mode<synchronous>, transform_indices = @transform_19, window_bounds = array<i64: 64, 2048>}, {pipeline_mode = #tpu.pipeline_mode<synchronous>, transform_indices = @transform_20, window_bounds = array<i64: 1, 2048>}, {pipeline_mode = #tpu.pipeline_mode<synchronous>, transform_indices = @transform_21, window_bounds = array<i64: 2048, 64>}, {pipeline_mode = #tpu.pipeline_mode<synchronous>, transform_indices = @transform_22, window_bounds = array<i64: 1, 64>}, {pipeline_mode = #tpu.pipeline_mode<synchronous>, transform_indices = @transform_23, window_bounds = array<i64: 1, 64>}, {pipeline_mode = #tpu.pipeline_mode<synchronous>, transform_indices = @transform_24, window_bounds = array<i64: 1, 64>}, {transform_indices = @transform_25, window_bounds = array<i64: 8, 64>}]} {
    %c0 = arith.constant 0 : index
    %c0_0 = arith.constant 0 : index
    %0 = vector.load %arg1[%c0, %c0_0] : memref<8x64xf32, #tpu.memory_space<vmem>>, vector<8x64xf32>
    %c0_1 = arith.constant 0 : index
    %c0_2 = arith.constant 0 : index
    %1 = vector.load %arg2[%c0_1, %c0_2] : memref<8x64xf32, #tpu.memory_space<vmem>>, vector<8x64xf32>
    %c0_3 = arith.constant 0 : index
    %c0_4 = arith.constant 0 : index
    %c0_5 = arith.constant 0 : index
    %2 = vector.load %arg3[%c0_3, %c0_4, %c0_5] : memref<1x8x8xf32, #tpu.memory_space<vmem>>, vector<1x8x8xf32>
    %3 = vector.shape_cast %2 : vector<1x8x8xf32> to vector<8x8xf32>
    %c0_6 = arith.constant 0 : index
    %c0_7 = arith.constant 0 : index
    %4 = vector.load %arg4[%c0_6, %c0_7] : memref<64x64xbf16, #tpu.memory_space<vmem>>, vector<64x64xbf16>
    %c0_8 = arith.constant 0 : index
    %c0_9 = arith.constant 0 : index
    %5 = vector.load %arg5[%c0_8, %c0_9] : memref<1x64xf32, #tpu.memory_space<vmem>>, vector<1x64xf32>
    %c0_10 = arith.constant 0 : index
    %c0_11 = arith.constant 0 : index
    %6 = vector.load %arg6[%c0_10, %c0_11] : memref<64x128xbf16, #tpu.memory_space<vmem>>, vector<64x128xbf16>
    %c0_12 = arith.constant 0 : index
    %c0_13 = arith.constant 0 : index
    %7 = vector.load %arg7[%c0_12, %c0_13] : memref<1x128xf32, #tpu.memory_space<vmem>>, vector<1x128xf32>
    %c0_14 = arith.constant 0 : index
    %c0_15 = arith.constant 0 : index
    %8 = vector.load %arg8[%c0_14, %c0_15] : memref<64x64xbf16, #tpu.memory_space<vmem>>, vector<64x64xbf16>
    %c0_16 = arith.constant 0 : index
    %c0_17 = arith.constant 0 : index
    %9 = vector.load %arg9[%c0_16, %c0_17] : memref<1x64xf32, #tpu.memory_space<vmem>>, vector<1x64xf32>
    %10 = arith.truncf %0 : vector<8x64xf32> to vector<8x64xbf16>
    %cst = arith.constant dense<0.000000e+00> : vector<8x64xf32>
    %11 = tpu.matmul %10, %4, %cst {dimension_numbers = #tpu.dot_dimension_numbers<[1], [0], [0], [1], [0, 0, 1, 1], [], []>} : vector<8x64xbf16>, vector<64x64xbf16>, vector<8x64xf32> -> vector<8x64xf32>
    %12 = vector.broadcast %5 : vector<1x64xf32> to vector<8x64xf32>
    %13 = arith.addf %11, %12 : vector<8x64xf32>
    %14 = arith.truncf %0 : vector<8x64xf32> to vector<8x64xbf16>
    %cst_18 = arith.constant dense<0.000000e+00> : vector<8x128xf32>
    %15 = tpu.matmul %14, %6, %cst_18 {dimension_numbers = #tpu.dot_dimension_numbers<[1], [0], [0], [1], [0, 0, 1, 1], [], []>} : vector<8x64xbf16>, vector<64x128xbf16>, vector<8x128xf32> -> vector<8x128xf32>
    %16 = vector.broadcast %7 : vector<1x128xf32> to vector<8x128xf32>
    %17 = arith.addf %15, %16 : vector<8x128xf32>
    %18 = vector.extract_strided_slice %17 {offsets = [0, 0], sizes = [8, 64], strides = [1, 1]} : vector<8x128xf32> to vector<8x64xf32>
    %19 = vector.extract_strided_slice %17 {offsets = [0, 64], sizes = [8, 64], strides = [1, 1]} : vector<8x128xf32> to vector<8x64xf32>
    %20 = vector.extract_strided_slice %13 {offsets = [0, 0], sizes = [8, 8], strides = [1, 1]} : vector<8x64xf32> to vector<8x8xf32>
    %21 = arith.truncf %20 : vector<8x8xf32> to vector<8x8xbf16>
    %22 = vector.extract_strided_slice %18 {offsets = [0, 0], sizes = [8, 8], strides = [1, 1]} : vector<8x64xf32> to vector<8x8xf32>
    %23 = arith.truncf %22 : vector<8x8xf32> to vector<8x8xbf16>
    %24 = vector.extract_strided_slice %19 {offsets = [0, 0], sizes = [8, 8], strides = [1, 1]} : vector<8x64xf32> to vector<8x8xf32>
    %25 = arith.truncf %24 : vector<8x8xf32> to vector<8x8xbf16>
    %cst_19 = arith.constant dense<0.000000e+00> : vector<8x8xf32>
    %26 = tpu.matmul %21, %23, %cst_19 {dimension_numbers = #tpu.dot_dimension_numbers<[1], [1], [0], [0], [0, 0, 1, 0], [], []>} : vector<8x8xbf16>, vector<8x8xbf16>, vector<8x8xf32> -> vector<8x8xf32>
    %cst_20 = arith.constant 0.353553385 : f32
    %27 = vector.broadcast %cst_20 : f32 to vector<8x8xf32>
    %28 = arith.mulf %26, %27 : vector<8x8xf32>
    %29 = arith.addf %28, %3 : vector<8x8xf32>
    %cst_21 = arith.constant dense<0xFF800000> : vector<8xf32>
    %30 = vector.multi_reduction <maximumf>, %29, %cst_21 [1] : vector<8x8xf32> to vector<8xf32>
    %31 = vector.shape_cast %30 : vector<8xf32> to vector<8x1xf32>
    %32 = vector.broadcast %31 : vector<8x1xf32> to vector<8x8xf32>
    %33 = arith.subf %29, %32 : vector<8x8xf32>
    %34 = math.exp %33 : vector<8x8xf32>
    %cst_22 = arith.constant dense<0.000000e+00> : vector<8xf32>
    %35 = vector.multi_reduction <add>, %34, %cst_22 [1] : vector<8x8xf32> to vector<8xf32>
    %36 = vector.shape_cast %35 : vector<8xf32> to vector<8x1xf32>
    %37 = tpu.reciprocal %36 {approx = true} : vector<8x1xf32> -> vector<8x1xf32>
    %38 = vector.broadcast %37 : vector<8x1xf32> to vector<8x8xf32>
    %39 = arith.mulf %34, %38 : vector<8x8xf32>
    %40 = arith.truncf %39 : vector<8x8xf32> to vector<8x8xbf16>
    %cst_23 = arith.constant dense<0.000000e+00> : vector<8x8xf32>
    %41 = tpu.matmul %40, %25, %cst_23 {dimension_numbers = #tpu.dot_dimension_numbers<[1], [0], [0], [1], [0, 0, 1, 1], [], []>} : vector<8x8xbf16>, vector<8x8xbf16>, vector<8x8xf32> -> vector<8x8xf32>
    %42 = vector.extract_strided_slice %13 {offsets = [0, 8], sizes = [8, 8], strides = [1, 1]} : vector<8x64xf32> to vector<8x8xf32>
    %43 = arith.truncf %42 : vector<8x8xf32> to vector<8x8xbf16>
    %44 = vector.extract_strided_slice %18 {offsets = [0, 8], sizes = [8, 8], strides = [1, 1]} : vector<8x64xf32> to vector<8x8xf32>
    %45 = arith.truncf %44 : vector<8x8xf32> to vector<8x8xbf16>
    %46 = vector.extract_strided_slice %19 {offsets = [0, 8], sizes = [8, 8], strides = [1, 1]} : vector<8x64xf32> to vector<8x8xf32>
    %47 = arith.truncf %46 : vector<8x8xf32> to vector<8x8xbf16>
    %cst_24 = arith.constant dense<0.000000e+00> : vector<8x8xf32>
    %48 = tpu.matmul %43, %45, %cst_24 {dimension_numbers = #tpu.dot_dimension_numbers<[1], [1], [0], [0], [0, 0, 1, 0], [], []>} : vector<8x8xbf16>, vector<8x8xbf16>, vector<8x8xf32> -> vector<8x8xf32>
    %cst_25 = arith.constant 0.353553385 : f32
    %49 = vector.broadcast %cst_25 : f32 to vector<8x8xf32>
    %50 = arith.mulf %48, %49 : vector<8x8xf32>
    %51 = arith.addf %50, %3 : vector<8x8xf32>
    %cst_26 = arith.constant dense<0xFF800000> : vector<8xf32>
    %52 = vector.multi_reduction <maximumf>, %51, %cst_26 [1] : vector<8x8xf32> to vector<8xf32>
    %53 = vector.shape_cast %52 : vector<8xf32> to vector<8x1xf32>
    %54 = vector.broadcast %53 : vector<8x1xf32> to vector<8x8xf32>
    %55 = arith.subf %51, %54 : vector<8x8xf32>
    %56 = math.exp %55 : vector<8x8xf32>
    %cst_27 = arith.constant dense<0.000000e+00> : vector<8xf32>
    %57 = vector.multi_reduction <add>, %56, %cst_27 [1] : vector<8x8xf32> to vector<8xf32>
    %58 = vector.shape_cast %57 : vector<8xf32> to vector<8x1xf32>
    %59 = tpu.reciprocal %58 {approx = true} : vector<8x1xf32> -> vector<8x1xf32>
    %60 = vector.broadcast %59 : vector<8x1xf32> to vector<8x8xf32>
    %61 = arith.mulf %56, %60 : vector<8x8xf32>
    %62 = arith.truncf %61 : vector<8x8xf32> to vector<8x8xbf16>
    %cst_28 = arith.constant dense<0.000000e+00> : vector<8x8xf32>
    %63 = tpu.matmul %62, %47, %cst_28 {dimension_numbers = #tpu.dot_dimension_numbers<[1], [0], [0], [1], [0, 0, 1, 1], [], []>} : vector<8x8xbf16>, vector<8x8xbf16>, vector<8x8xf32> -> vector<8x8xf32>
    %64 = vector.extract_strided_slice %13 {offsets = [0, 16], sizes = [8, 8], strides = [1, 1]} : vector<8x64xf32> to vector<8x8xf32>
    %65 = arith.truncf %64 : vector<8x8xf32> to vector<8x8xbf16>
    %66 = vector.extract_strided_slice %18 {offsets = [0, 16], sizes = [8, 8], strides = [1, 1]} : vector<8x64xf32> to vector<8x8xf32>
    %67 = arith.truncf %66 : vector<8x8xf32> to vector<8x8xbf16>
    %68 = vector.extract_strided_slice %19 {offsets = [0, 16], sizes = [8, 8], strides = [1, 1]} : vector<8x64xf32> to vector<8x8xf32>
    %69 = arith.truncf %68 : vector<8x8xf32> to vector<8x8xbf16>
    %cst_29 = arith.constant dense<0.000000e+00> : vector<8x8xf32>
    %70 = tpu.matmul %65, %67, %cst_29 {dimension_numbers = #tpu.dot_dimension_numbers<[1], [1], [0], [0], [0, 0, 1, 0], [], []>} : vector<8x8xbf16>, vector<8x8xbf16>, vector<8x8xf32> -> vector<8x8xf32>
    %cst_30 = arith.constant 0.353553385 : f32
    %71 = vector.broadcast %cst_30 : f32 to vector<8x8xf32>
    %72 = arith.mulf %70, %71 : vector<8x8xf32>
    %73 = arith.addf %72, %3 : vector<8x8xf32>
    %cst_31 = arith.constant dense<0xFF800000> : vector<8xf32>
    %74 = vector.multi_reduction <maximumf>, %73, %cst_31 [1] : vector<8x8xf32> to vector<8xf32>
    %75 = vector.shape_cast %74 : vector<8xf32> to vector<8x1xf32>
    %76 = vector.broadcast %75 : vector<8x1xf32> to vector<8x8xf32>
    %77 = arith.subf %73, %76 : vector<8x8xf32>
    %78 = math.exp %77 : vector<8x8xf32>
    %cst_32 = arith.constant dense<0.000000e+00> : vector<8xf32>
    %79 = vector.multi_reduction <add>, %78, %cst_32 [1] : vector<8x8xf32> to vector<8xf32>
    %80 = vector.shape_cast %79 : vector<8xf32> to vector<8x1xf32>
    %81 = tpu.reciprocal %80 {approx = true} : vector<8x1xf32> -> vector<8x1xf32>
    %82 = vector.broadcast %81 : vector<8x1xf32> to vector<8x8xf32>
    %83 = arith.mulf %78, %82 : vector<8x8xf32>
    %84 = arith.truncf %83 : vector<8x8xf32> to vector<8x8xbf16>
    %cst_33 = arith.constant dense<0.000000e+00> : vector<8x8xf32>
    %85 = tpu.matmul %84, %69, %cst_33 {dimension_numbers = #tpu.dot_dimension_numbers<[1], [0], [0], [1], [0, 0, 1, 1], [], []>} : vector<8x8xbf16>, vector<8x8xbf16>, vector<8x8xf32> -> vector<8x8xf32>
    %86 = vector.extract_strided_slice %13 {offsets = [0, 24], sizes = [8, 8], strides = [1, 1]} : vector<8x64xf32> to vector<8x8xf32>
    %87 = arith.truncf %86 : vector<8x8xf32> to vector<8x8xbf16>
    %88 = vector.extract_strided_slice %18 {offsets = [0, 24], sizes = [8, 8], strides = [1, 1]} : vector<8x64xf32> to vector<8x8xf32>
    %89 = arith.truncf %88 : vector<8x8xf32> to vector<8x8xbf16>
    %90 = vector.extract_strided_slice %19 {offsets = [0, 24], sizes = [8, 8], strides = [1, 1]} : vector<8x64xf32> to vector<8x8xf32>
    %91 = arith.truncf %90 : vector<8x8xf32> to vector<8x8xbf16>
    %cst_34 = arith.constant dense<0.000000e+00> : vector<8x8xf32>
    %92 = tpu.matmul %87, %89, %cst_34 {dimension_numbers = #tpu.dot_dimension_numbers<[1], [1], [0], [0], [0, 0, 1, 0], [], []>} : vector<8x8xbf16>, vector<8x8xbf16>, vector<8x8xf32> -> vector<8x8xf32>
    %cst_35 = arith.constant 0.353553385 : f32
    %93 = vector.broadcast %cst_35 : f32 to vector<8x8xf32>
    %94 = arith.mulf %92, %93 : vector<8x8xf32>
    %95 = arith.addf %94, %3 : vector<8x8xf32>
    %cst_36 = arith.constant dense<0xFF800000> : vector<8xf32>
    %96 = vector.multi_reduction <maximumf>, %95, %cst_36 [1] : vector<8x8xf32> to vector<8xf32>
    %97 = vector.shape_cast %96 : vector<8xf32> to vector<8x1xf32>
    %98 = vector.broadcast %97 : vector<8x1xf32> to vector<8x8xf32>
    %99 = arith.subf %95, %98 : vector<8x8xf32>
    %100 = math.exp %99 : vector<8x8xf32>
    %cst_37 = arith.constant dense<0.000000e+00> : vector<8xf32>
    %101 = vector.multi_reduction <add>, %100, %cst_37 [1] : vector<8x8xf32> to vector<8xf32>
    %102 = vector.shape_cast %101 : vector<8xf32> to vector<8x1xf32>
    %103 = tpu.reciprocal %102 {approx = true} : vector<8x1xf32> -> vector<8x1xf32>
    %104 = vector.broadcast %103 : vector<8x1xf32> to vector<8x8xf32>
    %105 = arith.mulf %100, %104 : vector<8x8xf32>
    %106 = arith.truncf %105 : vector<8x8xf32> to vector<8x8xbf16>
    %cst_38 = arith.constant dense<0.000000e+00> : vector<8x8xf32>
    %107 = tpu.matmul %106, %91, %cst_38 {dimension_numbers = #tpu.dot_dimension_numbers<[1], [0], [0], [1], [0, 0, 1, 1], [], []>} : vector<8x8xbf16>, vector<8x8xbf16>, vector<8x8xf32> -> vector<8x8xf32>
    %108 = vector.extract_strided_slice %13 {offsets = [0, 32], sizes = [8, 8], strides = [1, 1]} : vector<8x64xf32> to vector<8x8xf32>
    %109 = arith.truncf %108 : vector<8x8xf32> to vector<8x8xbf16>
    %110 = vector.extract_strided_slice %18 {offsets = [0, 32], sizes = [8, 8], strides = [1, 1]} : vector<8x64xf32> to vector<8x8xf32>
    %111 = arith.truncf %110 : vector<8x8xf32> to vector<8x8xbf16>
    %112 = vector.extract_strided_slice %19 {offsets = [0, 32], sizes = [8, 8], strides = [1, 1]} : vector<8x64xf32> to vector<8x8xf32>
    %113 = arith.truncf %112 : vector<8x8xf32> to vector<8x8xbf16>
    %cst_39 = arith.constant dense<0.000000e+00> : vector<8x8xf32>
    %114 = tpu.matmul %109, %111, %cst_39 {dimension_numbers = #tpu.dot_dimension_numbers<[1], [1], [0], [0], [0, 0, 1, 0], [], []>} : vector<8x8xbf16>, vector<8x8xbf16>, vector<8x8xf32> -> vector<8x8xf32>
    %cst_40 = arith.constant 0.353553385 : f32
    %115 = vector.broadcast %cst_40 : f32 to vector<8x8xf32>
    %116 = arith.mulf %114, %115 : vector<8x8xf32>
    %117 = arith.addf %116, %3 : vector<8x8xf32>
    %cst_41 = arith.constant dense<0xFF800000> : vector<8xf32>
    %118 = vector.multi_reduction <maximumf>, %117, %cst_41 [1] : vector<8x8xf32> to vector<8xf32>
    %119 = vector.shape_cast %118 : vector<8xf32> to vector<8x1xf32>
    %120 = vector.broadcast %119 : vector<8x1xf32> to vector<8x8xf32>
    %121 = arith.subf %117, %120 : vector<8x8xf32>
    %122 = math.exp %121 : vector<8x8xf32>
    %cst_42 = arith.constant dense<0.000000e+00> : vector<8xf32>
    %123 = vector.multi_reduction <add>, %122, %cst_42 [1] : vector<8x8xf32> to vector<8xf32>
    %124 = vector.shape_cast %123 : vector<8xf32> to vector<8x1xf32>
    %125 = tpu.reciprocal %124 {approx = true} : vector<8x1xf32> -> vector<8x1xf32>
    %126 = vector.broadcast %125 : vector<8x1xf32> to vector<8x8xf32>
    %127 = arith.mulf %122, %126 : vector<8x8xf32>
    %128 = arith.truncf %127 : vector<8x8xf32> to vector<8x8xbf16>
    %cst_43 = arith.constant dense<0.000000e+00> : vector<8x8xf32>
    %129 = tpu.matmul %128, %113, %cst_43 {dimension_numbers = #tpu.dot_dimension_numbers<[1], [0], [0], [1], [0, 0, 1, 1], [], []>} : vector<8x8xbf16>, vector<8x8xbf16>, vector<8x8xf32> -> vector<8x8xf32>
    %130 = vector.extract_strided_slice %13 {offsets = [0, 40], sizes = [8, 8], strides = [1, 1]} : vector<8x64xf32> to vector<8x8xf32>
    %131 = arith.truncf %130 : vector<8x8xf32> to vector<8x8xbf16>
    %132 = vector.extract_strided_slice %18 {offsets = [0, 40], sizes = [8, 8], strides = [1, 1]} : vector<8x64xf32> to vector<8x8xf32>
    %133 = arith.truncf %132 : vector<8x8xf32> to vector<8x8xbf16>
    %134 = vector.extract_strided_slice %19 {offsets = [0, 40], sizes = [8, 8], strides = [1, 1]} : vector<8x64xf32> to vector<8x8xf32>
    %135 = arith.truncf %134 : vector<8x8xf32> to vector<8x8xbf16>
    %cst_44 = arith.constant dense<0.000000e+00> : vector<8x8xf32>
    %136 = tpu.matmul %131, %133, %cst_44 {dimension_numbers = #tpu.dot_dimension_numbers<[1], [1], [0], [0], [0, 0, 1, 0], [], []>} : vector<8x8xbf16>, vector<8x8xbf16>, vector<8x8xf32> -> vector<8x8xf32>
    %cst_45 = arith.constant 0.353553385 : f32
    %137 = vector.broadcast %cst_45 : f32 to vector<8x8xf32>
    %138 = arith.mulf %136, %137 : vector<8x8xf32>
    %139 = arith.addf %138, %3 : vector<8x8xf32>
    %cst_46 = arith.constant dense<0xFF800000> : vector<8xf32>
    %140 = vector.multi_reduction <maximumf>, %139, %cst_46 [1] : vector<8x8xf32> to vector<8xf32>
    %141 = vector.shape_cast %140 : vector<8xf32> to vector<8x1xf32>
    %142 = vector.broadcast %141 : vector<8x1xf32> to vector<8x8xf32>
    %143 = arith.subf %139, %142 : vector<8x8xf32>
    %144 = math.exp %143 : vector<8x8xf32>
    %cst_47 = arith.constant dense<0.000000e+00> : vector<8xf32>
    %145 = vector.multi_reduction <add>, %144, %cst_47 [1] : vector<8x8xf32> to vector<8xf32>
    %146 = vector.shape_cast %145 : vector<8xf32> to vector<8x1xf32>
    %147 = tpu.reciprocal %146 {approx = true} : vector<8x1xf32> -> vector<8x1xf32>
    %148 = vector.broadcast %147 : vector<8x1xf32> to vector<8x8xf32>
    %149 = arith.mulf %144, %148 : vector<8x8xf32>
    %150 = arith.truncf %149 : vector<8x8xf32> to vector<8x8xbf16>
    %cst_48 = arith.constant dense<0.000000e+00> : vector<8x8xf32>
    %151 = tpu.matmul %150, %135, %cst_48 {dimension_numbers = #tpu.dot_dimension_numbers<[1], [0], [0], [1], [0, 0, 1, 1], [], []>} : vector<8x8xbf16>, vector<8x8xbf16>, vector<8x8xf32> -> vector<8x8xf32>
    %152 = vector.extract_strided_slice %13 {offsets = [0, 48], sizes = [8, 8], strides = [1, 1]} : vector<8x64xf32> to vector<8x8xf32>
    %153 = arith.truncf %152 : vector<8x8xf32> to vector<8x8xbf16>
    %154 = vector.extract_strided_slice %18 {offsets = [0, 48], sizes = [8, 8], strides = [1, 1]} : vector<8x64xf32> to vector<8x8xf32>
    %155 = arith.truncf %154 : vector<8x8xf32> to vector<8x8xbf16>
    %156 = vector.extract_strided_slice %19 {offsets = [0, 48], sizes = [8, 8], strides = [1, 1]} : vector<8x64xf32> to vector<8x8xf32>
    %157 = arith.truncf %156 : vector<8x8xf32> to vector<8x8xbf16>
    %cst_49 = arith.constant dense<0.000000e+00> : vector<8x8xf32>
    %158 = tpu.matmul %153, %155, %cst_49 {dimension_numbers = #tpu.dot_dimension_numbers<[1], [1], [0], [0], [0, 0, 1, 0], [], []>} : vector<8x8xbf16>, vector<8x8xbf16>, vector<8x8xf32> -> vector<8x8xf32>
    %cst_50 = arith.constant 0.353553385 : f32
    %159 = vector.broadcast %cst_50 : f32 to vector<8x8xf32>
    %160 = arith.mulf %158, %159 : vector<8x8xf32>
    %161 = arith.addf %160, %3 : vector<8x8xf32>
    %cst_51 = arith.constant dense<0xFF800000> : vector<8xf32>
    %162 = vector.multi_reduction <maximumf>, %161, %cst_51 [1] : vector<8x8xf32> to vector<8xf32>
    %163 = vector.shape_cast %162 : vector<8xf32> to vector<8x1xf32>
    %164 = vector.broadcast %163 : vector<8x1xf32> to vector<8x8xf32>
    %165 = arith.subf %161, %164 : vector<8x8xf32>
    %166 = math.exp %165 : vector<8x8xf32>
    %cst_52 = arith.constant dense<0.000000e+00> : vector<8xf32>
    %167 = vector.multi_reduction <add>, %166, %cst_52 [1] : vector<8x8xf32> to vector<8xf32>
    %168 = vector.shape_cast %167 : vector<8xf32> to vector<8x1xf32>
    %169 = tpu.reciprocal %168 {approx = true} : vector<8x1xf32> -> vector<8x1xf32>
    %170 = vector.broadcast %169 : vector<8x1xf32> to vector<8x8xf32>
    %171 = arith.mulf %166, %170 : vector<8x8xf32>
    %172 = arith.truncf %171 : vector<8x8xf32> to vector<8x8xbf16>
    %cst_53 = arith.constant dense<0.000000e+00> : vector<8x8xf32>
    %173 = tpu.matmul %172, %157, %cst_53 {dimension_numbers = #tpu.dot_dimension_numbers<[1], [0], [0], [1], [0, 0, 1, 1], [], []>} : vector<8x8xbf16>, vector<8x8xbf16>, vector<8x8xf32> -> vector<8x8xf32>
    %174 = vector.extract_strided_slice %13 {offsets = [0, 56], sizes = [8, 8], strides = [1, 1]} : vector<8x64xf32> to vector<8x8xf32>
    %175 = arith.truncf %174 : vector<8x8xf32> to vector<8x8xbf16>
    %176 = vector.extract_strided_slice %18 {offsets = [0, 56], sizes = [8, 8], strides = [1, 1]} : vector<8x64xf32> to vector<8x8xf32>
    %177 = arith.truncf %176 : vector<8x8xf32> to vector<8x8xbf16>
    %178 = vector.extract_strided_slice %19 {offsets = [0, 56], sizes = [8, 8], strides = [1, 1]} : vector<8x64xf32> to vector<8x8xf32>
    %179 = arith.truncf %178 : vector<8x8xf32> to vector<8x8xbf16>
    %cst_54 = arith.constant dense<0.000000e+00> : vector<8x8xf32>
    %180 = tpu.matmul %175, %177, %cst_54 {dimension_numbers = #tpu.dot_dimension_numbers<[1], [1], [0], [0], [0, 0, 1, 0], [], []>} : vector<8x8xbf16>, vector<8x8xbf16>, vector<8x8xf32> -> vector<8x8xf32>
    %cst_55 = arith.constant 0.353553385 : f32
    %181 = vector.broadcast %cst_55 : f32 to vector<8x8xf32>
    %182 = arith.mulf %180, %181 : vector<8x8xf32>
    %183 = arith.addf %182, %3 : vector<8x8xf32>
    %cst_56 = arith.constant dense<0xFF800000> : vector<8xf32>
    %184 = vector.multi_reduction <maximumf>, %183, %cst_56 [1] : vector<8x8xf32> to vector<8xf32>
    %185 = vector.shape_cast %184 : vector<8xf32> to vector<8x1xf32>
    %186 = vector.broadcast %185 : vector<8x1xf32> to vector<8x8xf32>
    %187 = arith.subf %183, %186 : vector<8x8xf32>
    %188 = math.exp %187 : vector<8x8xf32>
    %cst_57 = arith.constant dense<0.000000e+00> : vector<8xf32>
    %189 = vector.multi_reduction <add>, %188, %cst_57 [1] : vector<8x8xf32> to vector<8xf32>
    %190 = vector.shape_cast %189 : vector<8xf32> to vector<8x1xf32>
    %191 = tpu.reciprocal %190 {approx = true} : vector<8x1xf32> -> vector<8x1xf32>
    %192 = vector.broadcast %191 : vector<8x1xf32> to vector<8x8xf32>
    %193 = arith.mulf %188, %192 : vector<8x8xf32>
    %194 = arith.truncf %193 : vector<8x8xf32> to vector<8x8xbf16>
    %cst_58 = arith.constant dense<0.000000e+00> : vector<8x8xf32>
    %195 = tpu.matmul %194, %179, %cst_58 {dimension_numbers = #tpu.dot_dimension_numbers<[1], [0], [0], [1], [0, 0, 1, 1], [], []>} : vector<8x8xbf16>, vector<8x8xbf16>, vector<8x8xf32> -> vector<8x8xf32>
    %196 = tpu.concatenate %41, %63, %85, %107, %129, %151, %173, %195 in 1 : vector<8x8xf32>, vector<8x8xf32>, vector<8x8xf32>, vector<8x8xf32>, vector<8x8xf32>, vector<8x8xf32>, vector<8x8xf32>, vector<8x8xf32> -> vector<8x64xf32>
    %197 = arith.truncf %196 : vector<8x64xf32> to vector<8x64xbf16>
    %cst_59 = arith.constant dense<0.000000e+00> : vector<8x64xf32>
    %198 = tpu.matmul %197, %8, %cst_59 {dimension_numbers = #tpu.dot_dimension_numbers<[1], [0], [0], [1], [0, 0, 1, 1], [], []>} : vector<8x64xbf16>, vector<64x64xbf16>, vector<8x64xf32> -> vector<8x64xf32>
    %199 = vector.broadcast %9 : vector<1x64xf32> to vector<8x64xf32>
    %200 = arith.addf %198, %199 : vector<8x64xf32>
    %201 = arith.addf %0, %200 : vector<8x64xf32>
    %c0_60 = arith.constant 0 : index
    %c0_61 = arith.constant 0 : index
    %202 = vector.load %arg10[%c0_60, %c0_61] : memref<1x64xf32, #tpu.memory_space<vmem>>, vector<1x64xf32>
    %c0_62 = arith.constant 0 : index
    %c0_63 = arith.constant 0 : index
    %203 = vector.load %arg11[%c0_62, %c0_63] : memref<1x64xf32, #tpu.memory_space<vmem>>, vector<1x64xf32>
    %cst_64 = arith.constant dense<0.000000e+00> : vector<8xf32>
    %204 = vector.multi_reduction <add>, %201, %cst_64 [1] : vector<8x64xf32> to vector<8xf32>
    %205 = vector.shape_cast %204 : vector<8xf32> to vector<8x1xf32>
    %cst_65 = arith.constant 6.400000e+01 : f32
    %206 = vector.broadcast %cst_65 : f32 to vector<8x1xf32>
    %207 = arith.divf %205, %206 : vector<8x1xf32>
    %208 = vector.broadcast %207 : vector<8x1xf32> to vector<8x64xf32>
    %209 = arith.subf %201, %208 : vector<8x64xf32>
    %210 = arith.mulf %209, %209 : vector<8x64xf32>
    %cst_66 = arith.constant dense<0.000000e+00> : vector<8xf32>
    %211 = vector.multi_reduction <add>, %210, %cst_66 [1] : vector<8x64xf32> to vector<8xf32>
    %212 = vector.shape_cast %211 : vector<8xf32> to vector<8x1xf32>
    %cst_67 = arith.constant 6.400000e+01 : f32
    %213 = vector.broadcast %cst_67 : f32 to vector<8x1xf32>
    %214 = arith.divf %212, %213 : vector<8x1xf32>
    %215 = vector.broadcast %207 : vector<8x1xf32> to vector<8x64xf32>
    %216 = arith.subf %201, %215 : vector<8x64xf32>
    %cst_68 = arith.constant 9.99999974E-6 : f32
    %217 = vector.broadcast %cst_68 : f32 to vector<8x1xf32>
    %218 = arith.addf %214, %217 : vector<8x1xf32>
    %219 = math.rsqrt %218 : vector<8x1xf32>
    %220 = vector.broadcast %219 : vector<8x1xf32> to vector<8x64xf32>
    %221 = arith.mulf %216, %220 : vector<8x64xf32>
    %222 = vector.broadcast %202 : vector<1x64xf32> to vector<8x64xf32>
    %223 = arith.mulf %221, %222 : vector<8x64xf32>
    %224 = vector.broadcast %203 : vector<1x64xf32> to vector<8x64xf32>
    %225 = arith.addf %223, %224 : vector<8x64xf32>
    %c0_69 = arith.constant 0 : index
    %c0_70 = arith.constant 0 : index
    %226 = vector.load %arg12[%c0_69, %c0_70] : memref<64x64xbf16, #tpu.memory_space<vmem>>, vector<64x64xbf16>
    %c0_71 = arith.constant 0 : index
    %c0_72 = arith.constant 0 : index
    %227 = vector.load %arg13[%c0_71, %c0_72] : memref<1x64xf32, #tpu.memory_space<vmem>>, vector<1x64xf32>
    %c0_73 = arith.constant 0 : index
    %c0_74 = arith.constant 0 : index
    %228 = vector.load %arg14[%c0_73, %c0_74] : memref<64x128xbf16, #tpu.memory_space<vmem>>, vector<64x128xbf16>
    %c0_75 = arith.constant 0 : index
    %c0_76 = arith.constant 0 : index
    %229 = vector.load %arg15[%c0_75, %c0_76] : memref<1x128xf32, #tpu.memory_space<vmem>>, vector<1x128xf32>
    %c0_77 = arith.constant 0 : index
    %c0_78 = arith.constant 0 : index
    %230 = vector.load %arg16[%c0_77, %c0_78] : memref<64x64xbf16, #tpu.memory_space<vmem>>, vector<64x64xbf16>
    %c0_79 = arith.constant 0 : index
    %c0_80 = arith.constant 0 : index
    %231 = vector.load %arg17[%c0_79, %c0_80] : memref<1x64xf32, #tpu.memory_space<vmem>>, vector<1x64xf32>
    %232 = arith.truncf %225 : vector<8x64xf32> to vector<8x64xbf16>
    %cst_81 = arith.constant dense<0.000000e+00> : vector<8x64xf32>
    %233 = tpu.matmul %232, %226, %cst_81 {dimension_numbers = #tpu.dot_dimension_numbers<[1], [0], [0], [1], [0, 0, 1, 1], [], []>} : vector<8x64xbf16>, vector<64x64xbf16>, vector<8x64xf32> -> vector<8x64xf32>
    %234 = vector.broadcast %227 : vector<1x64xf32> to vector<8x64xf32>
    %235 = arith.addf %233, %234 : vector<8x64xf32>
    %236 = arith.truncf %1 : vector<8x64xf32> to vector<8x64xbf16>
    %cst_82 = arith.constant dense<0.000000e+00> : vector<8x128xf32>
    %237 = tpu.matmul %236, %228, %cst_82 {dimension_numbers = #tpu.dot_dimension_numbers<[1], [0], [0], [1], [0, 0, 1, 1], [], []>} : vector<8x64xbf16>, vector<64x128xbf16>, vector<8x128xf32> -> vector<8x128xf32>
    %238 = vector.broadcast %229 : vector<1x128xf32> to vector<8x128xf32>
    %239 = arith.addf %237, %238 : vector<8x128xf32>
    %240 = vector.extract_strided_slice %239 {offsets = [0, 0], sizes = [8, 64], strides = [1, 1]} : vector<8x128xf32> to vector<8x64xf32>
    %241 = vector.extract_strided_slice %239 {offsets = [0, 64], sizes = [8, 64], strides = [1, 1]} : vector<8x128xf32> to vector<8x64xf32>
    %242 = vector.extract_strided_slice %235 {offsets = [0, 0], sizes = [8, 8], strides = [1, 1]} : vector<8x64xf32> to vector<8x8xf32>
    %243 = arith.truncf %242 : vector<8x8xf32> to vector<8x8xbf16>
    %244 = vector.extract_strided_slice %240 {offsets = [0, 0], sizes = [8, 8], strides = [1, 1]} : vector<8x64xf32> to vector<8x8xf32>
    %245 = arith.truncf %244 : vector<8x8xf32> to vector<8x8xbf16>
    %246 = vector.extract_strided_slice %241 {offsets = [0, 0], sizes = [8, 8], strides = [1, 1]} : vector<8x64xf32> to vector<8x8xf32>
    %247 = arith.truncf %246 : vector<8x8xf32> to vector<8x8xbf16>
    %cst_83 = arith.constant dense<0.000000e+00> : vector<8x8xf32>
    %248 = tpu.matmul %243, %245, %cst_83 {dimension_numbers = #tpu.dot_dimension_numbers<[1], [1], [0], [0], [0, 0, 1, 0], [], []>} : vector<8x8xbf16>, vector<8x8xbf16>, vector<8x8xf32> -> vector<8x8xf32>
    %cst_84 = arith.constant 0.353553385 : f32
    %249 = vector.broadcast %cst_84 : f32 to vector<8x8xf32>
    %250 = arith.mulf %248, %249 : vector<8x8xf32>
    %cst_85 = arith.constant dense<0xFF800000> : vector<8xf32>
    %251 = vector.multi_reduction <maximumf>, %250, %cst_85 [1] : vector<8x8xf32> to vector<8xf32>
    %252 = vector.shape_cast %251 : vector<8xf32> to vector<8x1xf32>
    %253 = vector.broadcast %252 : vector<8x1xf32> to vector<8x8xf32>
    %254 = arith.subf %250, %253 : vector<8x8xf32>
    %255 = math.exp %254 : vector<8x8xf32>
    %cst_86 = arith.constant dense<0.000000e+00> : vector<8xf32>
    %256 = vector.multi_reduction <add>, %255, %cst_86 [1] : vector<8x8xf32> to vector<8xf32>
    %257 = vector.shape_cast %256 : vector<8xf32> to vector<8x1xf32>
    %258 = tpu.reciprocal %257 {approx = true} : vector<8x1xf32> -> vector<8x1xf32>
    %259 = vector.broadcast %258 : vector<8x1xf32> to vector<8x8xf32>
    %260 = arith.mulf %255, %259 : vector<8x8xf32>
    %261 = arith.truncf %260 : vector<8x8xf32> to vector<8x8xbf16>
    %cst_87 = arith.constant dense<0.000000e+00> : vector<8x8xf32>
    %262 = tpu.matmul %261, %247, %cst_87 {dimension_numbers = #tpu.dot_dimension_numbers<[1], [0], [0], [1], [0, 0, 1, 1], [], []>} : vector<8x8xbf16>, vector<8x8xbf16>, vector<8x8xf32> -> vector<8x8xf32>
    %263 = vector.extract_strided_slice %235 {offsets = [0, 8], sizes = [8, 8], strides = [1, 1]} : vector<8x64xf32> to vector<8x8xf32>
    %264 = arith.truncf %263 : vector<8x8xf32> to vector<8x8xbf16>
    %265 = vector.extract_strided_slice %240 {offsets = [0, 8], sizes = [8, 8], strides = [1, 1]} : vector<8x64xf32> to vector<8x8xf32>
    %266 = arith.truncf %265 : vector<8x8xf32> to vector<8x8xbf16>
    %267 = vector.extract_strided_slice %241 {offsets = [0, 8], sizes = [8, 8], strides = [1, 1]} : vector<8x64xf32> to vector<8x8xf32>
    %268 = arith.truncf %267 : vector<8x8xf32> to vector<8x8xbf16>
    %cst_88 = arith.constant dense<0.000000e+00> : vector<8x8xf32>
    %269 = tpu.matmul %264, %266, %cst_88 {dimension_numbers = #tpu.dot_dimension_numbers<[1], [1], [0], [0], [0, 0, 1, 0], [], []>} : vector<8x8xbf16>, vector<8x8xbf16>, vector<8x8xf32> -> vector<8x8xf32>
    %cst_89 = arith.constant 0.353553385 : f32
    %270 = vector.broadcast %cst_89 : f32 to vector<8x8xf32>
    %271 = arith.mulf %269, %270 : vector<8x8xf32>
    %cst_90 = arith.constant dense<0xFF800000> : vector<8xf32>
    %272 = vector.multi_reduction <maximumf>, %271, %cst_90 [1] : vector<8x8xf32> to vector<8xf32>
    %273 = vector.shape_cast %272 : vector<8xf32> to vector<8x1xf32>
    %274 = vector.broadcast %273 : vector<8x1xf32> to vector<8x8xf32>
    %275 = arith.subf %271, %274 : vector<8x8xf32>
    %276 = math.exp %275 : vector<8x8xf32>
    %cst_91 = arith.constant dense<0.000000e+00> : vector<8xf32>
    %277 = vector.multi_reduction <add>, %276, %cst_91 [1] : vector<8x8xf32> to vector<8xf32>
    %278 = vector.shape_cast %277 : vector<8xf32> to vector<8x1xf32>
    %279 = tpu.reciprocal %278 {approx = true} : vector<8x1xf32> -> vector<8x1xf32>
    %280 = vector.broadcast %279 : vector<8x1xf32> to vector<8x8xf32>
    %281 = arith.mulf %276, %280 : vector<8x8xf32>
    %282 = arith.truncf %281 : vector<8x8xf32> to vector<8x8xbf16>
    %cst_92 = arith.constant dense<0.000000e+00> : vector<8x8xf32>
    %283 = tpu.matmul %282, %268, %cst_92 {dimension_numbers = #tpu.dot_dimension_numbers<[1], [0], [0], [1], [0, 0, 1, 1], [], []>} : vector<8x8xbf16>, vector<8x8xbf16>, vector<8x8xf32> -> vector<8x8xf32>
    %284 = vector.extract_strided_slice %235 {offsets = [0, 16], sizes = [8, 8], strides = [1, 1]} : vector<8x64xf32> to vector<8x8xf32>
    %285 = arith.truncf %284 : vector<8x8xf32> to vector<8x8xbf16>
    %286 = vector.extract_strided_slice %240 {offsets = [0, 16], sizes = [8, 8], strides = [1, 1]} : vector<8x64xf32> to vector<8x8xf32>
    %287 = arith.truncf %286 : vector<8x8xf32> to vector<8x8xbf16>
    %288 = vector.extract_strided_slice %241 {offsets = [0, 16], sizes = [8, 8], strides = [1, 1]} : vector<8x64xf32> to vector<8x8xf32>
    %289 = arith.truncf %288 : vector<8x8xf32> to vector<8x8xbf16>
    %cst_93 = arith.constant dense<0.000000e+00> : vector<8x8xf32>
    %290 = tpu.matmul %285, %287, %cst_93 {dimension_numbers = #tpu.dot_dimension_numbers<[1], [1], [0], [0], [0, 0, 1, 0], [], []>} : vector<8x8xbf16>, vector<8x8xbf16>, vector<8x8xf32> -> vector<8x8xf32>
    %cst_94 = arith.constant 0.353553385 : f32
    %291 = vector.broadcast %cst_94 : f32 to vector<8x8xf32>
    %292 = arith.mulf %290, %291 : vector<8x8xf32>
    %cst_95 = arith.constant dense<0xFF800000> : vector<8xf32>
    %293 = vector.multi_reduction <maximumf>, %292, %cst_95 [1] : vector<8x8xf32> to vector<8xf32>
    %294 = vector.shape_cast %293 : vector<8xf32> to vector<8x1xf32>
    %295 = vector.broadcast %294 : vector<8x1xf32> to vector<8x8xf32>
    %296 = arith.subf %292, %295 : vector<8x8xf32>
    %297 = math.exp %296 : vector<8x8xf32>
    %cst_96 = arith.constant dense<0.000000e+00> : vector<8xf32>
    %298 = vector.multi_reduction <add>, %297, %cst_96 [1] : vector<8x8xf32> to vector<8xf32>
    %299 = vector.shape_cast %298 : vector<8xf32> to vector<8x1xf32>
    %300 = tpu.reciprocal %299 {approx = true} : vector<8x1xf32> -> vector<8x1xf32>
    %301 = vector.broadcast %300 : vector<8x1xf32> to vector<8x8xf32>
    %302 = arith.mulf %297, %301 : vector<8x8xf32>
    %303 = arith.truncf %302 : vector<8x8xf32> to vector<8x8xbf16>
    %cst_97 = arith.constant dense<0.000000e+00> : vector<8x8xf32>
    %304 = tpu.matmul %303, %289, %cst_97 {dimension_numbers = #tpu.dot_dimension_numbers<[1], [0], [0], [1], [0, 0, 1, 1], [], []>} : vector<8x8xbf16>, vector<8x8xbf16>, vector<8x8xf32> -> vector<8x8xf32>
    %305 = vector.extract_strided_slice %235 {offsets = [0, 24], sizes = [8, 8], strides = [1, 1]} : vector<8x64xf32> to vector<8x8xf32>
    %306 = arith.truncf %305 : vector<8x8xf32> to vector<8x8xbf16>
    %307 = vector.extract_strided_slice %240 {offsets = [0, 24], sizes = [8, 8], strides = [1, 1]} : vector<8x64xf32> to vector<8x8xf32>
    %308 = arith.truncf %307 : vector<8x8xf32> to vector<8x8xbf16>
    %309 = vector.extract_strided_slice %241 {offsets = [0, 24], sizes = [8, 8], strides = [1, 1]} : vector<8x64xf32> to vector<8x8xf32>
    %310 = arith.truncf %309 : vector<8x8xf32> to vector<8x8xbf16>
    %cst_98 = arith.constant dense<0.000000e+00> : vector<8x8xf32>
    %311 = tpu.matmul %306, %308, %cst_98 {dimension_numbers = #tpu.dot_dimension_numbers<[1], [1], [0], [0], [0, 0, 1, 0], [], []>} : vector<8x8xbf16>, vector<8x8xbf16>, vector<8x8xf32> -> vector<8x8xf32>
    %cst_99 = arith.constant 0.353553385 : f32
    %312 = vector.broadcast %cst_99 : f32 to vector<8x8xf32>
    %313 = arith.mulf %311, %312 : vector<8x8xf32>
    %cst_100 = arith.constant dense<0xFF800000> : vector<8xf32>
    %314 = vector.multi_reduction <maximumf>, %313, %cst_100 [1] : vector<8x8xf32> to vector<8xf32>
    %315 = vector.shape_cast %314 : vector<8xf32> to vector<8x1xf32>
    %316 = vector.broadcast %315 : vector<8x1xf32> to vector<8x8xf32>
    %317 = arith.subf %313, %316 : vector<8x8xf32>
    %318 = math.exp %317 : vector<8x8xf32>
    %cst_101 = arith.constant dense<0.000000e+00> : vector<8xf32>
    %319 = vector.multi_reduction <add>, %318, %cst_101 [1] : vector<8x8xf32> to vector<8xf32>
    %320 = vector.shape_cast %319 : vector<8xf32> to vector<8x1xf32>
    %321 = tpu.reciprocal %320 {approx = true} : vector<8x1xf32> -> vector<8x1xf32>
    %322 = vector.broadcast %321 : vector<8x1xf32> to vector<8x8xf32>
    %323 = arith.mulf %318, %322 : vector<8x8xf32>
    %324 = arith.truncf %323 : vector<8x8xf32> to vector<8x8xbf16>
    %cst_102 = arith.constant dense<0.000000e+00> : vector<8x8xf32>
    %325 = tpu.matmul %324, %310, %cst_102 {dimension_numbers = #tpu.dot_dimension_numbers<[1], [0], [0], [1], [0, 0, 1, 1], [], []>} : vector<8x8xbf16>, vector<8x8xbf16>, vector<8x8xf32> -> vector<8x8xf32>
    %326 = vector.extract_strided_slice %235 {offsets = [0, 32], sizes = [8, 8], strides = [1, 1]} : vector<8x64xf32> to vector<8x8xf32>
    %327 = arith.truncf %326 : vector<8x8xf32> to vector<8x8xbf16>
    %328 = vector.extract_strided_slice %240 {offsets = [0, 32], sizes = [8, 8], strides = [1, 1]} : vector<8x64xf32> to vector<8x8xf32>
    %329 = arith.truncf %328 : vector<8x8xf32> to vector<8x8xbf16>
    %330 = vector.extract_strided_slice %241 {offsets = [0, 32], sizes = [8, 8], strides = [1, 1]} : vector<8x64xf32> to vector<8x8xf32>
    %331 = arith.truncf %330 : vector<8x8xf32> to vector<8x8xbf16>
    %cst_103 = arith.constant dense<0.000000e+00> : vector<8x8xf32>
    %332 = tpu.matmul %327, %329, %cst_103 {dimension_numbers = #tpu.dot_dimension_numbers<[1], [1], [0], [0], [0, 0, 1, 0], [], []>} : vector<8x8xbf16>, vector<8x8xbf16>, vector<8x8xf32> -> vector<8x8xf32>
    %cst_104 = arith.constant 0.353553385 : f32
    %333 = vector.broadcast %cst_104 : f32 to vector<8x8xf32>
    %334 = arith.mulf %332, %333 : vector<8x8xf32>
    %cst_105 = arith.constant dense<0xFF800000> : vector<8xf32>
    %335 = vector.multi_reduction <maximumf>, %334, %cst_105 [1] : vector<8x8xf32> to vector<8xf32>
    %336 = vector.shape_cast %335 : vector<8xf32> to vector<8x1xf32>
    %337 = vector.broadcast %336 : vector<8x1xf32> to vector<8x8xf32>
    %338 = arith.subf %334, %337 : vector<8x8xf32>
    %339 = math.exp %338 : vector<8x8xf32>
    %cst_106 = arith.constant dense<0.000000e+00> : vector<8xf32>
    %340 = vector.multi_reduction <add>, %339, %cst_106 [1] : vector<8x8xf32> to vector<8xf32>
    %341 = vector.shape_cast %340 : vector<8xf32> to vector<8x1xf32>
    %342 = tpu.reciprocal %341 {approx = true} : vector<8x1xf32> -> vector<8x1xf32>
    %343 = vector.broadcast %342 : vector<8x1xf32> to vector<8x8xf32>
    %344 = arith.mulf %339, %343 : vector<8x8xf32>
    %345 = arith.truncf %344 : vector<8x8xf32> to vector<8x8xbf16>
    %cst_107 = arith.constant dense<0.000000e+00> : vector<8x8xf32>
    %346 = tpu.matmul %345, %331, %cst_107 {dimension_numbers = #tpu.dot_dimension_numbers<[1], [0], [0], [1], [0, 0, 1, 1], [], []>} : vector<8x8xbf16>, vector<8x8xbf16>, vector<8x8xf32> -> vector<8x8xf32>
    %347 = vector.extract_strided_slice %235 {offsets = [0, 40], sizes = [8, 8], strides = [1, 1]} : vector<8x64xf32> to vector<8x8xf32>
    %348 = arith.truncf %347 : vector<8x8xf32> to vector<8x8xbf16>
    %349 = vector.extract_strided_slice %240 {offsets = [0, 40], sizes = [8, 8], strides = [1, 1]} : vector<8x64xf32> to vector<8x8xf32>
    %350 = arith.truncf %349 : vector<8x8xf32> to vector<8x8xbf16>
    %351 = vector.extract_strided_slice %241 {offsets = [0, 40], sizes = [8, 8], strides = [1, 1]} : vector<8x64xf32> to vector<8x8xf32>
    %352 = arith.truncf %351 : vector<8x8xf32> to vector<8x8xbf16>
    %cst_108 = arith.constant dense<0.000000e+00> : vector<8x8xf32>
    %353 = tpu.matmul %348, %350, %cst_108 {dimension_numbers = #tpu.dot_dimension_numbers<[1], [1], [0], [0], [0, 0, 1, 0], [], []>} : vector<8x8xbf16>, vector<8x8xbf16>, vector<8x8xf32> -> vector<8x8xf32>
    %cst_109 = arith.constant 0.353553385 : f32
    %354 = vector.broadcast %cst_109 : f32 to vector<8x8xf32>
    %355 = arith.mulf %353, %354 : vector<8x8xf32>
    %cst_110 = arith.constant dense<0xFF800000> : vector<8xf32>
    %356 = vector.multi_reduction <maximumf>, %355, %cst_110 [1] : vector<8x8xf32> to vector<8xf32>
    %357 = vector.shape_cast %356 : vector<8xf32> to vector<8x1xf32>
    %358 = vector.broadcast %357 : vector<8x1xf32> to vector<8x8xf32>
    %359 = arith.subf %355, %358 : vector<8x8xf32>
    %360 = math.exp %359 : vector<8x8xf32>
    %cst_111 = arith.constant dense<0.000000e+00> : vector<8xf32>
    %361 = vector.multi_reduction <add>, %360, %cst_111 [1] : vector<8x8xf32> to vector<8xf32>
    %362 = vector.shape_cast %361 : vector<8xf32> to vector<8x1xf32>
    %363 = tpu.reciprocal %362 {approx = true} : vector<8x1xf32> -> vector<8x1xf32>
    %364 = vector.broadcast %363 : vector<8x1xf32> to vector<8x8xf32>
    %365 = arith.mulf %360, %364 : vector<8x8xf32>
    %366 = arith.truncf %365 : vector<8x8xf32> to vector<8x8xbf16>
    %cst_112 = arith.constant dense<0.000000e+00> : vector<8x8xf32>
    %367 = tpu.matmul %366, %352, %cst_112 {dimension_numbers = #tpu.dot_dimension_numbers<[1], [0], [0], [1], [0, 0, 1, 1], [], []>} : vector<8x8xbf16>, vector<8x8xbf16>, vector<8x8xf32> -> vector<8x8xf32>
    %368 = vector.extract_strided_slice %235 {offsets = [0, 48], sizes = [8, 8], strides = [1, 1]} : vector<8x64xf32> to vector<8x8xf32>
    %369 = arith.truncf %368 : vector<8x8xf32> to vector<8x8xbf16>
    %370 = vector.extract_strided_slice %240 {offsets = [0, 48], sizes = [8, 8], strides = [1, 1]} : vector<8x64xf32> to vector<8x8xf32>
    %371 = arith.truncf %370 : vector<8x8xf32> to vector<8x8xbf16>
    %372 = vector.extract_strided_slice %241 {offsets = [0, 48], sizes = [8, 8], strides = [1, 1]} : vector<8x64xf32> to vector<8x8xf32>
    %373 = arith.truncf %372 : vector<8x8xf32> to vector<8x8xbf16>
    %cst_113 = arith.constant dense<0.000000e+00> : vector<8x8xf32>
    %374 = tpu.matmul %369, %371, %cst_113 {dimension_numbers = #tpu.dot_dimension_numbers<[1], [1], [0], [0], [0, 0, 1, 0], [], []>} : vector<8x8xbf16>, vector<8x8xbf16>, vector<8x8xf32> -> vector<8x8xf32>
    %cst_114 = arith.constant 0.353553385 : f32
    %375 = vector.broadcast %cst_114 : f32 to vector<8x8xf32>
    %376 = arith.mulf %374, %375 : vector<8x8xf32>
    %cst_115 = arith.constant dense<0xFF800000> : vector<8xf32>
    %377 = vector.multi_reduction <maximumf>, %376, %cst_115 [1] : vector<8x8xf32> to vector<8xf32>
    %378 = vector.shape_cast %377 : vector<8xf32> to vector<8x1xf32>
    %379 = vector.broadcast %378 : vector<8x1xf32> to vector<8x8xf32>
    %380 = arith.subf %376, %379 : vector<8x8xf32>
    %381 = math.exp %380 : vector<8x8xf32>
    %cst_116 = arith.constant dense<0.000000e+00> : vector<8xf32>
    %382 = vector.multi_reduction <add>, %381, %cst_116 [1] : vector<8x8xf32> to vector<8xf32>
    %383 = vector.shape_cast %382 : vector<8xf32> to vector<8x1xf32>
    %384 = tpu.reciprocal %383 {approx = true} : vector<8x1xf32> -> vector<8x1xf32>
    %385 = vector.broadcast %384 : vector<8x1xf32> to vector<8x8xf32>
    %386 = arith.mulf %381, %385 : vector<8x8xf32>
    %387 = arith.truncf %386 : vector<8x8xf32> to vector<8x8xbf16>
    %cst_117 = arith.constant dense<0.000000e+00> : vector<8x8xf32>
    %388 = tpu.matmul %387, %373, %cst_117 {dimension_numbers = #tpu.dot_dimension_numbers<[1], [0], [0], [1], [0, 0, 1, 1], [], []>} : vector<8x8xbf16>, vector<8x8xbf16>, vector<8x8xf32> -> vector<8x8xf32>
    %389 = vector.extract_strided_slice %235 {offsets = [0, 56], sizes = [8, 8], strides = [1, 1]} : vector<8x64xf32> to vector<8x8xf32>
    %390 = arith.truncf %389 : vector<8x8xf32> to vector<8x8xbf16>
    %391 = vector.extract_strided_slice %240 {offsets = [0, 56], sizes = [8, 8], strides = [1, 1]} : vector<8x64xf32> to vector<8x8xf32>
    %392 = arith.truncf %391 : vector<8x8xf32> to vector<8x8xbf16>
    %393 = vector.extract_strided_slice %241 {offsets = [0, 56], sizes = [8, 8], strides = [1, 1]} : vector<8x64xf32> to vector<8x8xf32>
    %394 = arith.truncf %393 : vector<8x8xf32> to vector<8x8xbf16>
    %cst_118 = arith.constant dense<0.000000e+00> : vector<8x8xf32>
    %395 = tpu.matmul %390, %392, %cst_118 {dimension_numbers = #tpu.dot_dimension_numbers<[1], [1], [0], [0], [0, 0, 1, 0], [], []>} : vector<8x8xbf16>, vector<8x8xbf16>, vector<8x8xf32> -> vector<8x8xf32>
    %cst_119 = arith.constant 0.353553385 : f32
    %396 = vector.broadcast %cst_119 : f32 to vector<8x8xf32>
    %397 = arith.mulf %395, %396 : vector<8x8xf32>
    %cst_120 = arith.constant dense<0xFF800000> : vector<8xf32>
    %398 = vector.multi_reduction <maximumf>, %397, %cst_120 [1] : vector<8x8xf32> to vector<8xf32>
    %399 = vector.shape_cast %398 : vector<8xf32> to vector<8x1xf32>
    %400 = vector.broadcast %399 : vector<8x1xf32> to vector<8x8xf32>
    %401 = arith.subf %397, %400 : vector<8x8xf32>
    %402 = math.exp %401 : vector<8x8xf32>
    %cst_121 = arith.constant dense<0.000000e+00> : vector<8xf32>
    %403 = vector.multi_reduction <add>, %402, %cst_121 [1] : vector<8x8xf32> to vector<8xf32>
    %404 = vector.shape_cast %403 : vector<8xf32> to vector<8x1xf32>
    %405 = tpu.reciprocal %404 {approx = true} : vector<8x1xf32> -> vector<8x1xf32>
    %406 = vector.broadcast %405 : vector<8x1xf32> to vector<8x8xf32>
    %407 = arith.mulf %402, %406 : vector<8x8xf32>
    %408 = arith.truncf %407 : vector<8x8xf32> to vector<8x8xbf16>
    %cst_122 = arith.constant dense<0.000000e+00> : vector<8x8xf32>
    %409 = tpu.matmul %408, %394, %cst_122 {dimension_numbers = #tpu.dot_dimension_numbers<[1], [0], [0], [1], [0, 0, 1, 1], [], []>} : vector<8x8xbf16>, vector<8x8xbf16>, vector<8x8xf32> -> vector<8x8xf32>
    %410 = tpu.concatenate %262, %283, %304, %325, %346, %367, %388, %409 in 1 : vector<8x8xf32>, vector<8x8xf32>, vector<8x8xf32>, vector<8x8xf32>, vector<8x8xf32>, vector<8x8xf32>, vector<8x8xf32>, vector<8x8xf32> -> vector<8x64xf32>
    %411 = arith.truncf %410 : vector<8x64xf32> to vector<8x64xbf16>
    %cst_123 = arith.constant dense<0.000000e+00> : vector<8x64xf32>
    %412 = tpu.matmul %411, %230, %cst_123 {dimension_numbers = #tpu.dot_dimension_numbers<[1], [0], [0], [1], [0, 0, 1, 1], [], []>} : vector<8x64xbf16>, vector<64x64xbf16>, vector<8x64xf32> -> vector<8x64xf32>
    %413 = vector.broadcast %231 : vector<1x64xf32> to vector<8x64xf32>
    %414 = arith.addf %412, %413 : vector<8x64xf32>
    %415 = arith.addf %225, %414 : vector<8x64xf32>
    %c0_124 = arith.constant 0 : index
    %c0_125 = arith.constant 0 : index
    %416 = vector.load %arg18[%c0_124, %c0_125] : memref<1x64xf32, #tpu.memory_space<vmem>>, vector<1x64xf32>
    %c0_126 = arith.constant 0 : index
    %c0_127 = arith.constant 0 : index
    %417 = vector.load %arg19[%c0_126, %c0_127] : memref<1x64xf32, #tpu.memory_space<vmem>>, vector<1x64xf32>
    %cst_128 = arith.constant dense<0.000000e+00> : vector<8xf32>
    %418 = vector.multi_reduction <add>, %415, %cst_128 [1] : vector<8x64xf32> to vector<8xf32>
    %419 = vector.shape_cast %418 : vector<8xf32> to vector<8x1xf32>
    %cst_129 = arith.constant 6.400000e+01 : f32
    %420 = vector.broadcast %cst_129 : f32 to vector<8x1xf32>
    %421 = arith.divf %419, %420 : vector<8x1xf32>
    %422 = vector.broadcast %421 : vector<8x1xf32> to vector<8x64xf32>
    %423 = arith.subf %415, %422 : vector<8x64xf32>
    %424 = arith.mulf %423, %423 : vector<8x64xf32>
    %cst_130 = arith.constant dense<0.000000e+00> : vector<8xf32>
    %425 = vector.multi_reduction <add>, %424, %cst_130 [1] : vector<8x64xf32> to vector<8xf32>
    %426 = vector.shape_cast %425 : vector<8xf32> to vector<8x1xf32>
    %cst_131 = arith.constant 6.400000e+01 : f32
    %427 = vector.broadcast %cst_131 : f32 to vector<8x1xf32>
    %428 = arith.divf %426, %427 : vector<8x1xf32>
    %429 = vector.broadcast %421 : vector<8x1xf32> to vector<8x64xf32>
    %430 = arith.subf %415, %429 : vector<8x64xf32>
    %cst_132 = arith.constant 9.99999974E-6 : f32
    %431 = vector.broadcast %cst_132 : f32 to vector<8x1xf32>
    %432 = arith.addf %428, %431 : vector<8x1xf32>
    %433 = math.rsqrt %432 : vector<8x1xf32>
    %434 = vector.broadcast %433 : vector<8x1xf32> to vector<8x64xf32>
    %435 = arith.mulf %430, %434 : vector<8x64xf32>
    %436 = vector.broadcast %416 : vector<1x64xf32> to vector<8x64xf32>
    %437 = arith.mulf %435, %436 : vector<8x64xf32>
    %438 = vector.broadcast %417 : vector<1x64xf32> to vector<8x64xf32>
    %439 = arith.addf %437, %438 : vector<8x64xf32>
    %440 = arith.truncf %439 : vector<8x64xf32> to vector<8x64xbf16>
    %c0_133 = arith.constant 0 : index
    %c0_134 = arith.constant 0 : index
    %441 = vector.load %arg20[%c0_133, %c0_134] : memref<64x2048xbf16, #tpu.memory_space<vmem>>, vector<64x2048xbf16>
    %cst_135 = arith.constant dense<0.000000e+00> : vector<8x2048xf32>
    %442 = tpu.matmul %440, %441, %cst_135 {dimension_numbers = #tpu.dot_dimension_numbers<[1], [0], [0], [1], [0, 0, 1, 1], [], []>} : vector<8x64xbf16>, vector<64x2048xbf16>, vector<8x2048xf32> -> vector<8x2048xf32>
    %c0_136 = arith.constant 0 : index
    %c0_137 = arith.constant 0 : index
    %443 = vector.load %arg21[%c0_136, %c0_137] : memref<1x2048xf32, #tpu.memory_space<vmem>>, vector<1x2048xf32>
    %444 = vector.broadcast %443 : vector<1x2048xf32> to vector<8x2048xf32>
    %445 = arith.addf %442, %444 : vector<8x2048xf32>
    %cst_138 = arith.constant 0.000000e+00 : f32
    %446 = vector.broadcast %cst_138 : f32 to vector<8x2048xf32>
    %447 = arith.maximumf %445, %446 : vector<8x2048xf32>
    %448 = arith.truncf %447 : vector<8x2048xf32> to vector<8x2048xbf16>
    %c0_139 = arith.constant 0 : index
    %c0_140 = arith.constant 0 : index
    %449 = vector.load %arg22[%c0_139, %c0_140] : memref<2048x64xbf16, #tpu.memory_space<vmem>>, vector<2048x64xbf16>
    %cst_141 = arith.constant dense<0.000000e+00> : vector<8x64xf32>
    %450 = tpu.matmul %448, %449, %cst_141 {dimension_numbers = #tpu.dot_dimension_numbers<[1], [0], [0], [1], [0, 0, 1, 1], [], []>} : vector<8x2048xbf16>, vector<2048x64xbf16>, vector<8x64xf32> -> vector<8x64xf32>
    %c0_142 = arith.constant 0 : index
    %c0_143 = arith.constant 0 : index
    %451 = vector.load %arg23[%c0_142, %c0_143] : memref<1x64xf32, #tpu.memory_space<vmem>>, vector<1x64xf32>
    %452 = vector.broadcast %451 : vector<1x64xf32> to vector<8x64xf32>
    %453 = arith.addf %450, %452 : vector<8x64xf32>
    %454 = arith.addf %439, %453 : vector<8x64xf32>
    %c0_144 = arith.constant 0 : index
    %c0_145 = arith.constant 0 : index
    %455 = vector.load %arg24[%c0_144, %c0_145] : memref<1x64xf32, #tpu.memory_space<vmem>>, vector<1x64xf32>
    %c0_146 = arith.constant 0 : index
    %c0_147 = arith.constant 0 : index
    %456 = vector.load %arg25[%c0_146, %c0_147] : memref<1x64xf32, #tpu.memory_space<vmem>>, vector<1x64xf32>
    %cst_148 = arith.constant dense<0.000000e+00> : vector<8xf32>
    %457 = vector.multi_reduction <add>, %454, %cst_148 [1] : vector<8x64xf32> to vector<8xf32>
    %458 = vector.shape_cast %457 : vector<8xf32> to vector<8x1xf32>
    %cst_149 = arith.constant 6.400000e+01 : f32
    %459 = vector.broadcast %cst_149 : f32 to vector<8x1xf32>
    %460 = arith.divf %458, %459 : vector<8x1xf32>
    %461 = vector.broadcast %460 : vector<8x1xf32> to vector<8x64xf32>
    %462 = arith.subf %454, %461 : vector<8x64xf32>
    %463 = arith.mulf %462, %462 : vector<8x64xf32>
    %cst_150 = arith.constant dense<0.000000e+00> : vector<8xf32>
    %464 = vector.multi_reduction <add>, %463, %cst_150 [1] : vector<8x64xf32> to vector<8xf32>
    %465 = vector.shape_cast %464 : vector<8xf32> to vector<8x1xf32>
    %cst_151 = arith.constant 6.400000e+01 : f32
    %466 = vector.broadcast %cst_151 : f32 to vector<8x1xf32>
    %467 = arith.divf %465, %466 : vector<8x1xf32>
    %468 = vector.broadcast %460 : vector<8x1xf32> to vector<8x64xf32>
    %469 = arith.subf %454, %468 : vector<8x64xf32>
    %cst_152 = arith.constant 9.99999974E-6 : f32
    %470 = vector.broadcast %cst_152 : f32 to vector<8x1xf32>
    %471 = arith.addf %467, %470 : vector<8x1xf32>
    %472 = math.rsqrt %471 : vector<8x1xf32>
    %473 = vector.broadcast %472 : vector<8x1xf32> to vector<8x64xf32>
    %474 = arith.mulf %469, %473 : vector<8x64xf32>
    %475 = vector.broadcast %455 : vector<1x64xf32> to vector<8x64xf32>
    %476 = arith.mulf %474, %475 : vector<8x64xf32>
    %477 = vector.broadcast %456 : vector<1x64xf32> to vector<8x64xf32>
    %478 = arith.addf %476, %477 : vector<8x64xf32>
    %c0_153 = arith.constant 0 : index
    %c0_154 = arith.constant 0 : index
    %479 = vector.load %arg26[%c0_153, %c0_154] : memref<8x64xf32, #tpu.memory_space<vmem>>, vector<8x64xf32>
    tpu.vector_store %arg26[%c0_153, %c0_154], %478 {strides = array<i32>} : memref<8x64xf32, #tpu.memory_space<vmem>>, vector<8x64xf32>,
    return
  }
  func.func @transform_0(%arg0: i32) -> (i32, i32) {
    %c0_i32 = arith.constant 0 : i32
    %c0_i32_0 = arith.constant 0 : i32
    return %arg0, %c0_i32 : i32, i32
  }
  func.func @transform_1(%arg0: i32) -> (i32, i32) {
    %c0_i32 = arith.constant 0 : i32
    %c0_i32_0 = arith.constant 0 : i32
    return %arg0, %c0_i32 : i32, i32
  }
  func.func @transform_2(%arg0: i32) -> (i32, i32, i32) {
    %c0_i32 = arith.constant 0 : i32
    %c0_i32_0 = arith.constant 0 : i32
    %c0_i32_1 = arith.constant 0 : i32
    return %arg0, %c0_i32, %c0_i32_0 : i32, i32, i32
  }
  func.func @transform_3(%arg0: i32) -> (i32, i32) {
    %c0_i32 = arith.constant 0 : i32
    %c0_i32_0 = arith.constant 0 : i32
    %c0_i32_1 = arith.constant 0 : i32
    return %c0_i32, %c0_i32_0 : i32, i32
  }
  func.func @transform_4(%arg0: i32) -> (i32, i32) {
    %c0_i32 = arith.constant 0 : i32
    %c0_i32_0 = arith.constant 0 : i32
    %c0_i32_1 = arith.constant 0 : i32
    return %c0_i32, %c0_i32_0 : i32, i32
  }
  func.func @transform_5(%arg0: i32) -> (i32, i32) {
    %c0_i32 = arith.constant 0 : i32
    %c0_i32_0 = arith.constant 0 : i32
    %c0_i32_1 = arith.constant 0 : i32
    return %c0_i32, %c0_i32_0 : i32, i32
  }
  func.func @transform_6(%arg0: i32) -> (i32, i32) {
    %c0_i32 = arith.constant 0 : i32
    %c0_i32_0 = arith.constant 0 : i32
    %c0_i32_1 = arith.constant 0 : i32
    return %c0_i32, %c0_i32_0 : i32, i32
  }
  func.func @transform_7(%arg0: i32) -> (i32, i32) {
    %c0_i32 = arith.constant 0 : i32
    %c0_i32_0 = arith.constant 0 : i32
    %c0_i32_1 = arith.constant 0 : i32
    return %c0_i32, %c0_i32_0 : i32, i32
  }
  func.func @transform_8(%arg0: i32) -> (i32, i32) {
    %c0_i32 = arith.constant 0 : i32
    %c0_i32_0 = arith.constant 0 : i32
    %c0_i32_1 = arith.constant 0 : i32
    return %c0_i32, %c0_i32_0 : i32, i32
  }
  func.func @transform_9(%arg0: i32) -> (i32, i32) {
    %c0_i32 = arith.constant 0 : i32
    %c0_i32_0 = arith.constant 0 : i32
    %c0_i32_1 = arith.constant 0 : i32
    return %c0_i32, %c0_i32_0 : i32, i32
  }
  func.func @transform_10(%arg0: i32) -> (i32, i32) {
    %c0_i32 = arith.constant 0 : i32
    %c0_i32_0 = arith.constant 0 : i32
    %c0_i32_1 = arith.constant 0 : i32
    return %c0_i32, %c0_i32_0 : i32, i32
  }
  func.func @transform_11(%arg0: i32) -> (i32, i32) {
    %c0_i32 = arith.constant 0 : i32
    %c0_i32_0 = arith.constant 0 : i32
    %c0_i32_1 = arith.constant 0 : i32
    return %c0_i32, %c0_i32_0 : i32, i32
  }
  func.func @transform_12(%arg0: i32) -> (i32, i32) {
    %c0_i32 = arith.constant 0 : i32
    %c0_i32_0 = arith.constant 0 : i32
    %c0_i32_1 = arith.constant 0 : i32
    return %c0_i32, %c0_i32_0 : i32, i32
  }
  func.func @transform_13(%arg0: i32) -> (i32, i32) {
    %c0_i32 = arith.constant 0 : i32
    %c0_i32_0 = arith.constant 0 : i32
    %c0_i32_1 = arith.constant 0 : i32
    return %c0_i32, %c0_i32_0 : i32, i32
  }
  func.func @transform_14(%arg0: i32) -> (i32, i32) {
    %c0_i32 = arith.constant 0 : i32
    %c0_i32_0 = arith.constant 0 : i32
    %c0_i32_1 = arith.constant 0 : i32
    return %c0_i32, %c0_i32_0 : i32, i32
  }
  func.func @transform_15(%arg0: i32) -> (i32, i32) {
    %c0_i32 = arith.constant 0 : i32
    %c0_i32_0 = arith.constant 0 : i32
    %c0_i32_1 = arith.constant 0 : i32
    return %c0_i32, %c0_i32_0 : i32, i32
  }
  func.func @transform_16(%arg0: i32) -> (i32, i32) {
    %c0_i32 = arith.constant 0 : i32
    %c0_i32_0 = arith.constant 0 : i32
    %c0_i32_1 = arith.constant 0 : i32
    return %c0_i32, %c0_i32_0 : i32, i32
  }
  func.func @transform_17(%arg0: i32) -> (i32, i32) {
    %c0_i32 = arith.constant 0 : i32
    %c0_i32_0 = arith.constant 0 : i32
    %c0_i32_1 = arith.constant 0 : i32
    return %c0_i32, %c0_i32_0 : i32, i32
  }
  func.func @transform_18(%arg0: i32) -> (i32, i32) {
    %c0_i32 = arith.constant 0 : i32
    %c0_i32_0 = arith.constant 0 : i32
    %c0_i32_1 = arith.constant 0 : i32
    return %c0_i32, %c0_i32_0 : i32, i32
  }
  func.func @transform_19(%arg0: i32) -> (i32, i32) {
    %c0_i32 = arith.constant 0 : i32
    %c0_i32_0 = arith.constant 0 : i32
    %c0_i32_1 = arith.constant 0 : i32
    return %c0_i32, %c0_i32_0 : i32, i32
  }
  func.func @transform_20(%arg0: i32) -> (i32, i32) {
    %c0_i32 = arith.constant 0 : i32
    %c0_i32_0 = arith.constant 0 : i32
    %c0_i32_1 = arith.constant 0 : i32
    return %c0_i32, %c0_i32_0 : i32, i32
  }
  func.func @transform_21(%arg0: i32) -> (i32, i32) {
    %c0_i32 = arith.constant 0 : i32
    %c0_i32_0 = arith.constant 0 : i32
    %c0_i32_1 = arith.constant 0 : i32
    return %c0_i32, %c0_i32_0 : i32, i32
  }
  func.func @transform_22(%arg0: i32) -> (i32, i32) {
    %c0_i32 = arith.constant 0 : i32
    %c0_i32_0 = arith.constant 0 : i32
    %c0_i32_1 = arith.constant 0 : i32
    return %c0_i32, %c0_i32_0 : i32, i32
  }
  func.func @transform_23(%arg0: i32) -> (i32, i32) {
    %c0_i32 = arith.constant 0 : i32
    %c0_i32_0 = arith.constant 0 : i32
    %c0_i32_1 = arith.constant 0 : i32
    return %c0_i32, %c0_i32_0 : i32, i32
  }
  func.func @transform_24(%arg0: i32) -> (i32, i32) {
    %c0_i32 = arith.constant 0 : i32
    %c0_i32_0 = arith.constant 0 : i32
    %c0_i32_1 = arith.constant 0 : i32
    return %c0_i32, %c0_i32_0 : i32, i32
  }
  func.func @transform_25(%arg0: i32) -> (i32, i32) {
    %c0_i32 = arith.constant 0 : i32
    %c0_i32_0 = arith.constant 0 : i32
    return %arg0, %c0_i32 : i32, i32
  }
}

module attributes {stable_mosaic.version = 11 : i64} {
  func.func @_linear_kernel(%arg0: i32, %arg1: memref<16x64xf32, #tpu.memory_space<vmem>>, %arg2: memref<64x16xbf16, #tpu.memory_space<vmem>>, %arg3: memref<1x16xf32, #tpu.memory_space<vmem>>, %arg4: memref<16x16xf32, #tpu.memory_space<vmem>>) attributes {dimension_semantics = [#tpu.dimension_semantics<arbitrary>], iteration_bounds = array<i64: 1>, scalar_prefetch = 0 : i64, scratch_operands = 0 : i64, tpu.core_type = #tpu.core_type<tc>, window_params = [{pipeline_mode = #tpu.pipeline_mode<synchronous>, transform_indices = @transform_0, window_bounds = array<i64: 16, 64>}, {pipeline_mode = #tpu.pipeline_mode<synchronous>, transform_indices = @transform_1, window_bounds = array<i64: 64, 16>}, {pipeline_mode = #tpu.pipeline_mode<synchronous>, transform_indices = @transform_2, window_bounds = array<i64: 1, 16>}, {pipeline_mode = #tpu.pipeline_mode<synchronous>, transform_indices = @transform_3, window_bounds = array<i64: 16, 16>}]} {
    %c0 = arith.constant 0 : index
    %c0_0 = arith.constant 0 : index
    %0 = vector.load %arg1[%c0, %c0_0] : memref<16x64xf32, #tpu.memory_space<vmem>>, vector<16x64xf32>
    %1 = arith.truncf %0 : vector<16x64xf32> to vector<16x64xbf16>
    %c0_1 = arith.constant 0 : index
    %c0_2 = arith.constant 0 : index
    %2 = vector.load %arg2[%c0_1, %c0_2] : memref<64x16xbf16, #tpu.memory_space<vmem>>, vector<64x16xbf16>
    %cst = arith.constant dense<0.000000e+00> : vector<16x16xf32>
    %3 = tpu.matmul %1, %2, %cst {dimension_numbers = #tpu.dot_dimension_numbers<[1], [0], [0], [1], [0, 0, 1, 1], [], []>} : vector<16x64xbf16>, vector<64x16xbf16>, vector<16x16xf32> -> vector<16x16xf32>
    %c0_3 = arith.constant 0 : index
    %c0_4 = arith.constant 0 : index
    %4 = vector.load %arg3[%c0_3, %c0_4] : memref<1x16xf32, #tpu.memory_space<vmem>>, vector<1x16xf32>
    %5 = vector.broadcast %4 : vector<1x16xf32> to vector<16x16xf32>
    %6 = arith.addf %3, %5 : vector<16x16xf32>
    %c0_5 = arith.constant 0 : index
    %c0_6 = arith.constant 0 : index
    %7 = vector.load %arg4[%c0_5, %c0_6] : memref<16x16xf32, #tpu.memory_space<vmem>>, vector<16x16xf32>
    tpu.vector_store %arg4[%c0_5, %c0_6], %6 {strides = array<i32>} : memref<16x16xf32, #tpu.memory_space<vmem>>, vector<16x16xf32>,
    return
  }
  func.func @transform_0(%arg0: i32) -> (i32, i32) {
    %c0_i32 = arith.constant 0 : i32
    %c0_i32_0 = arith.constant 0 : i32
    %c0_i32_1 = arith.constant 0 : i32
    return %c0_i32, %c0_i32_0 : i32, i32
  }
  func.func @transform_1(%arg0: i32) -> (i32, i32) {
    %c0_i32 = arith.constant 0 : i32
    %c0_i32_0 = arith.constant 0 : i32
    %c0_i32_1 = arith.constant 0 : i32
    return %c0_i32, %c0_i32_0 : i32, i32
  }
  func.func @transform_2(%arg0: i32) -> (i32, i32) {
    %c0_i32 = arith.constant 0 : i32
    %c0_i32_0 = arith.constant 0 : i32
    %c0_i32_1 = arith.constant 0 : i32
    return %c0_i32, %c0_i32_0 : i32, i32
  }
  func.func @transform_3(%arg0: i32) -> (i32, i32) {
    %c0_i32 = arith.constant 0 : i32
    %c0_i32_0 = arith.constant 0 : i32
    %c0_i32_1 = arith.constant 0 : i32
    return %c0_i32, %c0_i32_0 : i32, i32
  }
}

</mosaic_0001>

<llo_original>
// kernel: model_forward.4
$region0: #{model_forward.4}
  #allocation0 [shape = 'u32[]', space=smem, size = 0x4, offset = 0x4, fixed_abs, tag = 'smem constant byte address 0x4 - core index']
  #allocation1 [shape = 'u32[72,128]{1,0:T(1,128)}', space=vmem, size = 0x9000, scoped, tag = 'internal scratch']
  %s0 = inlined_call_operand.vmem [shape: f32[16,96], index: 0, kind: input, shape index: {}]
  %s1 = inlined_call_operand.vmem [shape: bf16[96,64], index: 1, kind: input, shape index: {}]
  %s2 = inlined_call_operand.vmem [shape: f32[1,64], index: 2, kind: input, shape index: {}]
  %s3 = inlined_call_operand.vmem [shape: f32[8,64], index: 3, kind: input, shape index: {}]
  %s4 = inlined_call_operand.vmem [shape: f32[16,64], index: 4, kind: output, shape index: {}]
  %s5 = sld [smem:[#allocation0]]
  $region49: #{model_forward.4} parent=0
    _
  %s7 = ssub.s32 1, %s5
  %s8 = scalar_select 0, %s7, %s5
  loop: start=0, step=1, limit=4
  $region2: #{model_forward.4} parent=0 // loop_pre_header
    _
  $region3: #{model_forward.4} parent=0 // loop_header
    %s10 = sphi 0, %s14
    %p11 = scmp.ge.s32.totalorder %s10, 4
    %s20 = sphi 0, %s22
    %s23 = sphi 0, %s20
    %s24 = sphi 0, %s23
    %s40 = sphi 0, %s24
    %s44 = sphi 0, %s44
    %s46 = sphi 0, %s44
    %s47 = sphi 0, %s46
    %s61 = sphi 0, %s47
    %s65 = sphi 0, %s65
    %s67 = sphi 0, %s65
    %s68 = sphi 0, %s67
    %s82 = sphi 0, %s68
    %s86 = sphi 0, %s86
    %s88 = sphi 0, %s86
    %s89 = sphi 0, %s88
    %s103 = sphi 0, %s89
    %s109 = sphi 0, %s111
    %s112 = sphi 0, %s109
    %s113 = sphi 0, %s112
    %s129 = sphi 0, %s113
  $region4: #{model_forward.4} parent=0 // loop_header_branch
    %13 = sbr.rel (%p11) target = $region8
  $region5: #{model_forward.4} parent=0 // loop_body
    %s15 = ssub.s32 %s10, 1
    %s16 = ssub.s32 %s10, 2
    %s17 = sadd.s32 %s10, 1
    %s18 = ssub.s32 %s10, %s17
    %p19 = scmp.eq.s32.totalorder %s18, 0
    %s21 = sadd.s32 %s20, 1
    %s22 = scalar_select %p19, %s20, %s21
    %p25 = pneg %p19
    %p26 = scmp.eq.s32.totalorder %s10, 1
    %p27 = por %p25, %p26
    %p28 = scmp.ne.s32.totalorder %s20, %s23
    %p29 = scmp.eq.s32.totalorder %s10, 0
    %p30 = por %p28, %p29
    %p31 = scmp.ne.s32.totalorder %s20, %s23
    %p32 = scmp.eq.s32.totalorder %s15, 1
    %p33 = por %p31, %p32
    %p34 = scmp.ne.s32.totalorder %s23, %s24
    %p35 = scmp.eq.s32.totalorder %s15, 0
    %p36 = por %p34, %p35
    %p37 = scmp.ne.s32.totalorder %s23, %s24
    %p38 = scmp.eq.s32.totalorder %s16, 1
    %p39 = por %p37, %p38
    %p41 = scmp.ne.s32.totalorder %s24, %s40
    %p42 = scmp.eq.s32.totalorder %s16, 0
    %p43 = por %p41, %p42
    %s45 = sadd.s32 %s44, 1
    %p48 = scmp.eq.s32.totalorder %s10, 1
    %p49 = scmp.ne.s32.totalorder %s44, %s46
    %p50 = scmp.eq.s32.totalorder %s10, 0
    %p51 = por %p49, %p50
    %p52 = scmp.ne.s32.totalorder %s44, %s46
    %p53 = scmp.eq.s32.totalorder %s15, 1
    %p54 = por %p52, %p53
    %p55 = scmp.ne.s32.totalorder %s46, %s47
    %p56 = scmp.eq.s32.totalorder %s15, 0
    %p57 = por %p55, %p56
    %p58 = scmp.ne.s32.totalorder %s46, %s47
    %p59 = scmp.eq.s32.totalorder %s16, 1
    %p60 = por %p58, %p59
    %p62 = scmp.ne.s32.totalorder %s47, %s61
    %p63 = scmp.eq.s32.totalorder %s16, 0
    %p64 = por %p62, %p63
    %s66 = sadd.s32 %s65, 1
    %p69 = scmp.eq.s32.totalorder %s10, 1
    %p70 = scmp.ne.s32.totalorder %s65, %s67
    %p71 = scmp.eq.s32.totalorder %s10, 0
    %p72 = por %p70, %p71
    %p73 = scmp.ne.s32.totalorder %s65, %s67
    %p74 = scmp.eq.s32.totalorder %s15, 1
    %p75 = por %p73, %p74
    %p76 = scmp.ne.s32.totalorder %s67, %s68
    %p77 = scmp.eq.s32.totalorder %s15, 0
    %p78 = por %p76, %p77
    %p79 = scmp.ne.s32.totalorder %s67, %s68
    %p80 = scmp.eq.s32.totalorder %s16, 1
    %p81 = por %p79, %p80
    %p83 = scmp.ne.s32.totalorder %s68, %s82
    %p84 = scmp.eq.s32.totalorder %s16, 0
    %p85 = por %p83, %p84
    %s87 = sadd.s32 %s86, 1
    %p90 = scmp.eq.s32.totalorder %s10, 1
    %p91 = scmp.ne.s32.totalorder %s86, %s88
    %p92 = scmp.eq.s32.totalorder %s10, 0
    %p93 = por %p91, %p92
    %p94 = scmp.ne.s32.totalorder %s86, %s88
    %p95 = scmp.eq.s32.totalorder %s15, 1
    %p96 = por %p94, %p95
    %p97 = scmp.ne.s32.totalorder %s88, %s89
    %p98 = scmp.eq.s32.totalorder %s15, 0
    %p99 = por %p97, %p98
    %p100 = scmp.ne.s32.totalorder %s88, %s89
    %p101 = scmp.eq.s32.totalorder %s16, 1
    %p102 = por %p100, %p101
    %p104 = scmp.ne.s32.totalorder %s89, %s103
    %p105 = scmp.eq.s32.totalorder %s16, 0
    %p106 = por %p104, %p105
    %s107 = ssub.s32 %s10, %s17
    %p108 = scmp.eq.s32.totalorder %s107, 0
    %s110 = sadd.s32 %s109, 1
    %s111 = scalar_select %p108, %s109, %s110
    %p114 = pneg %p108
    %p115 = scmp.eq.s32.totalorder %s10, 1
    %p116 = por %p114, %p115
    %p117 = scmp.ne.s32.totalorder %s109, %s112
    %p118 = scmp.eq.s32.totalorder %s10, 0
    %p119 = por %p117, %p118
    %p120 = scmp.ne.s32.totalorder %s109, %s112
    %p121 = scmp.eq.s32.totalorder %s15, 1
    %p122 = por %p120, %p121
    %p123 = scmp.ne.s32.totalorder %s112, %s113
    %p124 = scmp.eq.s32.totalorder %s15, 0
    %p125 = por %p123, %p124
    %p126 = scmp.ne.s32.totalorder %s112, %s113
    %p127 = scmp.eq.s32.totalorder %s16, 1
    %p128 = por %p126, %p127
    %p130 = scmp.ne.s32.totalorder %s113, %s129
    %p131 = scmp.eq.s32.totalorder %s16, 0
    %p132 = por %p130, %p131
    %p133 = scmp.le.s32.totalorder 1, %s10
    %p134 = scmp.lt.s32.totalorder %s10, 3
    %p135 = pnand %p133, %p134
    %p136 = pneg %p135
    // Predicated region
    $region9: #{model_forward.4} parent=5 // pred_check
      _
    $region10: #{model_forward.4} parent=5 // pred_check_branch
      %138 = sbr.rel (%p135) target = $region12
    $region11: #{model_forward.4} parent=5 // pred_region
      %s139 = ssub.s32 %s10, 1
      // Predicated region
      $region13: #{model_forward.4} parent=11 // pred_check
        %p140 = pneg %p57
      $region14: #{model_forward.4} parent=11 // pred_check_branch
        %142 = sbr.rel (%p140) target = $region16
      $region15: #{model_forward.4} parent=11 // pred_region
        _
      $region16: #{model_forward.4} parent=11 // pred_fallthru
        _
      // Predicated region
      $region17: #{model_forward.4} parent=11 // pred_check
        %p143 = pneg %p78
      $region18: #{model_forward.4} parent=11 // pred_check_branch
        %145 = sbr.rel (%p143) target = $region20
      $region19: #{model_forward.4} parent=11 // pred_region
        _
      $region20: #{model_forward.4} parent=11 // pred_fallthru
        _
      // Predicated region
      $region21: #{model_forward.4} parent=11 // pred_check
        %p146 = pneg %p99
      $region22: #{model_forward.4} parent=11 // pred_check_branch
        %148 = sbr.rel (%p146) target = $region24
      $region23: #{model_forward.4} parent=11 // pred_region
        _
      $region24: #{model_forward.4} parent=11 // pred_fallthru
        _
    $region12: #{model_forward.4} parent=5 // pred_fallthru
      _
    %p149 = scmp.lt.s32.totalorder %s10, 2
    // Predicated region
    $region25: #{model_forward.4} parent=5 // pred_check
      %p150 = pneg %p149
    $region26: #{model_forward.4} parent=5 // pred_check_branch
      %152 = sbr.rel (%p150) target = $region28
    $region27: #{model_forward.4} parent=5 // pred_region
      // Predicated region
      $region29: #{model_forward.4} parent=27 // pred_check
        %p153 = pneg %p30
      $region30: #{model_forward.4} parent=27 // pred_check_branch
        %155 = sbr.rel (%p153) target = $region32
      $region31: #{model_forward.4} parent=27 // pred_region
        %p156 = scmp.lt.s32.totalorder %s10, 1
        %s157 = scalar_select %p156, %s10, 1
        %s158 = smul.addr %s157, 8
        %s159 = scalar_lea.vmem %s0, %s158
      $region32: #{model_forward.4} parent=27 // pred_fallthru
        _
    $region28: #{model_forward.4} parent=5 // pred_fallthru
      _
    %p160 = scmp.le.s32.totalorder 1, %s10
    %p161 = scmp.lt.s32.totalorder %s10, 3
    %p162 = pnand %p160, %p161
    %p163 = pneg %p162
    // Predicated region
    $region33: #{model_forward.4} parent=5 // pred_check
      _
    $region34: #{model_forward.4} parent=5 // pred_check_branch
      %165 = sbr.rel (%p162) target = $region36
    $region35: #{model_forward.4} parent=5 // pred_region
      %s166 = ssub.s32 %s10, 1
      %p167 = scmp.lt.s32.totalorder %s15, 1
      %s168 = scalar_select %p167, %s15, 1
      %s169 = smul.addr %s168, 8
      %s170 = scalar_lea.vmem %s0, %s169
      %p171 = pneg %p36
      %p172 = pneg %p33
      %p173 = pneg %p57
      %p174 = pneg %p54
      %p175 = pneg %p78
      %p176 = pneg %p75
      %p177 = pneg %p99
      %p178 = pneg %p96
      %p179 = pneg %p125
      %p180 = pneg %p122
      %p181 = scmp.lt.s32.totalorder %s15, 1
      %s182 = scalar_select %p181, %s15, 1
      %s183 = smul.addr %s182, 8
      %s184 = scalar_lea.vmem %s4, %s183
      %p185 = scmp.lt.s32.totalorder %s15, 1
      %s186 = scalar_select %p185, %s15, 1
      %s187 = smul.addr %s186, 8
      %s188 = scalar_lea.vmem %s0, %s187
      %p189 = scmp.lt.s32.totalorder %s15, 1
      %s190 = scalar_select %p189, %s15, 1
      %s191 = smul.addr %s190, 8
      %s192 = scalar_lea.vmem %s4, %s191
      %v194 = vld [vmem:[%s188] sm:$0xff]
      %v195 = vpack.c.bf16 %v194, %v194
      %v196 = vld [vmem:[%s1] sm:$0xf]
      %v197 = vld [vmem:[%s1 + $0x4] sm:$0xf]
      %v198 = vld [vmem:[%s1 + $0x8] sm:$0xf]
      %v199 = vld [vmem:[%s1 + $0xc] sm:$0xf]
      %v200 = vld [vmem:[%s1 + $0x10] sm:$0xf]
      %v201 = vld [vmem:[%s1 + $0x14] sm:$0xf]
      %v202 = vld [vmem:[%s1 + $0x18] sm:$0xf]
      %v203 = vld [vmem:[%s1 + $0x1c] sm:$0xf]
      %v204 = vld [vmem:[%s1 + $0x20] sm:$0xf]
      %v205 = vld [vmem:[%s1 + $0x24] sm:$0xf]
      %v206 = vld [vmem:[%s1 + $0x28] sm:$0xf]
      %v207 = vld [vmem:[%s1 + $0x2c] sm:$0xf]
      %v208 = vld [vmem:[%s2] sm:$0x1]
      %v210 = vperm.slane %v208, 0
      %v224 = vunpack.c.l.b16 %v196
      %v225 = vunpack.c.l.b16 %v197
      %v226 = vunpack.c.l.b16 %v198
      %v227 = vunpack.c.l.b16 %v199
      %v228 = vunpack.c.l.b16 %v200
      %v229 = vunpack.c.l.b16 %v201
      %v230 = vunpack.c.l.b16 %v202
      %v231 = vunpack.c.l.b16 %v203
      %v232 = vunpack.c.l.b16 %v204
      %v233 = vunpack.c.l.b16 %v205
      %v234 = vunpack.c.l.b16 %v206
      %v235 = vunpack.c.l.b16 %v207
      %v236 = vpack.c.b16 %v225, %v224
      %v237 = vpack.c.b16 %v227, %v226
      %v238 = vpack.c.b16 %v229, %v228
      %v239 = vpack.c.b16 %v231, %v230
      %v240 = vpack.c.b16 %v233, %v232
      %v241 = vpack.c.b16 %v235, %v234
      %vm248 = vcmask 785408
      %v250 = vsel %vm248, %v195, 0
      %252 = vmatpush.bf16.msra.mxu0 0
      %253 = vmatpush.bf16.msra.mxu0 0
      %254 = vmatpush.bf16.msra.mxu0 %v241
      %255 = vmatpush.bf16.msra.mxu0 %v240
      %256 = vmatpush.bf16.msra.mxu0 %v239
      %257 = vmatpush.bf16.msra.mxu0 %v238
      %258 = vmatpush.bf16.msra.mxu0 %v237
      %259 = vmatpush.bf16.msra.mxu0 %v236
      %260 = vmatmul.bf16.gmra.mxu0 %v250
      %v261 = vpop.f32.mrf.mxu0
      %v262 = vadd.f32 %v210, %v261
      %v263 = vpop.f32.mrf.mxu0
      %264 = vdwg.mxu0
      %v265 = vmax.f32 %v262, 0.0
      %v266 = vmul.f32 %v265, 8.0
      %v267 = vld [vmem:[%s3] sm:$0xff]
      %v268 = vadd.f32 %v266, %v267
      %vm269 = vcmask 523264
      %270 = vst.msk [vmem:[%s192] sm:$0xff] %vm269, %v268
      %p271 = scmp.lt.s32.totalorder %s15, 1
      %s272 = scalar_select %p271, %s15, 1
      %s273 = smul.addr %s272, 8
      %s274 = scalar_lea.vmem %s4, %s273
      // Predicated region
      $region37: #{model_forward.4} parent=35 // pred_check
        %p275 = pneg %p122
      $region38: #{model_forward.4} parent=35 // pred_check_branch
        %277 = sbr.rel (%p275) target = $region40
      $region39: #{model_forward.4} parent=35 // pred_region
        _
      $region40: #{model_forward.4} parent=35 // pred_fallthru
        _
    $region36: #{model_forward.4} parent=5 // pred_fallthru
      _
    %p278 = scmp.le.s32.totalorder 2, %s10
    // Predicated region
    $region41: #{model_forward.4} parent=5 // pred_check
      %p279 = pneg %p278
    $region42: #{model_forward.4} parent=5 // pred_check_branch
      %281 = sbr.rel (%p279) target = $region44
    $region43: #{model_forward.4} parent=5 // pred_region
      %s282 = ssub.s32 %s10, 2
      // Predicated region
      $region45: #{model_forward.4} parent=43 // pred_check
        %p283 = pneg %p128
      $region46: #{model_forward.4} parent=43 // pred_check_branch
        %285 = sbr.rel (%p283) target = $region48
      $region47: #{model_forward.4} parent=43 // pred_region
        %p286 = scmp.lt.s32.totalorder %s16, 1
        %s287 = scalar_select %p286, %s16, 1
        %s288 = smul.addr %s287, 8
        %s289 = scalar_lea.vmem %s4, %s288
      $region48: #{model_forward.4} parent=43 // pred_fallthru
        _
    $region44: #{model_forward.4} parent=5 // pred_fallthru
      _
  $region6: #{model_forward.4} parent=0 // loop_footer
    %s14 = sadd.s32 1, %s10
  $region7: #{model_forward.4} parent=0 // loop_footer_branch
    %9 = sbr.rel target = $region3
  $region8: #{model_forward.4} parent=0 // loop_exit
    _

// kernel: model_forward.7
$region0: #{model_forward.7}
  #allocation0 [shape = 'u32[]', space=smem, size = 0x4, offset = 0x4, fixed_abs, tag = 'smem constant byte address 0x4 - core index']
  #allocation1 [shape = 'u32[72,128]{1,0:T(1,128)}', space=vmem, size = 0x9000, scoped, tag = 'internal scratch']
  %s0 = inlined_call_operand.vmem [shape: f32[16,64], index: 0, kind: input, shape index: {}]
  %s1 = inlined_call_operand.vmem [shape: bf16[64,16], index: 1, kind: input, shape index: {}]
  %s2 = inlined_call_operand.vmem [shape: f32[1,16], index: 2, kind: input, shape index: {}]
  %s3 = inlined_call_operand.hbm [shape: f32[16,16], index: 3, kind: output, shape index: {}]
  %s4 = sld [smem:[#allocation0]]
  $region22: #{model_forward.7} parent=0
    _
  %s6 = ssub.s32 1, %s4
  %s7 = scalar_select 0, %s6, %s4
  $region1: #{model_forward.7} parent=0
    #allocation2 [shape = 'u8[8192]{0}', space=vmem, size = 0x2000, scoped, tag = 'output window, operand 0, single buffered']
    #allocation3 [shape = 's32[1]{0}', space=sflag, size = 0x4, scoped, tag = 'scoped memory for model_forward.7']
    %8 = vsyncpa [#allocation3], 0
    // Predicated region
    $region2: #{model_forward.7} parent=1 // pred_check
      _
    $region3: #{model_forward.7} parent=1 // pred_check_branch
      %10 = sbr.rel (0) target = $region5
    $region4: #{model_forward.7} parent=1 // pred_region
      _
    $region5: #{model_forward.7} parent=1 // pred_fallthru
      _
    // Predicated region
    $region6: #{model_forward.7} parent=1 // pred_check
      _
    $region7: #{model_forward.7} parent=1 // pred_check_branch
      %12 = sbr.rel (0) target = $region9
    $region8: #{model_forward.7} parent=1 // pred_region
      _
    $region9: #{model_forward.7} parent=1 // pred_fallthru
      _
    // Predicated region
    $region10: #{model_forward.7} parent=1 // pred_check
      _
    $region11: #{model_forward.7} parent=1 // pred_check_branch
      %14 = sbr.rel (0) target = $region13
    $region12: #{model_forward.7} parent=1 // pred_region
      _
    $region13: #{model_forward.7} parent=1 // pred_fallthru
      _
    %v16 = vld [vmem:[%s0] sm:$0xff]
    %v17 = vld [vmem:[%s0 + $0x8] sm:$0xff]
    %v18 = vpack.c.bf16 %v17, %v16
    %v19 = vld [vmem:[%s1] sm:$0xf]
    %v20 = vld [vmem:[%s1 + $0x4] sm:$0xf]
    %v21 = vld [vmem:[%s1 + $0x8] sm:$0xf]
    %v22 = vld [vmem:[%s1 + $0xc] sm:$0xf]
    %v23 = vld [vmem:[%s1 + $0x10] sm:$0xf]
    %v24 = vld [vmem:[%s1 + $0x14] sm:$0xf]
    %v25 = vld [vmem:[%s1 + $0x18] sm:$0xf]
    %v26 = vld [vmem:[%s1 + $0x1c] sm:$0xf]
    %v27 = vld [vmem:[%s2] sm:$0x1]
    %v29 = vperm.slane %v27, 0
    %v39 = vunpack.c.l.b16 %v19
    %v40 = vunpack.c.l.b16 %v20
    %v41 = vunpack.c.l.b16 %v21
    %v42 = vunpack.c.l.b16 %v22
    %v43 = vunpack.c.l.b16 %v23
    %v44 = vunpack.c.l.b16 %v24
    %v45 = vunpack.c.l.b16 %v25
    %v46 = vunpack.c.l.b16 %v26
    %v47 = vpack.c.b16 %v40, %v39
    %v48 = vpack.c.b16 %v42, %v41
    %v49 = vpack.c.b16 %v44, %v43
    %v50 = vpack.c.b16 %v46, %v45
    %vm55 = vcmask 523264
    %v57 = vsel %vm55, %v18, 0
    %59 = vmatpush.bf16.msra.mxu0 0
    %60 = vmatpush.bf16.msra.mxu0 0
    %61 = vmatpush.bf16.msra.mxu0 0
    %62 = vmatpush.bf16.msra.mxu0 0
    %63 = vmatpush.bf16.msra.mxu0 %v50
    %64 = vmatpush.bf16.msra.mxu0 %v49
    %65 = vmatpush.bf16.msra.mxu0 %v48
    %66 = vmatpush.bf16.msra.mxu0 %v47
    %67 = vmatmul.bf16.gmra.mxu0 %v57
    %v68 = vpop.f32.mrf.mxu0
    %v69 = vadd.f32 %v29, %v68
    %v70 = vpop.f32.mrf.mxu0
    %v71 = vadd.f32 %v29, %v70
    %72 = vdwg.mxu0
    %vm73 = vcmask 130048
    %74 = vst.msk [vmem:[#allocation2] sm:$0xff] %vm73, %v69
    %75 = vst.msk [vmem:[#allocation2 + $0x8] sm:$0xff] %vm73, %v71
    // Predicated region
    $region14: #{model_forward.7} parent=1 // pred_check
      _
    $region15: #{model_forward.7} parent=1 // pred_check_branch
      %77 = sbr.rel (0) target = $region17
    $region16: #{model_forward.7} parent=1 // pred_region
      %79 = vsyncadd [#allocation3], 0
      %s80 = sshll.u32 [#allocation2], 4
      %s81 = int_to_ptr.vmem [resolvable:$true] %s80
      %s82 = sshll.u32 %s3, 4
      %s83 = int_to_ptr.hbm [resolvable:$true] %s82
      %88 = dma.vmem_to_hbm [thread:$0]  %s81, 256, %s83, [#allocation3], 128, 128, 8
    $region17: #{model_forward.7} parent=1 // pred_fallthru
      _
    // Predicated region
    $region18: #{model_forward.7} parent=1 // pred_check
      _
    $region19: #{model_forward.7} parent=1 // pred_check_branch
      %90 = sbr.rel (0) target = $region21
    $region20: #{model_forward.7} parent=1 // pred_region
      %92 = dma.done [#allocation3], 256
    $region21: #{model_forward.7} parent=1 // pred_fallthru
      _
    %93 = vsyncpa [#allocation3], 1

// kernel: model_forward.5
$region0: #{model_forward.5}
  #allocation0 [shape = 'u32[]', space=smem, size = 0x4, offset = 0x4, fixed_abs, tag = 'smem constant byte address 0x4 - core index']
  #allocation1 [shape = 'u32[72,128]{1,0:T(1,128)}', space=vmem, size = 0x9000, scoped, tag = 'internal scratch']
  %s0 = inlined_call_operand.vmem [shape: f32[16,64], index: 0, kind: input, shape index: {}]
  %s1 = inlined_call_operand.vmem [shape: f32[16,64], index: 1, kind: input, shape index: {}]
  %s2 = inlined_call_operand.vmem [shape: f32[2,8,8], index: 2, kind: input, shape index: {}]
  %s3 = inlined_call_operand.vmem [shape: bf16[64,64], index: 3, kind: input, shape index: {}]
  %s4 = inlined_call_operand.vmem [shape: f32[1,64], index: 4, kind: input, shape index: {}]
  %s5 = inlined_call_operand.vmem [shape: bf16[64,128], index: 5, kind: input, shape index: {}]
  %s6 = inlined_call_operand.vmem [shape: f32[1,128], index: 6, kind: input, shape index: {}]
  %s7 = inlined_call_operand.vmem [shape: bf16[64,64], index: 7, kind: input, shape index: {}]
  %s8 = inlined_call_operand.vmem [shape: f32[1,64], index: 8, kind: input, shape index: {}]
  %s9 = inlined_call_operand.vmem [shape: f32[1,64], index: 9, kind: input, shape index: {}]
  %s10 = inlined_call_operand.vmem [shape: f32[1,64], index: 10, kind: input, shape index: {}]
  %s11 = inlined_call_operand.vmem [shape: bf16[64,64], index: 11, kind: input, shape index: {}]
  %s12 = inlined_call_operand.vmem [shape: f32[1,64], index: 12, kind: input, shape index: {}]
  %s13 = inlined_call_operand.vmem [shape: bf16[64,128], index: 13, kind: input, shape index: {}]
  %s14 = inlined_call_operand.vmem [shape: f32[1,128], index: 14, kind: input, shape index: {}]
  %s15 = inlined_call_operand.vmem [shape: bf16[64,64], index: 15, kind: input, shape index: {}]
  %s16 = inlined_call_operand.vmem [shape: f32[1,64], index: 16, kind: input, shape index: {}]
  %s17 = inlined_call_operand.vmem [shape: f32[1,64], index: 17, kind: input, shape index: {}]
  %s18 = inlined_call_operand.vmem [shape: f32[1,64], index: 18, kind: input, shape index: {}]
  %s19 = inlined_call_operand.vmem [shape: bf16[64,2048], index: 19, kind: input, shape index: {}]
  %s20 = inlined_call_operand.vmem [shape: f32[1,2048], index: 20, kind: input, shape index: {}]
  %s21 = inlined_call_operand.vmem [shape: bf16[2048,64], index: 21, kind: input, shape index: {}]
  %s22 = inlined_call_operand.vmem [shape: f32[1,64], index: 22, kind: input, shape index: {}]
  %s23 = inlined_call_operand.vmem [shape: f32[1,64], index: 23, kind: input, shape index: {}]
  %s24 = inlined_call_operand.vmem [shape: f32[1,64], index: 24, kind: input, shape index: {}]
  %s25 = inlined_call_operand.vmem [shape: f32[16,64], index: 25, kind: output, shape index: {}]
  %s26 = sld [smem:[#allocation0]]
  $region133: #{model_forward.5} parent=0
    _
  %s28 = ssub.s32 1, %s26
  %s29 = scalar_select 0, %s28, %s26
  loop: start=0, step=1, limit=4
  $region2: #{model_forward.5} parent=0 // loop_pre_header
    _
  $region3: #{model_forward.5} parent=0 // loop_header
    %s31 = sphi 0, %s35
    %p32 = scmp.ge.s32.totalorder %s31, 4
    %s41 = sphi 0, %s43
    %s44 = sphi 0, %s41
    %s45 = sphi 0, %s44
    %s61 = sphi 0, %s45
    %s67 = sphi 0, %s69
    %s70 = sphi 0, %s67
    %s71 = sphi 0, %s70
    %s87 = sphi 0, %s71
    %s93 = sphi 0, %s95
    %s96 = sphi 0, %s93
    %s97 = sphi 0, %s96
    %s113 = sphi 0, %s97
    %s117 = sphi 0, %s117
    %s119 = sphi 0, %s117
    %s120 = sphi 0, %s119
    %s134 = sphi 0, %s120
    %s138 = sphi 0, %s138
    %s140 = sphi 0, %s138
    %s141 = sphi 0, %s140
    %s155 = sphi 0, %s141
    %s159 = sphi 0, %s159
    %s161 = sphi 0, %s159
    %s162 = sphi 0, %s161
    %s176 = sphi 0, %s162
    %s180 = sphi 0, %s180
    %s182 = sphi 0, %s180
    %s183 = sphi 0, %s182
    %s197 = sphi 0, %s183
    %s201 = sphi 0, %s201
    %s203 = sphi 0, %s201
    %s204 = sphi 0, %s203
    %s218 = sphi 0, %s204
    %s222 = sphi 0, %s222
    %s224 = sphi 0, %s222
    %s225 = sphi 0, %s224
    %s239 = sphi 0, %s225
    %s243 = sphi 0, %s243
    %s245 = sphi 0, %s243
    %s246 = sphi 0, %s245
    %s260 = sphi 0, %s246
    %s264 = sphi 0, %s264
    %s266 = sphi 0, %s264
    %s267 = sphi 0, %s266
    %s281 = sphi 0, %s267
    %s285 = sphi 0, %s285
    %s287 = sphi 0, %s285
    %s288 = sphi 0, %s287
    %s302 = sphi 0, %s288
    %s306 = sphi 0, %s306
    %s308 = sphi 0, %s306
    %s309 = sphi 0, %s308
    %s323 = sphi 0, %s309
    %s327 = sphi 0, %s327
    %s329 = sphi 0, %s327
    %s330 = sphi 0, %s329
    %s344 = sphi 0, %s330
    %s348 = sphi 0, %s348
    %s350 = sphi 0, %s348
    %s351 = sphi 0, %s350
    %s365 = sphi 0, %s351
    %s369 = sphi 0, %s369
    %s371 = sphi 0, %s369
    %s372 = sphi 0, %s371
    %s386 = sphi 0, %s372
    %s390 = sphi 0, %s390
    %s392 = sphi 0, %s390
    %s393 = sphi 0, %s392
    %s407 = sphi 0, %s393
    %s411 = sphi 0, %s411
    %s413 = sphi 0, %s411
    %s414 = sphi 0, %s413
    %s428 = sphi 0, %s414
    %s432 = sphi 0, %s432
    %s434 = sphi 0, %s432
    %s435 = sphi 0, %s434
    %s449 = sphi 0, %s435
    %s453 = sphi 0, %s453
    %s455 = sphi 0, %s453
    %s456 = sphi 0, %s455
    %s470 = sphi 0, %s456
    %s474 = sphi 0, %s474
    %s476 = sphi 0, %s474
    %s477 = sphi 0, %s476
    %s491 = sphi 0, %s477
    %s495 = sphi 0, %s495
    %s497 = sphi 0, %s495
    %s498 = sphi 0, %s497
    %s512 = sphi 0, %s498
    %s516 = sphi 0, %s516
    %s518 = sphi 0, %s516
    %s519 = sphi 0, %s518
    %s533 = sphi 0, %s519
    %s537 = sphi 0, %s537
    %s539 = sphi 0, %s537
    %s540 = sphi 0, %s539
    %s554 = sphi 0, %s540
    %s558 = sphi 0, %s558
    %s560 = sphi 0, %s558
    %s561 = sphi 0, %s560
    %s575 = sphi 0, %s561
    %s581 = sphi 0, %s583
    %s584 = sphi 0, %s581
    %s585 = sphi 0, %s584
    %s601 = sphi 0, %s585
  $region4: #{model_forward.5} parent=0 // loop_header_branch
    %34 = sbr.rel (%p32) target = $region8
  $region5: #{model_forward.5} parent=0 // loop_body
    %s36 = ssub.s32 %s31, 1
    %s37 = ssub.s32 %s31, 2
    %s38 = sadd.s32 %s31, 1
    %s39 = ssub.s32 %s31, %s38
    %p40 = scmp.eq.s32.totalorder %s39, 0
    %s42 = sadd.s32 %s41, 1
    %s43 = scalar_select %p40, %s41, %s42
    %p46 = pneg %p40
    %p47 = scmp.eq.s32.totalorder %s31, 1
    %p48 = por %p46, %p47
    %p49 = scmp.ne.s32.totalorder %s41, %s44
    %p50 = scmp.eq.s32.totalorder %s31, 0
    %p51 = por %p49, %p50
    %p52 = scmp.ne.s32.totalorder %s41, %s44
    %p53 = scmp.eq.s32.totalorder %s36, 1
    %p54 = por %p52, %p53
    %p55 = scmp.ne.s32.totalorder %s44, %s45
    %p56 = scmp.eq.s32.totalorder %s36, 0
    %p57 = por %p55, %p56
    %p58 = scmp.ne.s32.totalorder %s44, %s45
    %p59 = scmp.eq.s32.totalorder %s37, 1
    %p60 = por %p58, %p59
    %p62 = scmp.ne.s32.totalorder %s45, %s61
    %p63 = scmp.eq.s32.totalorder %s37, 0
    %p64 = por %p62, %p63
    %s65 = ssub.s32 %s31, %s38
    %p66 = scmp.eq.s32.totalorder %s65, 0
    %s68 = sadd.s32 %s67, 1
    %s69 = scalar_select %p66, %s67, %s68
    %p72 = pneg %p66
    %p73 = scmp.eq.s32.totalorder %s31, 1
    %p74 = por %p72, %p73
    %p75 = scmp.ne.s32.totalorder %s67, %s70
    %p76 = scmp.eq.s32.totalorder %s31, 0
    %p77 = por %p75, %p76
    %p78 = scmp.ne.s32.totalorder %s67, %s70
    %p79 = scmp.eq.s32.totalorder %s36, 1
    %p80 = por %p78, %p79
    %p81 = scmp.ne.s32.totalorder %s70, %s71
    %p82 = scmp.eq.s32.totalorder %s36, 0
    %p83 = por %p81, %p82
    %p84 = scmp.ne.s32.totalorder %s70, %s71
    %p85 = scmp.eq.s32.totalorder %s37, 1
    %p86 = por %p84, %p85
    %p88 = scmp.ne.s32.totalorder %s71, %s87
    %p89 = scmp.eq.s32.totalorder %s37, 0
    %p90 = por %p88, %p89
    %s91 = ssub.s32 %s31, %s38
    %p92 = scmp.eq.s32.totalorder %s91, 0
    %s94 = sadd.s32 %s93, 1
    %s95 = scalar_select %p92, %s93, %s94
    %p98 = pneg %p92
    %p99 = scmp.eq.s32.totalorder %s31, 1
    %p100 = por %p98, %p99
    %p101 = scmp.ne.s32.totalorder %s93, %s96
    %p102 = scmp.eq.s32.totalorder %s31, 0
    %p103 = por %p101, %p102
    %p104 = scmp.ne.s32.totalorder %s93, %s96
    %p105 = scmp.eq.s32.totalorder %s36, 1
    %p106 = por %p104, %p105
    %p107 = scmp.ne.s32.totalorder %s96, %s97
    %p108 = scmp.eq.s32.totalorder %s36, 0
    %p109 = por %p107, %p108
    %p110 = scmp.ne.s32.totalorder %s96, %s97
    %p111 = scmp.eq.s32.totalorder %s37, 1
    %p112 = por %p110, %p111
    %p114 = scmp.ne.s32.totalorder %s97, %s113
    %p115 = scmp.eq.s32.totalorder %s37, 0
    %p116 = por %p114, %p115
    %s118 = sadd.s32 %s117, 1
    %p121 = scmp.eq.s32.totalorder %s31, 1
    %p122 = scmp.ne.s32.totalorder %s117, %s119
    %p123 = scmp.eq.s32.totalorder %s31, 0
    %p124 = por %p122, %p123
    %p125 = scmp.ne.s32.totalorder %s117, %s119
    %p126 = scmp.eq.s32.totalorder %s36, 1
    %p127 = por %p125, %p126
    %p128 = scmp.ne.s32.totalorder %s119, %s120
    %p129 = scmp.eq.s32.totalorder %s36, 0
    %p130 = por %p128, %p129
    %p131 = scmp.ne.s32.totalorder %s119, %s120
    %p132 = scmp.eq.s32.totalorder %s37, 1
    %p133 = por %p131, %p132
    %p135 = scmp.ne.s32.totalorder %s120, %s134
    %p136 = scmp.eq.s32.totalorder %s37, 0
    %p137 = por %p135, %p136
    %s139 = sadd.s32 %s138, 1
    %p142 = scmp.eq.s32.totalorder %s31, 1
    %p143 = scmp.ne.s32.totalorder %s138, %s140
    %p144 = scmp.eq.s32.totalorder %s31, 0
    %p145 = por %p143, %p144
    %p146 = scmp.ne.s32.totalorder %s138, %s140
    %p147 = scmp.eq.s32.totalorder %s36, 1
    %p148 = por %p146, %p147
    %p149 = scmp.ne.s32.totalorder %s140, %s141
    %p150 = scmp.eq.s32.totalorder %s36, 0
    %p151 = por %p149, %p150
    %p152 = scmp.ne.s32.totalorder %s140, %s141
    %p153 = scmp.eq.s32.totalorder %s37, 1
    %p154 = por %p152, %p153
    %p156 = scmp.ne.s32.totalorder %s141, %s155
    %p157 = scmp.eq.s32.totalorder %s37, 0
    %p158 = por %p156, %p157
    %s160 = sadd.s32 %s159, 1
    %p163 = scmp.eq.s32.totalorder %s31, 1
    %p164 = scmp.ne.s32.totalorder %s159, %s161
    %p165 = scmp.eq.s32.totalorder %s31, 0
    %p166 = por %p164, %p165
    %p167 = scmp.ne.s32.totalorder %s159, %s161
    %p168 = scmp.eq.s32.totalorder %s36, 1
    %p169 = por %p167, %p168
    %p170 = scmp.ne.s32.totalorder %s161, %s162
    %p171 = scmp.eq.s32.totalorder %s36, 0
    %p172 = por %p170, %p171
    %p173 = scmp.ne.s32.totalorder %s161, %s162
    %p174 = scmp.eq.s32.totalorder %s37, 1
    %p175 = por %p173, %p174
    %p177 = scmp.ne.s32.totalorder %s162, %s176
    %p178 = scmp.eq.s32.totalorder %s37, 0
    %p179 = por %p177, %p178
    %s181 = sadd.s32 %s180, 1
    %p184 = scmp.eq.s32.totalorder %s31, 1
    %p185 = scmp.ne.s32.totalorder %s180, %s182
    %p186 = scmp.eq.s32.totalorder %s31, 0
    %p187 = por %p185, %p186
    %p188 = scmp.ne.s32.totalorder %s180, %s182
    %p189 = scmp.eq.s32.totalorder %s36, 1
    %p190 = por %p188, %p189
    %p191 = scmp.ne.s32.totalorder %s182, %s183
    %p192 = scmp.eq.s32.totalorder %s36, 0
    %p193 = por %p191, %p192
    %p194 = scmp.ne.s32.totalorder %s182, %s183
    %p195 = scmp.eq.s32.totalorder %s37, 1
    %p196 = por %p194, %p195
    %p198 = scmp.ne.s32.totalorder %s183, %s197
    %p199 = scmp.eq.s32.totalorder %s37, 0
    %p200 = por %p198, %p199
    %s202 = sadd.s32 %s201, 1
    %p205 = scmp.eq.s32.totalorder %s31, 1
    %p206 = scmp.ne.s32.totalorder %s201, %s203
    %p207 = scmp.eq.s32.totalorder %s31, 0
    %p208 = por %p206, %p207
    %p209 = scmp.ne.s32.totalorder %s201, %s203
    %p210 = scmp.eq.s32.totalorder %s36, 1
    %p211 = por %p209, %p210
    %p212 = scmp.ne.s32.totalorder %s203, %s204
    %p213 = scmp.eq.s32.totalorder %s36, 0
    %p214 = por %p212, %p213
    %p215 = scmp.ne.s32.totalorder %s203, %s204
    %p216 = scmp.eq.s32.totalorder %s37, 1
    %p217 = por %p215, %p216
    %p219 = scmp.ne.s32.totalorder %s204, %s218
    %p220 = scmp.eq.s32.totalorder %s37, 0
    %p221 = por %p219, %p220
    %s223 = sadd.s32 %s222, 1
    %p226 = scmp.eq.s32.totalorder %s31, 1
    %p227 = scmp.ne.s32.totalorder %s222, %s224
    %p228 = scmp.eq.s32.totalorder %s31, 0
    %p229 = por %p227, %p228
    %p230 = scmp.ne.s32.totalorder %s222, %s224
    %p231 = scmp.eq.s32.totalorder %s36, 1
    %p232 = por %p230, %p231
    %p233 = scmp.ne.s32.totalorder %s224, %s225
    %p234 = scmp.eq.s32.totalorder %s36, 0
    %p235 = por %p233, %p234
    %p236 = scmp.ne.s32.totalorder %s224, %s225
    %p237 = scmp.eq.s32.totalorder %s37, 1
    %p238 = por %p236, %p237
    %p240 = scmp.ne.s32.totalorder %s225, %s239
    %p241 = scmp.eq.s32.totalorder %s37, 0
    %p242 = por %p240, %p241
    %s244 = sadd.s32 %s243, 1
    %p247 = scmp.eq.s32.totalorder %s31, 1
    %p248 = scmp.ne.s32.totalorder %s243, %s245
    %p249 = scmp.eq.s32.totalorder %s31, 0
    %p250 = por %p248, %p249
    %p251 = scmp.ne.s32.totalorder %s243, %s245
    %p252 = scmp.eq.s32.totalorder %s36, 1
    %p253 = por %p251, %p252
    %p254 = scmp.ne.s32.totalorder %s245, %s246
    %p255 = scmp.eq.s32.totalorder %s36, 0
    %p256 = por %p254, %p255
    %p257 = scmp.ne.s32.totalorder %s245, %s246
    %p258 = scmp.eq.s32.totalorder %s37, 1
    %p259 = por %p257, %p258
    %p261 = scmp.ne.s32.totalorder %s246, %s260
    %p262 = scmp.eq.s32.totalorder %s37, 0
    %p263 = por %p261, %p262
    %s265 = sadd.s32 %s264, 1
    %p268 = scmp.eq.s32.totalorder %s31, 1
    %p269 = scmp.ne.s32.totalorder %s264, %s266
    %p270 = scmp.eq.s32.totalorder %s31, 0
    %p271 = por %p269, %p270
    %p272 = scmp.ne.s32.totalorder %s264, %s266
    %p273 = scmp.eq.s32.totalorder %s36, 1
    %p274 = por %p272, %p273
    %p275 = scmp.ne.s32.totalorder %s266, %s267
    %p276 = scmp.eq.s32.totalorder %s36, 0
    %p277 = por %p275, %p276
    %p278 = scmp.ne.s32.totalorder %s266, %s267
    %p279 = scmp.eq.s32.totalorder %s37, 1
    %p280 = por %p278, %p279
    %p282 = scmp.ne.s32.totalorder %s267, %s281
    %p283 = scmp.eq.s32.totalorder %s37, 0
    %p284 = por %p282, %p283
    %s286 = sadd.s32 %s285, 1
    %p289 = scmp.eq.s32.totalorder %s31, 1
    %p290 = scmp.ne.s32.totalorder %s285, %s287
    %p291 = scmp.eq.s32.totalorder %s31, 0
    %p292 = por %p290, %p291
    %p293 = scmp.ne.s32.totalorder %s285, %s287
    %p294 = scmp.eq.s32.totalorder %s36, 1
    %p295 = por %p293, %p294
    %p296 = scmp.ne.s32.totalorder %s287, %s288
    %p297 = scmp.eq.s32.totalorder %s36, 0
    %p298 = por %p296, %p297
    %p299 = scmp.ne.s32.totalorder %s287, %s288
    %p300 = scmp.eq.s32.totalorder %s37, 1
    %p301 = por %p299, %p300
    %p303 = scmp.ne.s32.totalorder %s288, %s302
    %p304 = scmp.eq.s32.totalorder %s37, 0
    %p305 = por %p303, %p304
    %s307 = sadd.s32 %s306, 1
    %p310 = scmp.eq.s32.totalorder %s31, 1
    %p311 = scmp.ne.s32.totalorder %s306, %s308
    %p312 = scmp.eq.s32.totalorder %s31, 0
    %p313 = por %p311, %p312
    %p314 = scmp.ne.s32.totalorder %s306, %s308
    %p315 = scmp.eq.s32.totalorder %s36, 1
    %p316 = por %p314, %p315
    %p317 = scmp.ne.s32.totalorder %s308, %s309
    %p318 = scmp.eq.s32.totalorder %s36, 0
    %p319 = por %p317, %p318
    %p320 = scmp.ne.s32.totalorder %s308, %s309
    %p321 = scmp.eq.s32.totalorder %s37, 1
    %p322 = por %p320, %p321
    %p324 = scmp.ne.s32.totalorder %s309, %s323
    %p325 = scmp.eq.s32.totalorder %s37, 0
    %p326 = por %p324, %p325
    %s328 = sadd.s32 %s327, 1
    %p331 = scmp.eq.s32.totalorder %s31, 1
    %p332 = scmp.ne.s32.totalorder %s327, %s329
    %p333 = scmp.eq.s32.totalorder %s31, 0
    %p334 = por %p332, %p333
    %p335 = scmp.ne.s32.totalorder %s327, %s329
    %p336 = scmp.eq.s32.totalorder %s36, 1
    %p337 = por %p335, %p336
    %p338 = scmp.ne.s32.totalorder %s329, %s330
    %p339 = scmp.eq.s32.totalorder %s36, 0
    %p340 = por %p338, %p339
    %p341 = scmp.ne.s32.totalorder %s329, %s330
    %p342 = scmp.eq.s32.totalorder %s37, 1
    %p343 = por %p341, %p342
    %p345 = scmp.ne.s32.totalorder %s330, %s344
    %p346 = scmp.eq.s32.totalorder %s37, 0
    %p347 = por %p345, %p346
    %s349 = sadd.s32 %s348, 1
    %p352 = scmp.eq.s32.totalorder %s31, 1
    %p353 = scmp.ne.s32.totalorder %s348, %s350
    %p354 = scmp.eq.s32.totalorder %s31, 0
    %p355 = por %p353, %p354
    %p356 = scmp.ne.s32.totalorder %s348, %s350
    %p357 = scmp.eq.s32.totalorder %s36, 1
    %p358 = por %p356, %p357
    %p359 = scmp.ne.s32.totalorder %s350, %s351
    %p360 = scmp.eq.s32.totalorder %s36, 0
    %p361 = por %p359, %p360
    %p362 = scmp.ne.s32.totalorder %s350, %s351
    %p363 = scmp.eq.s32.totalorder %s37, 1
    %p364 = por %p362, %p363
    %p366 = scmp.ne.s32.totalorder %s351, %s365
    %p367 = scmp.eq.s32.totalorder %s37, 0
    %p368 = por %p366, %p367
    %s370 = sadd.s32 %s369, 1
    %p373 = scmp.eq.s32.totalorder %s31, 1
    %p374 = scmp.ne.s32.totalorder %s369, %s371
    %p375 = scmp.eq.s32.totalorder %s31, 0
    %p376 = por %p374, %p375
    %p377 = scmp.ne.s32.totalorder %s369, %s371
    %p378 = scmp.eq.s32.totalorder %s36, 1
    %p379 = por %p377, %p378
    %p380 = scmp.ne.s32.totalorder %s371, %s372
    %p381 = scmp.eq.s32.totalorder %s36, 0
    %p382 = por %p380, %p381
    %p383 = scmp.ne.s32.totalorder %s371, %s372
    %p384 = scmp.eq.s32.totalorder %s37, 1
    %p385 = por %p383, %p384
    %p387 = scmp.ne.s32.totalorder %s372, %s386
    %p388 = scmp.eq.s32.totalorder %s37, 0
    %p389 = por %p387, %p388
    %s391 = sadd.s32 %s390, 1
    %p394 = scmp.eq.s32.totalorder %s31, 1
    %p395 = scmp.ne.s32.totalorder %s390, %s392
    %p396 = scmp.eq.s32.totalorder %s31, 0
    %p397 = por %p395, %p396
    %p398 = scmp.ne.s32.totalorder %s390, %s392
    %p399 = scmp.eq.s32.totalorder %s36, 1
    %p400 = por %p398, %p399
    %p401 = scmp.ne.s32.totalorder %s392, %s393
    %p402 = scmp.eq.s32.totalorder %s36, 0
    %p403 = por %p401, %p402
    %p404 = scmp.ne.s32.totalorder %s392, %s393
    %p405 = scmp.eq.s32.totalorder %s37, 1
    %p406 = por %p404, %p405
    %p408 = scmp.ne.s32.totalorder %s393, %s407
    %p409 = scmp.eq.s32.totalorder %s37, 0
    %p410 = por %p408, %p409
    %s412 = sadd.s32 %s411, 1
    %p415 = scmp.eq.s32.totalorder %s31, 1
    %p416 = scmp.ne.s32.totalorder %s411, %s413
    %p417 = scmp.eq.s32.totalorder %s31, 0
    %p418 = por %p416, %p417
    %p419 = scmp.ne.s32.totalorder %s411, %s413
    %p420 = scmp.eq.s32.totalorder %s36, 1
    %p421 = por %p419, %p420
    %p422 = scmp.ne.s32.totalorder %s413, %s414
    %p423 = scmp.eq.s32.totalorder %s36, 0
    %p424 = por %p422, %p423
    %p425 = scmp.ne.s32.totalorder %s413, %s414
    %p426 = scmp.eq.s32.totalorder %s37, 1
    %p427 = por %p425, %p426
    %p429 = scmp.ne.s32.totalorder %s414, %s428
    %p430 = scmp.eq.s32.totalorder %s37, 0
    %p431 = por %p429, %p430
    %s433 = sadd.s32 %s432, 1
    %p436 = scmp.eq.s32.totalorder %s31, 1
    %p437 = scmp.ne.s32.totalorder %s432, %s434
    %p438 = scmp.eq.s32.totalorder %s31, 0
    %p439 = por %p437, %p438
    %p440 = scmp.ne.s32.totalorder %s432, %s434
    %p441 = scmp.eq.s32.totalorder %s36, 1
    %p442 = por %p440, %p441
    %p443 = scmp.ne.s32.totalorder %s434, %s435
    %p444 = scmp.eq.s32.totalorder %s36, 0
    %p445 = por %p443, %p444
    %p446 = scmp.ne.s32.totalorder %s434, %s435
    %p447 = scmp.eq.s32.totalorder %s37, 1
    %p448 = por %p446, %p447
    %p450 = scmp.ne.s32.totalorder %s435, %s449
    %p451 = scmp.eq.s32.totalorder %s37, 0
    %p452 = por %p450, %p451
    %s454 = sadd.s32 %s453, 1
    %p457 = scmp.eq.s32.totalorder %s31, 1
    %p458 = scmp.ne.s32.totalorder %s453, %s455
    %p459 = scmp.eq.s32.totalorder %s31, 0
    %p460 = por %p458, %p459
    %p461 = scmp.ne.s32.totalorder %s453, %s455
    %p462 = scmp.eq.s32.totalorder %s36, 1
    %p463 = por %p461, %p462
    %p464 = scmp.ne.s32.totalorder %s455, %s456
    %p465 = scmp.eq.s32.totalorder %s36, 0
    %p466 = por %p464, %p465
    %p467 = scmp.ne.s32.totalorder %s455, %s456
    %p468 = scmp.eq.s32.totalorder %s37, 1
    %p469 = por %p467, %p468
    %p471 = scmp.ne.s32.totalorder %s456, %s470
    %p472 = scmp.eq.s32.totalorder %s37, 0
    %p473 = por %p471, %p472
    %s475 = sadd.s32 %s474, 1
    %p478 = scmp.eq.s32.totalorder %s31, 1
    %p479 = scmp.ne.s32.totalorder %s474, %s476
    %p480 = scmp.eq.s32.totalorder %s31, 0
    %p481 = por %p479, %p480
    %p482 = scmp.ne.s32.totalorder %s474, %s476
    %p483 = scmp.eq.s32.totalorder %s36, 1
    %p484 = por %p482, %p483
    %p485 = scmp.ne.s32.totalorder %s476, %s477
    %p486 = scmp.eq.s32.totalorder %s36, 0
    %p487 = por %p485, %p486
    %p488 = scmp.ne.s32.totalorder %s476, %s477
    %p489 = scmp.eq.s32.totalorder %s37, 1
    %p490 = por %p488, %p489
    %p492 = scmp.ne.s32.totalorder %s477, %s491
    %p493 = scmp.eq.s32.totalorder %s37, 0
    %p494 = por %p492, %p493
    %s496 = sadd.s32 %s495, 1
    %p499 = scmp.eq.s32.totalorder %s31, 1
    %p500 = scmp.ne.s32.totalorder %s495, %s497
    %p501 = scmp.eq.s32.totalorder %s31, 0
    %p502 = por %p500, %p501
    %p503 = scmp.ne.s32.totalorder %s495, %s497
    %p504 = scmp.eq.s32.totalorder %s36, 1
    %p505 = por %p503, %p504
    %p506 = scmp.ne.s32.totalorder %s497, %s498
    %p507 = scmp.eq.s32.totalorder %s36, 0
    %p508 = por %p506, %p507
    %p509 = scmp.ne.s32.totalorder %s497, %s498
    %p510 = scmp.eq.s32.totalorder %s37, 1
    %p511 = por %p509, %p510
    %p513 = scmp.ne.s32.totalorder %s498, %s512
    %p514 = scmp.eq.s32.totalorder %s37, 0
    %p515 = por %p513, %p514
    %s517 = sadd.s32 %s516, 1
    %p520 = scmp.eq.s32.totalorder %s31, 1
    %p521 = scmp.ne.s32.totalorder %s516, %s518
    %p522 = scmp.eq.s32.totalorder %s31, 0
    %p523 = por %p521, %p522
    %p524 = scmp.ne.s32.totalorder %s516, %s518
    %p525 = scmp.eq.s32.totalorder %s36, 1
    %p526 = por %p524, %p525
    %p527 = scmp.ne.s32.totalorder %s518, %s519
    %p528 = scmp.eq.s32.totalorder %s36, 0
    %p529 = por %p527, %p528
    %p530 = scmp.ne.s32.totalorder %s518, %s519
    %p531 = scmp.eq.s32.totalorder %s37, 1
    %p532 = por %p530, %p531
    %p534 = scmp.ne.s32.totalorder %s519, %s533
    %p535 = scmp.eq.s32.totalorder %s37, 0
    %p536 = por %p534, %p535
    %s538 = sadd.s32 %s537, 1
    %p541 = scmp.eq.s32.totalorder %s31, 1
    %p542 = scmp.ne.s32.totalorder %s537, %s539
    %p543 = scmp.eq.s32.totalorder %s31, 0
    %p544 = por %p542, %p543
    %p545 = scmp.ne.s32.totalorder %s537, %s539
    %p546 = scmp.eq.s32.totalorder %s36, 1
    %p547 = por %p545, %p546
    %p548 = scmp.ne.s32.totalorder %s539, %s540
    %p549 = scmp.eq.s32.totalorder %s36, 0
    %p550 = por %p548, %p549
    %p551 = scmp.ne.s32.totalorder %s539, %s540
    %p552 = scmp.eq.s32.totalorder %s37, 1
    %p553 = por %p551, %p552
    %p555 = scmp.ne.s32.totalorder %s540, %s554
    %p556 = scmp.eq.s32.totalorder %s37, 0
    %p557 = por %p555, %p556
    %s559 = sadd.s32 %s558, 1
    %p562 = scmp.eq.s32.totalorder %s31, 1
    %p563 = scmp.ne.s32.totalorder %s558, %s560
    %p564 = scmp.eq.s32.totalorder %s31, 0
    %p565 = por %p563, %p564
    %p566 = scmp.ne.s32.totalorder %s558, %s560
    %p567 = scmp.eq.s32.totalorder %s36, 1
    %p568 = por %p566, %p567
    %p569 = scmp.ne.s32.totalorder %s560, %s561
    %p570 = scmp.eq.s32.totalorder %s36, 0
    %p571 = por %p569, %p570
    %p572 = scmp.ne.s32.totalorder %s560, %s561
    %p573 = scmp.eq.s32.totalorder %s37, 1
    %p574 = por %p572, %p573
    %p576 = scmp.ne.s32.totalorder %s561, %s575
    %p577 = scmp.eq.s32.totalorder %s37, 0
    %p578 = por %p576, %p577
    %s579 = ssub.s32 %s31, %s38
    %p580 = scmp.eq.s32.totalorder %s579, 0
    %s582 = sadd.s32 %s581, 1
    %s583 = scalar_select %p580, %s581, %s582
    %p586 = pneg %p580
    %p587 = scmp.eq.s32.totalorder %s31, 1
    %p588 = por %p586, %p587
    %p589 = scmp.ne.s32.totalorder %s581, %s584
    %p590 = scmp.eq.s32.totalorder %s31, 0
    %p591 = por %p589, %p590
    %p592 = scmp.ne.s32.totalorder %s581, %s584
    %p593 = scmp.eq.s32.totalorder %s36, 1
    %p594 = por %p592, %p593
    %p595 = scmp.ne.s32.totalorder %s584, %s585
    %p596 = scmp.eq.s32.totalorder %s36, 0
    %p597 = por %p595, %p596
    %p598 = scmp.ne.s32.totalorder %s584, %s585
    %p599 = scmp.eq.s32.totalorder %s37, 1
    %p600 = por %p598, %p599
    %p602 = scmp.ne.s32.totalorder %s585, %s601
    %p603 = scmp.eq.s32.totalorder %s37, 0
    %p604 = por %p602, %p603
    %p605 = scmp.le.s32.totalorder 1, %s31
    %p606 = scmp.lt.s32.totalorder %s31, 3
    %p607 = pnand %p605, %p606
    %p608 = pneg %p607
    // Predicated region
    $region9: #{model_forward.5} parent=5 // pred_check
      _
    $region10: #{model_forward.5} parent=5 // pred_check_branch
      %610 = sbr.rel (%p607) target = $region12
    $region11: #{model_forward.5} parent=5 // pred_region
      %s611 = ssub.s32 %s31, 1
      // Predicated region
      $region13: #{model_forward.5} parent=11 // pred_check
        %p612 = pneg %p130
      $region14: #{model_forward.5} parent=11 // pred_check_branch
        %614 = sbr.rel (%p612) target = $region16
      $region15: #{model_forward.5} parent=11 // pred_region
        _
      $region16: #{model_forward.5} parent=11 // pred_fallthru
        _
      // Predicated region
      $region17: #{model_forward.5} parent=11 // pred_check
        %p615 = pneg %p151
      $region18: #{model_forward.5} parent=11 // pred_check_branch
        %617 = sbr.rel (%p615) target = $region20
      $region19: #{model_forward.5} parent=11 // pred_region
        _
      $region20: #{model_forward.5} parent=11 // pred_fallthru
        _
      // Predicated region
      $region21: #{model_forward.5} parent=11 // pred_check
        %p618 = pneg %p172
      $region22: #{model_forward.5} parent=11 // pred_check_branch
        %620 = sbr.rel (%p618) target = $region24
      $region23: #{model_forward.5} parent=11 // pred_region
        _
      $region24: #{model_forward.5} parent=11 // pred_fallthru
        _
      // Predicated region
      $region25: #{model_forward.5} parent=11 // pred_check
        %p621 = pneg %p193
      $region26: #{model_forward.5} parent=11 // pred_check_branch
        %623 = sbr.rel (%p621) target = $region28
      $region27: #{model_forward.5} parent=11 // pred_region
        _
      $region28: #{model_forward.5} parent=11 // pred_fallthru
        _
      // Predicated region
      $region29: #{model_forward.5} parent=11 // pred_check
        %p624 = pneg %p214
      $region30: #{model_forward.5} parent=11 // pred_check_branch
        %626 = sbr.rel (%p624) target = $region32
      $region31: #{model_forward.5} parent=11 // pred_region
        _
      $region32: #{model_forward.5} parent=11 // pred_fallthru
        _
      // Predicated region
      $region33: #{model_forward.5} parent=11 // pred_check
        %p627 = pneg %p235
      $region34: #{model_forward.5} parent=11 // pred_check_branch
        %629 = sbr.rel (%p627) target = $region36
      $region35: #{model_forward.5} parent=11 // pred_region
        _
      $region36: #{model_forward.5} parent=11 // pred_fallthru
        _
      // Predicated region
      $region37: #{model_forward.5} parent=11 // pred_check
        %p630 = pneg %p256
      $region38: #{model_forward.5} parent=11 // pred_check_branch
        %632 = sbr.rel (%p630) target = $region40
      $region39: #{model_forward.5} parent=11 // pred_region
        _
      $region40: #{model_forward.5} parent=11 // pred_fallthru
        _
      // Predicated region
      $region41: #{model_forward.5} parent=11 // pred_check
        %p633 = pneg %p277
      $region42: #{model_forward.5} parent=11 // pred_check_branch
        %635 = sbr.rel (%p633) target = $region44
      $region43: #{model_forward.5} parent=11 // pred_region
        _
      $region44: #{model_forward.5} parent=11 // pred_fallthru
        _
      // Predicated region
      $region45: #{model_forward.5} parent=11 // pred_check
        %p636 = pneg %p298
      $region46: #{model_forward.5} parent=11 // pred_check_branch
        %638 = sbr.rel (%p636) target = $region48
      $region47: #{model_forward.5} parent=11 // pred_region
        _
      $region48: #{model_forward.5} parent=11 // pred_fallthru
        _
      // Predicated region
      $region49: #{model_forward.5} parent=11 // pred_check
        %p639 = pneg %p319
      $region50: #{model_forward.5} parent=11 // pred_check_branch
        %641 = sbr.rel (%p639) target = $region52
      $region51: #{model_forward.5} parent=11 // pred_region
        _
      $region52: #{model_forward.5} parent=11 // pred_fallthru
        _
      // Predicated region
      $region53: #{model_forward.5} parent=11 // pred_check
        %p642 = pneg %p340
      $region54: #{model_forward.5} parent=11 // pred_check_branch
        %644 = sbr.rel (%p642) target = $region56
      $region55: #{model_forward.5} parent=11 // pred_region
        _
      $region56: #{model_forward.5} parent=11 // pred_fallthru
        _
      // Predicated region
      $region57: #{model_forward.5} parent=11 // pred_check
        %p645 = pneg %p361
      $region58: #{model_forward.5} parent=11 // pred_check_branch
        %647 = sbr.rel (%p645) target = $region60
      $region59: #{model_forward.5} parent=11 // pred_region
        _
      $region60: #{model_forward.5} parent=11 // pred_fallthru
        _
      // Predicated region
      $region61: #{model_forward.5} parent=11 // pred_check
        %p648 = pneg %p382
      $region62: #{model_forward.5} parent=11 // pred_check_branch
        %650 = sbr.rel (%p648) target = $region64
      $region63: #{model_forward.5} parent=11 // pred_region
        _
      $region64: #{model_forward.5} parent=11 // pred_fallthru
        _
      // Predicated region
      $region65: #{model_forward.5} parent=11 // pred_check
        %p651 = pneg %p403
      $region66: #{model_forward.5} parent=11 // pred_check_branch
        %653 = sbr.rel (%p651) target = $region68
      $region67: #{model_forward.5} parent=11 // pred_region
        _
      $region68: #{model_forward.5} parent=11 // pred_fallthru
        _
      // Predicated region
      $region69: #{model_forward.5} parent=11 // pred_check
        %p654 = pneg %p424
      $region70: #{model_forward.5} parent=11 // pred_check_branch
        %656 = sbr.rel (%p654) target = $region72
      $region71: #{model_forward.5} parent=11 // pred_region
        _
      $region72: #{model_forward.5} parent=11 // pred_fallthru
        _
      // Predicated region
      $region73: #{model_forward.5} parent=11 // pred_check
        %p657 = pneg %p445
      $region74: #{model_forward.5} parent=11 // pred_check_branch
        %659 = sbr.rel (%p657) target = $region76
      $region75: #{model_forward.5} parent=11 // pred_region
        _
      $region76: #{model_forward.5} parent=11 // pred_fallthru
        _
      // Predicated region
      $region77: #{model_forward.5} parent=11 // pred_check
        %p660 = pneg %p466
      $region78: #{model_forward.5} parent=11 // pred_check_branch
        %662 = sbr.rel (%p660) target = $region80
      $region79: #{model_forward.5} parent=11 // pred_region
        _
      $region80: #{model_forward.5} parent=11 // pred_fallthru
        _
      // Predicated region
      $region81: #{model_forward.5} parent=11 // pred_check
        %p663 = pneg %p487
      $region82: #{model_forward.5} parent=11 // pred_check_branch
        %665 = sbr.rel (%p663) target = $region84
      $region83: #{model_forward.5} parent=11 // pred_region
        _
      $region84: #{model_forward.5} parent=11 // pred_fallthru
        _
      // Predicated region
      $region85: #{model_forward.5} parent=11 // pred_check
        %p666 = pneg %p508
      $region86: #{model_forward.5} parent=11 // pred_check_branch
        %668 = sbr.rel (%p666) target = $region88
      $region87: #{model_forward.5} parent=11 // pred_region
        _
      $region88: #{model_forward.5} parent=11 // pred_fallthru
        _
      // Predicated region
      $region89: #{model_forward.5} parent=11 // pred_check
        %p669 = pneg %p529
      $region90: #{model_forward.5} parent=11 // pred_check_branch
        %671 = sbr.rel (%p669) target = $region92
      $region91: #{model_forward.5} parent=11 // pred_region
        _
      $region92: #{model_forward.5} parent=11 // pred_fallthru
        _
      // Predicated region
      $region93: #{model_forward.5} parent=11 // pred_check
        %p672 = pneg %p550
      $region94: #{model_forward.5} parent=11 // pred_check_branch
        %674 = sbr.rel (%p672) target = $region96
      $region95: #{model_forward.5} parent=11 // pred_region
        _
      $region96: #{model_forward.5} parent=11 // pred_fallthru
        _
      // Predicated region
      $region97: #{model_forward.5} parent=11 // pred_check
        %p675 = pneg %p571
      $region98: #{model_forward.5} parent=11 // pred_check_branch
        %677 = sbr.rel (%p675) target = $region100
      $region99: #{model_forward.5} parent=11 // pred_region
        _
      $region100: #{model_forward.5} parent=11 // pred_fallthru
        _
    $region12: #{model_forward.5} parent=5 // pred_fallthru
      _
    %p678 = scmp.lt.s32.totalorder %s31, 2
    // Predicated region
    $region101: #{model_forward.5} parent=5 // pred_check
      %p679 = pneg %p678
    $region102: #{model_forward.5} parent=5 // pred_check_branch
      %681 = sbr.rel (%p679) target = $region104
    $region103: #{model_forward.5} parent=5 // pred_region
      // Predicated region
      $region105: #{model_forward.5} parent=103 // pred_check
        %p682 = pneg %p51
      $region106: #{model_forward.5} parent=103 // pred_check_branch
        %684 = sbr.rel (%p682) target = $region108
      $region107: #{model_forward.5} parent=103 // pred_region
        %p685 = scmp.lt.s32.totalorder %s31, 1
        %s686 = scalar_select %p685, %s31, 1
        %s687 = smul.addr %s686, 8
        %s688 = scalar_lea.vmem %s0, %s687
      $region108: #{model_forward.5} parent=103 // pred_fallthru
        _
      // Predicated region
      $region109: #{model_forward.5} parent=103 // pred_check
        %p689 = pneg %p77
      $region110: #{model_forward.5} parent=103 // pred_check_branch
        %691 = sbr.rel (%p689) target = $region112
      $region111: #{model_forward.5} parent=103 // pred_region
        %p692 = scmp.lt.s32.totalorder %s31, 1
        %s693 = scalar_select %p692, %s31, 1
        %s694 = smul.addr %s693, 8
        %s695 = scalar_lea.vmem %s1, %s694
      $region112: #{model_forward.5} parent=103 // pred_fallthru
        _
      // Predicated region
      $region113: #{model_forward.5} parent=103 // pred_check
        %p696 = pneg %p103
      $region114: #{model_forward.5} parent=103 // pred_check_branch
        %698 = sbr.rel (%p696) target = $region116
      $region115: #{model_forward.5} parent=103 // pred_region
        %p699 = scmp.lt.s32.totalorder %s31, 1
        %s700 = scalar_select %p699, %s31, 1
        %s701 = smul.addr %s700, 8
        %s702 = scalar_lea.vmem %s2, %s701
      $region116: #{model_forward.5} parent=103 // pred_fallthru
        _
    $region104: #{model_forward.5} parent=5 // pred_fallthru
      _
    %p703 = scmp.le.s32.totalorder 1, %s31
    %p704 = scmp.lt.s32.totalorder %s31, 3
    %p705 = pnand %p703, %p704
    %p706 = pneg %p705
    // Predicated region
    $region117: #{model_forward.5} parent=5 // pred_check
      _
    $region118: #{model_forward.5} parent=5 // pred_check_branch
      %708 = sbr.rel (%p705) target = $region120
    $region119: #{model_forward.5} parent=5 // pred_region
      %s709 = ssub.s32 %s31, 1
      %p710 = scmp.lt.s32.totalorder %s36, 1
      %s711 = scalar_select %p710, %s36, 1
      %s712 = smul.addr %s711, 8
      %s713 = scalar_lea.vmem %s0, %s712
      %p714 = pneg %p57
      %p715 = pneg %p54
      %p716 = scmp.lt.s32.totalorder %s36, 1
      %s717 = scalar_select %p716, %s36, 1
      %s718 = smul.addr %s717, 8
      %s719 = scalar_lea.vmem %s1, %s718
      %p720 = pneg %p83
      %p721 = pneg %p80
      %p722 = scmp.lt.s32.totalorder %s36, 1
      %s723 = scalar_select %p722, %s36, 1
      %s724 = smul.addr %s723, 8
      %s725 = scalar_lea.vmem %s2, %s724
      %p726 = pneg %p109
      %p727 = pneg %p106
      %p728 = pneg %p130
      %p729 = pneg %p127
      %p730 = pneg %p151
      %p731 = pneg %p148
      %p732 = pneg %p172
      %p733 = pneg %p169
      %p734 = pneg %p193
      %p735 = pneg %p190
      %p736 = pneg %p214
      %p737 = pneg %p211
      %p738 = pneg %p235
      %p739 = pneg %p232
      %p740 = pneg %p256
      %p741 = pneg %p253
      %p742 = pneg %p277
      %p743 = pneg %p274
      %p744 = pneg %p298
      %p745 = pneg %p295
      %p746 = pneg %p319
      %p747 = pneg %p316
      %p748 = pneg %p340
      %p749 = pneg %p337
      %p750 = pneg %p361
      %p751 = pneg %p358
      %p752 = pneg %p382
      %p753 = pneg %p379
      %p754 = pneg %p403
      %p755 = pneg %p400
      %p756 = pneg %p424
      %p757 = pneg %p421
      %p758 = pneg %p445
      %p759 = pneg %p442
      %p760 = pneg %p466
      %p761 = pneg %p463
      %p762 = pneg %p487
      %p763 = pneg %p484
      %p764 = pneg %p508
      %p765 = pneg %p505
      %p766 = pneg %p529
      %p767 = pneg %p526
      %p768 = pneg %p550
      %p769 = pneg %p547
      %p770 = pneg %p571
      %p771 = pneg %p568
      %p772 = pneg %p597
      %p773 = pneg %p594
      %p774 = scmp.lt.s32.totalorder %s36, 1
      %s775 = scalar_select %p774, %s36, 1
      %s776 = smul.addr %s775, 8
      %s777 = scalar_lea.vmem %s25, %s776
      %p778 = scmp.lt.s32.totalorder %s36, 1
      %s779 = scalar_select %p778, %s36, 1
      %s780 = smul.addr %s779, 8
      %s781 = scalar_lea.vmem %s0, %s780
      %p782 = scmp.lt.s32.totalorder %s36, 1
      %s783 = scalar_select %p782, %s36, 1
      %s784 = smul.addr %s783, 8
      %s785 = scalar_lea.vmem %s1, %s784
      %p786 = scmp.lt.s32.totalorder %s36, 1
      %s787 = scalar_select %p786, %s36, 1
      %s788 = smul.addr %s787, 8
      %s789 = scalar_lea.vmem %s2, %s788
      %p790 = scmp.lt.s32.totalorder %s36, 1
      %s791 = scalar_select %p790, %s36, 1
      %s792 = smul.addr %s791, 8
      %s793 = scalar_lea.vmem %s25, %s792
      %v795 = vld [vmem:[%s781] sm:$0xff]
      %v796 = vld [vmem:[%s785] sm:$0xff]
      %v797 = vld [vmem:[%s789] sm:$0xff]
      %v798 = vld [vmem:[%s3] sm:$0xf]
      %v799 = vld [vmem:[%s3 + $0x4] sm:$0xf]
      %v800 = vld [vmem:[%s3 + $0x8] sm:$0xf]
      %v801 = vld [vmem:[%s3 + $0xc] sm:$0xf]
      %v802 = vld [vmem:[%s3 + $0x10] sm:$0xf]
      %v803 = vld [vmem:[%s3 + $0x14] sm:$0xf]
      %v804 = vld [vmem:[%s3 + $0x18] sm:$0xf]
      %v805 = vld [vmem:[%s3 + $0x1c] sm:$0xf]
      %v806 = vld [vmem:[%s4] sm:$0x1]
      %v807 = vld [vmem:[%s5] sm:$0xf]
      %v808 = vld [vmem:[%s5 + $0x4] sm:$0xf]
      %v809 = vld [vmem:[%s5 + $0x8] sm:$0xf]
      %v810 = vld [vmem:[%s5 + $0xc] sm:$0xf]
      %v811 = vld [vmem:[%s5 + $0x10] sm:$0xf]
      %v812 = vld [vmem:[%s5 + $0x14] sm:$0xf]
      %v813 = vld [vmem:[%s5 + $0x18] sm:$0xf]
      %v814 = vld [vmem:[%s5 + $0x1c] sm:$0xf]
      %v815 = vld [vmem:[%s6] sm:$0x1]
      %v816 = vld [vmem:[%s7] sm:$0xf]
      %v817 = vld [vmem:[%s7 + $0x4] sm:$0xf]
      %v818 = vld [vmem:[%s7 + $0x8] sm:$0xf]
      %v819 = vld [vmem:[%s7 + $0xc] sm:$0xf]
      %v820 = vld [vmem:[%s7 + $0x10] sm:$0xf]
      %v821 = vld [vmem:[%s7 + $0x14] sm:$0xf]
      %v822 = vld [vmem:[%s7 + $0x18] sm:$0xf]
      %v823 = vld [vmem:[%s7 + $0x1c] sm:$0xf]
      %v824 = vld [vmem:[%s8] sm:$0x1]
      %v825 = vpack.c.bf16 %v795, %v795
      %v827 = vperm.slane %v806, 0
      %v837 = vunpack.c.l.b16 %v798
      %v838 = vunpack.c.l.b16 %v799
      %v839 = vunpack.c.l.b16 %v800
      %v840 = vunpack.c.l.b16 %v801
      %v841 = vunpack.c.l.b16 %v802
      %v842 = vunpack.c.l.b16 %v803
      %v843 = vunpack.c.l.b16 %v804
      %v844 = vunpack.c.l.b16 %v805
      %v845 = vpack.c.b16 %v838, %v837
      %v846 = vpack.c.b16 %v840, %v839
      %v847 = vpack.c.b16 %v842, %v841
      %v848 = vpack.c.b16 %v844, %v843
      %vm853 = vcmask 523264
      %v855 = vsel %vm853, %v825, 0
      %857 = vmatpush.bf16.msra.mxu0 0
      %858 = vmatpush.bf16.msra.mxu0 0
      %859 = vmatpush.bf16.msra.mxu0 0
      %860 = vmatpush.bf16.msra.mxu0 0
      %861 = vmatpush.bf16.msra.mxu0 %v848
      %862 = vmatpush.bf16.msra.mxu0 %v847
      %863 = vmatpush.bf16.msra.mxu0 %v846
      %864 = vmatpush.bf16.msra.mxu0 %v845
      %865 = vmatmul.bf16.gmra.mxu0 %v855
      %v866 = vpop.f32.mrf.mxu0
      %v867 = vadd.f32 %v827, %v866
      %v868 = vpop.f32.mrf.mxu0
      %869 = vdwg.mxu0
      %v871 = vperm.slane %v815, 0
      %v881 = vunpack.c.l.b16 %v807
      %v882 = vunpack.c.l.b16 %v808
      %v883 = vunpack.c.l.b16 %v809
      %v884 = vunpack.c.l.b16 %v810
      %v885 = vunpack.c.l.b16 %v811
      %v886 = vunpack.c.l.b16 %v812
      %v887 = vunpack.c.l.b16 %v813
      %v888 = vunpack.c.l.b16 %v814
      %v889 = vpack.c.b16 %v882, %v881
      %v890 = vpack.c.b16 %v884, %v883
      %v891 = vpack.c.b16 %v886, %v885
      %v892 = vpack.c.b16 %v888, %v887
      %897 = vmatpush.bf16.msra.mxu0 0
      %898 = vmatpush.bf16.msra.mxu0 0
      %899 = vmatpush.bf16.msra.mxu0 0
      %900 = vmatpush.bf16.msra.mxu0 0
      %901 = vmatpush.bf16.msra.mxu0 %v892
      %902 = vmatpush.bf16.msra.mxu0 %v891
      %903 = vmatpush.bf16.msra.mxu0 %v890
      %904 = vmatpush.bf16.msra.mxu0 %v889
      %905 = vmatmul.bf16.gmra.mxu0 %v855
      %v906 = vpop.f32.mrf.mxu0
      %v907 = vadd.f32 %v871, %v906
      %v908 = vpop.f32.mrf.mxu0
      %909 = vdwg.mxu0
      %v910 = vpack.c.bf16 %v867, %v867
      %v911 = vpack.c.bf16 %v907, %v907
      %vm912 = vcmask 64512
      %v914 = vsel %vm912, %v910, 0
      %v917 = vsel %vm912, %v911, 0
      %919 = vmatpush.bf16.xpose.msra.mxu0 0
      %920 = vmatpush.bf16.xpose.msra.mxu0 0
      %921 = vmatpush.bf16.xpose.msra.mxu0 0
      %922 = vmatpush.bf16.xpose.msra.mxu0 0
      %923 = vmatpush.bf16.xpose.msra.mxu0 0
      %924 = vmatpush.bf16.xpose.msra.mxu0 0
      %925 = vmatpush.bf16.xpose.msra.mxu0 0
      %926 = vmatpush.bf16.xpose.msra.mxu0 %v917
      %927 = vmatmul.bf16.gmra.mxu0 %v914
      %v928 = vpop.f32.mrf.mxu0
      %v929 = vadd.f32 0.0, %v928
      %v930 = vpop.f32.mrf.mxu0
      %931 = vdwg.mxu0
      %v932 = vmul.f32 %v929, 0.35355338
      %v933 = vadd.f32 %v932, %v797
      %v934 = vsel %vm912, %v933, -inf
      %935 = vmax.xlane.f32.xlu0 %v934
      %v936 = vpop.xlane.xlu0 %935
      %v937 = vsub.f32 %v933, %v936
      %v938 = vmul.f32 %v937, 1.442695
      %v939 = vpow.pop %v938
      %v940 = vsel %vm912, %v939, 0.0
      %941 = vadd.xlane.f32.xlu0 %v940
      %v942 = vpop.xlane.xlu0 %941
      %v943 = vrcp.pop %v942
      %v944 = vmul.f32 %v939, %v943
      %v945 = vpack.c.bf16 %v944, %v944
      %947 = vrot.lane.b32.xlu0 %v911, 64
      %v948 = vpop.permute.xlu0 %947
      %v950 = vsel %vm912, %v945, 0
      %vm952 = vcmask 1043456
      %v954 = vsel %vm952, %v948, 0
      %956 = vmatpush.bf16.msra.mxu0 0
      %957 = vmatpush.bf16.msra.mxu0 0
      %958 = vmatpush.bf16.msra.mxu0 0
      %959 = vmatpush.bf16.msra.mxu0 0
      %960 = vmatpush.bf16.msra.mxu0 0
      %961 = vmatpush.bf16.msra.mxu0 0
      %962 = vmatpush.bf16.msra.mxu0 0
      %963 = vmatpush.bf16.msra.mxu0 %v954
      %964 = vmatmul.bf16.gmra.mxu0 %v950
      %v965 = vpop.f32.mrf.mxu0
      %v966 = vadd.f32 0.0, %v965
      %v967 = vpop.f32.mrf.mxu0
      %968 = vdwg.mxu0
      %970 = vrot.lane.b32.xlu0 %v910, 120
      %v971 = vpop.permute.xlu0 %970
      %972 = vrot.lane.b32.xlu0 %v911, 120
      %v973 = vpop.permute.xlu0 %972
      %v975 = vsel %vm912, %v971, 0
      %v978 = vsel %vm912, %v973, 0
      %980 = vmatpush.bf16.xpose.msra.mxu0 0
      %981 = vmatpush.bf16.xpose.msra.mxu0 0
      %982 = vmatpush.bf16.xpose.msra.mxu0 0
      %983 = vmatpush.bf16.xpose.msra.mxu0 0
      %984 = vmatpush.bf16.xpose.msra.mxu0 0
      %985 = vmatpush.bf16.xpose.msra.mxu0 0
      %986 = vmatpush.bf16.xpose.msra.mxu0 0
      %987 = vmatpush.bf16.xpose.msra.mxu0 %v978
      %988 = vmatmul.bf16.gmra.mxu0 %v975
      %v989 = vpop.f32.mrf.mxu0
      %v990 = vadd.f32 0.0, %v989
      %v991 = vpop.f32.mrf.mxu0
      %992 = vdwg.mxu0
      %v993 = vmul.f32 %v990, 0.35355338
      %v994 = vadd.f32 %v993, %v797
      %v995 = vsel %vm912, %v994, -inf
      %996 = vmax.xlane.f32.xlu0 %v995
      %v997 = vpop.xlane.xlu0 %996
      %v998 = vsub.f32 %v994, %v997
      %v999 = vmul.f32 %v998, 1.442695
      %v1000 = vpow.pop %v999
      %v1001 = vsel %vm912, %v1000, 0.0
      %1002 = vadd.xlane.f32.xlu0 %v1001
      %v1003 = vpop.xlane.xlu0 %1002
      %v1004 = vrcp.pop %v1003
      %v1005 = vmul.f32 %v1000, %v1004
      %v1006 = vpack.c.bf16 %v1005, %v1005
      %1007 = vrot.lane.b32.xlu0 %v911, 56
      %v1008 = vpop.permute.xlu0 %1007
      %v1010 = vsel %vm912, %v1006, 0
      %v1013 = vsel %vm952, %v1008, 0
      %1015 = vmatpush.bf16.msra.mxu0 0
      %1016 = vmatpush.bf16.msra.mxu0 0
      %1017 = vmatpush.bf16.msra.mxu0 0
      %1018 = vmatpush.bf16.msra.mxu0 0
      %1019 = vmatpush.bf16.msra.mxu0 0
      %1020 = vmatpush.bf16.msra.mxu0 0
      %1021 = vmatpush.bf16.msra.mxu0 0
      %1022 = vmatpush.bf16.msra.mxu0 %v1013
      %1023 = vmatmul.bf16.gmra.mxu0 %v1010
      %v1024 = vpop.f32.mrf.mxu0
      %v1025 = vadd.f32 0.0, %v1024
      %v1026 = vpop.f32.mrf.mxu0
      %1027 = vdwg.mxu0
      %1028 = vrot.lane.b32.xlu0 %v910, 112
      %v1029 = vpop.permute.xlu0 %1028
      %1030 = vrot.lane.b32.xlu0 %v911, 112
      %v1031 = vpop.permute.xlu0 %1030
      %v1033 = vsel %vm912, %v1029, 0
      %v1036 = vsel %vm912, %v1031, 0
      %1038 = vmatpush.bf16.xpose.msra.mxu0 0
      %1039 = vmatpush.bf16.xpose.msra.mxu0 0
      %1040 = vmatpush.bf16.xpose.msra.mxu0 0
      %1041 = vmatpush.bf16.xpose.msra.mxu0 0
      %1042 = vmatpush.bf16.xpose.msra.mxu0 0
      %1043 = vmatpush.bf16.xpose.msra.mxu0 0
      %1044 = vmatpush.bf16.xpose.msra.mxu0 0
      %1045 = vmatpush.bf16.xpose.msra.mxu0 %v1036
      %1046 = vmatmul.bf16.gmra.mxu0 %v1033
      %v1047 = vpop.f32.mrf.mxu0
      %v1048 = vadd.f32 0.0, %v1047
      %v1049 = vpop.f32.mrf.mxu0
      %1050 = vdwg.mxu0
      %v1051 = vmul.f32 %v1048, 0.35355338
      %v1052 = vadd.f32 %v1051, %v797
      %v1053 = vsel %vm912, %v1052, -inf
      %1054 = vmax.xlane.f32.xlu0 %v1053
      %v1055 = vpop.xlane.xlu0 %1054
      %v1056 = vsub.f32 %v1052, %v1055
      %v1057 = vmul.f32 %v1056, 1.442695
      %v1058 = vpow.pop %v1057
      %v1059 = vsel %vm912, %v1058, 0.0
      %1060 = vadd.xlane.f32.xlu0 %v1059
      %v1061 = vpop.xlane.xlu0 %1060
      %v1062 = vrcp.pop %v1061
      %v1063 = vmul.f32 %v1058, %v1062
      %v1064 = vpack.c.bf16 %v1063, %v1063
      %1065 = vrot.lane.b32.xlu0 %v911, 48
      %v1066 = vpop.permute.xlu0 %1065
      %v1068 = vsel %vm912, %v1064, 0
      %v1071 = vsel %vm952, %v1066, 0
      %1073 = vmatpush.bf16.msra.mxu0 0
      %1074 = vmatpush.bf16.msra.mxu0 0
      %1075 = vmatpush.bf16.msra.mxu0 0
      %1076 = vmatpush.bf16.msra.mxu0 0
      %1077 = vmatpush.bf16.msra.mxu0 0
      %1078 = vmatpush.bf16.msra.mxu0 0
      %1079 = vmatpush.bf16.msra.mxu0 0
      %1080 = vmatpush.bf16.msra.mxu0 %v1071
      %1081 = vmatmul.bf16.gmra.mxu0 %v1068
      %v1082 = vpop.f32.mrf.mxu0
      %v1083 = vadd.f32 0.0, %v1082
      %v1084 = vpop.f32.mrf.mxu0
      %1085 = vdwg.mxu0
      %1086 = vrot.lane.b32.xlu0 %v910, 104
      %v1087 = vpop.permute.xlu0 %1086
      %1088 = vrot.lane.b32.xlu0 %v911, 104
      %v1089 = vpop.permute.xlu0 %1088
      %v1091 = vsel %vm912, %v1087, 0
      %v1094 = vsel %vm912, %v1089, 0
      %1096 = vmatpush.bf16.xpose.msra.mxu0 0
      %1097 = vmatpush.bf16.xpose.msra.mxu0 0
      %1098 = vmatpush.bf16.xpose.msra.mxu0 0
      %1099 = vmatpush.bf16.xpose.msra.mxu0 0
      %1100 = vmatpush.bf16.xpose.msra.mxu0 0
      %1101 = vmatpush.bf16.xpose.msra.mxu0 0
      %1102 = vmatpush.bf16.xpose.msra.mxu0 0
      %1103 = vmatpush.bf16.xpose.msra.mxu0 %v1094
      %1104 = vmatmul.bf16.gmra.mxu0 %v1091
      %v1105 = vpop.f32.mrf.mxu0
      %v1106 = vadd.f32 0.0, %v1105
      %v1107 = vpop.f32.mrf.mxu0
      %1108 = vdwg.mxu0
      %v1109 = vmul.f32 %v1106, 0.35355338
      %v1110 = vadd.f32 %v1109, %v797
      %v1111 = vsel %vm912, %v1110, -inf
      %1112 = vmax.xlane.f32.xlu0 %v1111
      %v1113 = vpop.xlane.xlu0 %1112
      %v1114 = vsub.f32 %v1110, %v1113
      %v1115 = vmul.f32 %v1114, 1.442695
      %v1116 = vpow.pop %v1115
      %v1117 = vsel %vm912, %v1116, 0.0
      %1118 = vadd.xlane.f32.xlu0 %v1117
      %v1119 = vpop.xlane.xlu0 %1118
      %v1120 = vrcp.pop %v1119
      %v1121 = vmul.f32 %v1116, %v1120
      %v1122 = vpack.c.bf16 %v1121, %v1121
      %1123 = vrot.lane.b32.xlu0 %v911, 40
      %v1124 = vpop.permute.xlu0 %1123
      %v1126 = vsel %vm912, %v1122, 0
      %v1129 = vsel %vm952, %v1124, 0
      %1131 = vmatpush.bf16.msra.mxu0 0
      %1132 = vmatpush.bf16.msra.mxu0 0
      %1133 = vmatpush.bf16.msra.mxu0 0
      %1134 = vmatpush.bf16.msra.mxu0 0
      %1135 = vmatpush.bf16.msra.mxu0 0
      %1136 = vmatpush.bf16.msra.mxu0 0
      %1137 = vmatpush.bf16.msra.mxu0 0
      %1138 = vmatpush.bf16.msra.mxu0 %v1129
      %1139 = vmatmul.bf16.gmra.mxu0 %v1126
      %v1140 = vpop.f32.mrf.mxu0
      %v1141 = vadd.f32 0.0, %v1140
      %v1142 = vpop.f32.mrf.mxu0
      %1143 = vdwg.mxu0
      %1144 = vrot.lane.b32.xlu0 %v910, 96
      %v1145 = vpop.permute.xlu0 %1144
      %1146 = vrot.lane.b32.xlu0 %v911, 96
      %v1147 = vpop.permute.xlu0 %1146
      %v1149 = vsel %vm912, %v1145, 0
      %v1152 = vsel %vm912, %v1147, 0
      %1154 = vmatpush.bf16.xpose.msra.mxu0 0
      %1155 = vmatpush.bf16.xpose.msra.mxu0 0
      %1156 = vmatpush.bf16.xpose.msra.mxu0 0
      %1157 = vmatpush.bf16.xpose.msra.mxu0 0
      %1158 = vmatpush.bf16.xpose.msra.mxu0 0
      %1159 = vmatpush.bf16.xpose.msra.mxu0 0
      %1160 = vmatpush.bf16.xpose.msra.mxu0 0
      %1161 = vmatpush.bf16.xpose.msra.mxu0 %v1152
      %1162 = vmatmul.bf16.gmra.mxu0 %v1149
      %v1163 = vpop.f32.mrf.mxu0
      %v1164 = vadd.f32 0.0, %v1163
      %v1165 = vpop.f32.mrf.mxu0
      %1166 = vdwg.mxu0
      %v1167 = vmul.f32 %v1164, 0.35355338
      %v1168 = vadd.f32 %v1167, %v797
      %v1169 = vsel %vm912, %v1168, -inf
      %1170 = vmax.xlane.f32.xlu0 %v1169
      %v1171 = vpop.xlane.xlu0 %1170
      %v1172 = vsub.f32 %v1168, %v1171
      %v1173 = vmul.f32 %v1172, 1.442695
      %v1174 = vpow.pop %v1173
      %v1175 = vsel %vm912, %v1174, 0.0
      %1176 = vadd.xlane.f32.xlu0 %v1175
      %v1177 = vpop.xlane.xlu0 %1176
      %v1178 = vrcp.pop %v1177
      %v1179 = vmul.f32 %v1174, %v1178
      %v1180 = vpack.c.bf16 %v1179, %v1179
      %1181 = vrot.lane.b32.xlu0 %v911, 32
      %v1182 = vpop.permute.xlu0 %1181
      %v1184 = vsel %vm912, %v1180, 0
      %v1187 = vsel %vm952, %v1182, 0
      %1189 = vmatpush.bf16.msra.mxu0 0
      %1190 = vmatpush.bf16.msra.mxu0 0
      %1191 = vmatpush.bf16.msra.mxu0 0
      %1192 = vmatpush.bf16.msra.mxu0 0
      %1193 = vmatpush.bf16.msra.mxu0 0
      %1194 = vmatpush.bf16.msra.mxu0 0
      %1195 = vmatpush.bf16.msra.mxu0 0
      %1196 = vmatpush.bf16.msra.mxu0 %v1187
      %1197 = vmatmul.bf16.gmra.mxu0 %v1184
      %v1198 = vpop.f32.mrf.mxu0
      %v1199 = vadd.f32 0.0, %v1198
      %v1200 = vpop.f32.mrf.mxu0
      %1201 = vdwg.mxu0
      %1202 = vrot.lane.b32.xlu0 %v910, 88
      %v1203 = vpop.permute.xlu0 %1202
      %1204 = vrot.lane.b32.xlu0 %v911, 88
      %v1205 = vpop.permute.xlu0 %1204
      %v1207 = vsel %vm912, %v1203, 0
      %v1210 = vsel %vm912, %v1205, 0
      %1212 = vmatpush.bf16.xpose.msra.mxu0 0
      %1213 = vmatpush.bf16.xpose.msra.mxu0 0
      %1214 = vmatpush.bf16.xpose.msra.mxu0 0
      %1215 = vmatpush.bf16.xpose.msra.mxu0 0
      %1216 = vmatpush.bf16.xpose.msra.mxu0 0
      %1217 = vmatpush.bf16.xpose.msra.mxu0 0
      %1218 = vmatpush.bf16.xpose.msra.mxu0 0
      %1219 = vmatpush.bf16.xpose.msra.mxu0 %v1210
      %1220 = vmatmul.bf16.gmra.mxu0 %v1207
      %v1221 = vpop.f32.mrf.mxu0
      %v1222 = vadd.f32 0.0, %v1221
      %v1223 = vpop.f32.mrf.mxu0
      %1224 = vdwg.mxu0
      %v1225 = vmul.f32 %v1222, 0.35355338
      %v1226 = vadd.f32 %v1225, %v797
      %v1227 = vsel %vm912, %v1226, -inf
      %1228 = vmax.xlane.f32.xlu0 %v1227
      %v1229 = vpop.xlane.xlu0 %1228
      %v1230 = vsub.f32 %v1226, %v1229
      %v1231 = vmul.f32 %v1230, 1.442695
      %v1232 = vpow.pop %v1231
      %v1233 = vsel %vm912, %v1232, 0.0
      %1234 = vadd.xlane.f32.xlu0 %v1233
      %v1235 = vpop.xlane.xlu0 %1234
      %v1236 = vrcp.pop %v1235
      %v1237 = vmul.f32 %v1232, %v1236
      %v1238 = vpack.c.bf16 %v1237, %v1237
      %1239 = vrot.lane.b32.xlu0 %v911, 24
      %v1240 = vpop.permute.xlu0 %1239
      %v1242 = vsel %vm912, %v1238, 0
      %v1245 = vsel %vm952, %v1240, 0
      %1247 = vmatpush.bf16.msra.mxu0 0
      %1248 = vmatpush.bf16.msra.mxu0 0
      %1249 = vmatpush.bf16.msra.mxu0 0
      %1250 = vmatpush.bf16.msra.mxu0 0
      %1251 = vmatpush.bf16.msra.mxu0 0
      %1252 = vmatpush.bf16.msra.mxu0 0
      %1253 = vmatpush.bf16.msra.mxu0 0
      %1254 = vmatpush.bf16.msra.mxu0 %v1245
      %1255 = vmatmul.bf16.gmra.mxu0 %v1242
      %v1256 = vpop.f32.mrf.mxu0
      %v1257 = vadd.f32 0.0, %v1256
      %v1258 = vpop.f32.mrf.mxu0
      %1259 = vdwg.mxu0
      %1260 = vrot.lane.b32.xlu0 %v910, 80
      %v1261 = vpop.permute.xlu0 %1260
      %1262 = vrot.lane.b32.xlu0 %v911, 80
      %v1263 = vpop.permute.xlu0 %1262
      %v1265 = vsel %vm912, %v1261, 0
      %v1268 = vsel %vm912, %v1263, 0
      %1270 = vmatpush.bf16.xpose.msra.mxu0 0
      %1271 = vmatpush.bf16.xpose.msra.mxu0 0
      %1272 = vmatpush.bf16.xpose.msra.mxu0 0
      %1273 = vmatpush.bf16.xpose.msra.mxu0 0
      %1274 = vmatpush.bf16.xpose.msra.mxu0 0
      %1275 = vmatpush.bf16.xpose.msra.mxu0 0
      %1276 = vmatpush.bf16.xpose.msra.mxu0 0
      %1277 = vmatpush.bf16.xpose.msra.mxu0 %v1268
      %1278 = vmatmul.bf16.gmra.mxu0 %v1265
      %v1279 = vpop.f32.mrf.mxu0
      %v1280 = vadd.f32 0.0, %v1279
      %v1281 = vpop.f32.mrf.mxu0
      %1282 = vdwg.mxu0
      %v1283 = vmul.f32 %v1280, 0.35355338
      %v1284 = vadd.f32 %v1283, %v797
      %v1285 = vsel %vm912, %v1284, -inf
      %1286 = vmax.xlane.f32.xlu0 %v1285
      %v1287 = vpop.xlane.xlu0 %1286
      %v1288 = vsub.f32 %v1284, %v1287
      %v1289 = vmul.f32 %v1288, 1.442695
      %v1290 = vpow.pop %v1289
      %v1291 = vsel %vm912, %v1290, 0.0
      %1292 = vadd.xlane.f32.xlu0 %v1291
      %v1293 = vpop.xlane.xlu0 %1292
      %v1294 = vrcp.pop %v1293
      %v1295 = vmul.f32 %v1290, %v1294
      %v1296 = vpack.c.bf16 %v1295, %v1295
      %1297 = vrot.lane.b32.xlu0 %v911, 16
      %v1298 = vpop.permute.xlu0 %1297
      %v1300 = vsel %vm912, %v1296, 0
      %v1303 = vsel %vm952, %v1298, 0
      %1305 = vmatpush.bf16.msra.mxu0 0
      %1306 = vmatpush.bf16.msra.mxu0 0
      %1307 = vmatpush.bf16.msra.mxu0 0
      %1308 = vmatpush.bf16.msra.mxu0 0
      %1309 = vmatpush.bf16.msra.mxu0 0
      %1310 = vmatpush.bf16.msra.mxu0 0
      %1311 = vmatpush.bf16.msra.mxu0 0
      %1312 = vmatpush.bf16.msra.mxu0 %v1303
      %1313 = vmatmul.bf16.gmra.mxu0 %v1300
      %v1314 = vpop.f32.mrf.mxu0
      %v1315 = vadd.f32 0.0, %v1314
      %v1316 = vpop.f32.mrf.mxu0
      %1317 = vdwg.mxu0
      %1318 = vrot.lane.b32.xlu0 %v910, 72
      %v1319 = vpop.permute.xlu0 %1318
      %1320 = vrot.lane.b32.xlu0 %v911, 72
      %v1321 = vpop.permute.xlu0 %1320
      %v1323 = vsel %vm912, %v1319, 0
      %v1326 = vsel %vm912, %v1321, 0
      %1328 = vmatpush.bf16.xpose.msra.mxu0 0
      %1329 = vmatpush.bf16.xpose.msra.mxu0 0
      %1330 = vmatpush.bf16.xpose.msra.mxu0 0
      %1331 = vmatpush.bf16.xpose.msra.mxu0 0
      %1332 = vmatpush.bf16.xpose.msra.mxu0 0
      %1333 = vmatpush.bf16.xpose.msra.mxu0 0
      %1334 = vmatpush.bf16.xpose.msra.mxu0 0
      %1335 = vmatpush.bf16.xpose.msra.mxu0 %v1326
      %1336 = vmatmul.bf16.gmra.mxu0 %v1323
      %v1337 = vpop.f32.mrf.mxu0
      %v1338 = vadd.f32 0.0, %v1337
      %v1339 = vpop.f32.mrf.mxu0
      %1340 = vdwg.mxu0
      %v1341 = vmul.f32 %v1338, 0.35355338
      %v1342 = vadd.f32 %v1341, %v797
      %v1343 = vsel %vm912, %v1342, -inf
      %1344 = vmax.xlane.f32.xlu0 %v1343
      %v1345 = vpop.xlane.xlu0 %1344
      %v1346 = vsub.f32 %v1342, %v1345
      %v1347 = vmul.f32 %v1346, 1.442695
      %v1348 = vpow.pop %v1347
      %v1349 = vsel %vm912, %v1348, 0.0
      %1350 = vadd.xlane.f32.xlu0 %v1349
      %v1351 = vpop.xlane.xlu0 %1350
      %v1352 = vrcp.pop %v1351
      %v1353 = vmul.f32 %v1348, %v1352
      %v1354 = vpack.c.bf16 %v1353, %v1353
      %1355 = vrot.lane.b32.xlu0 %v911, 8
      %v1356 = vpop.permute.xlu0 %1355
      %v1358 = vsel %vm912, %v1354, 0
      %v1361 = vsel %vm952, %v1356, 0
      %1363 = vmatpush.bf16.msra.mxu0 0
      %1364 = vmatpush.bf16.msra.mxu0 0
      %1365 = vmatpush.bf16.msra.mxu0 0
      %1366 = vmatpush.bf16.msra.mxu0 0
      %1367 = vmatpush.bf16.msra.mxu0 0
      %1368 = vmatpush.bf16.msra.mxu0 0
      %1369 = vmatpush.bf16.msra.mxu0 0
      %1370 = vmatpush.bf16.msra.mxu0 %v1361
      %1371 = vmatmul.bf16.gmra.mxu0 %v1358
      %v1372 = vpop.f32.mrf.mxu0
      %v1373 = vadd.f32 0.0, %v1372
      %v1374 = vpop.f32.mrf.mxu0
      %1375 = vdwg.mxu0
      %1377 = vrot.lane.b32.xlu0 %v1025, 8
      %v1378 = vpop.permute.xlu0 %1377
      %1381 = vrot.lane.b32.xlu0 %v1083, 16
      %v1382 = vpop.permute.xlu0 %1381
      %1385 = vrot.lane.b32.xlu0 %v1141, 24
      %v1386 = vpop.permute.xlu0 %1385
      %1389 = vrot.lane.b32.xlu0 %v1199, 32
      %v1390 = vpop.permute.xlu0 %1389
      %1393 = vrot.lane.b32.xlu0 %v1257, 40
      %v1394 = vpop.permute.xlu0 %1393
      %1397 = vrot.lane.b32.xlu0 %v1315, 48
      %v1398 = vpop.permute.xlu0 %1397
      %1401 = vrot.lane.b32.xlu0 %v1373, 56
      %v1402 = vpop.permute.xlu0 %1401
      %v1404 = vsel %vm912, %v966, %v1378
      %vm1405 = vcmask 130048
      %v1406 = vsel %vm1405, %v1404, %v1382
      %vm1407 = vcmask 195584
      %v1408 = vsel %vm1407, %v1406, %v1386
      %vm1409 = vcmask 261120
      %v1410 = vsel %vm1409, %v1408, %v1390
      %vm1411 = vcmask 326656
      %v1412 = vsel %vm1411, %v1410, %v1394
      %vm1413 = vcmask 392192
      %v1414 = vsel %vm1413, %v1412, %v1398
      %vm1415 = vcmask 457728
      %v1416 = vsel %vm1415, %v1414, %v1402
      %v1417 = vpack.c.bf16 %v1416, %v1416
      %v1419 = vperm.slane %v824, 0
      %v1429 = vunpack.c.l.b16 %v816
      %v1430 = vunpack.c.l.b16 %v817
      %v1431 = vunpack.c.l.b16 %v818
      %v1432 = vunpack.c.l.b16 %v819
      %v1433 = vunpack.c.l.b16 %v820
      %v1434 = vunpack.c.l.b16 %v821
      %v1435 = vunpack.c.l.b16 %v822
      %v1436 = vunpack.c.l.b16 %v823
      %v1437 = vpack.c.b16 %v1430, %v1429
      %v1438 = vpack.c.b16 %v1432, %v1431
      %v1439 = vpack.c.b16 %v1434, %v1433
      %v1440 = vpack.c.b16 %v1436, %v1435
      %v1446 = vsel %vm853, %v1417, 0
      %1448 = vmatpush.bf16.msra.mxu0 0
      %1449 = vmatpush.bf16.msra.mxu0 0
      %1450 = vmatpush.bf16.msra.mxu0 0
      %1451 = vmatpush.bf16.msra.mxu0 0
      %1452 = vmatpush.bf16.msra.mxu0 %v1440
      %1453 = vmatpush.bf16.msra.mxu0 %v1439
      %1454 = vmatpush.bf16.msra.mxu0 %v1438
      %1455 = vmatpush.bf16.msra.mxu0 %v1437
      %1456 = vmatmul.bf16.gmra.mxu0 %v1446
      %v1457 = vpop.f32.mrf.mxu0
      %v1458 = vadd.f32 %v1419, %v1457
      %v1459 = vpop.f32.mrf.mxu0
      %1460 = vdwg.mxu0
      %v1461 = vadd.f32 %v795, %v1458
      %v1462 = vld [vmem:[%s9] sm:$0x1]
      %v1463 = vld [vmem:[%s10] sm:$0x1]
      %v1464 = vsel %vm853, %v1461, 0.0
      %1465 = vadd.xlane.f32.xlu0 %v1464
      %v1466 = vpop.xlane.xlu0 %1465
      %v1467 = vrcp.pop 64.0
      %v1468 = vmul.f32 64.0, %v1467
      %v1469 = vsub.f32 1.0, %v1468
      %v1470 = vmul.f32 %v1467, %v1469
      %v1471 = vadd.f32 %v1467, %v1470
      %vm1472 = vweird.f32 %v1467
      %v1473 = vsel %vm1472, %v1467, %v1471
      %v1474 = vmul.f32 %v1466, %v1473
      %v1475 = vsub.f32 %v1461, %v1474
      %v1476 = vmul.f32 %v1475, %v1475
      %v1477 = vsel %vm853, %v1476, 0.0
      %1478 = vadd.xlane.f32.xlu0 %v1477
      %v1479 = vpop.xlane.xlu0 %1478
      %v1480 = vmul.f32 %v1479, %v1473
      %v1481 = vadd.f32 %v1480, 1e-05
      %v1482 = vrsqrt.pop %v1481
      %v1483 = vmul.f32 %v1482, %v1481
      %v1484 = vmul.f32 %v1483, %v1482
      %v1485 = vmul.f32 0.5, %v1484
      %v1486 = vsub.f32 1.5, %v1485
      %v1487 = vmul.f32 %v1482, %v1486
      %vm1488 = vweird.f32 %v1481
      %vm1489 = vweird.f32 %v1482
      %vm1490 = vmor %vm1488, %vm1489
      %v1491 = vsel %vm1490, %v1482, %v1487
      %v1492 = vmul.f32 %v1475, %v1491
      %v1494 = vperm.slane %v1462, 0
      %v1496 = vmul.f32 %v1492, %v1494
      %v1498 = vperm.slane %v1463, 0
      %v1500 = vadd.f32 %v1496, %v1498
      %v1501 = vld [vmem:[%s11] sm:$0xf]
      %v1502 = vld [vmem:[%s11 + $0x4] sm:$0xf]
      %v1503 = vld [vmem:[%s11 + $0x8] sm:$0xf]
      %v1504 = vld [vmem:[%s11 + $0xc] sm:$0xf]
      %v1505 = vld [vmem:[%s11 + $0x10] sm:$0xf]
      %v1506 = vld [vmem:[%s11 + $0x14] sm:$0xf]
      %v1507 = vld [vmem:[%s11 + $0x18] sm:$0xf]
      %v1508 = vld [vmem:[%s11 + $0x1c] sm:$0xf]
      %v1509 = vld [vmem:[%s12] sm:$0x1]
      %v1510 = vld [vmem:[%s13] sm:$0xf]
      %v1511 = vld [vmem:[%s13 + $0x4] sm:$0xf]
      %v1512 = vld [vmem:[%s13 + $0x8] sm:$0xf]
      %v1513 = vld [vmem:[%s13 + $0xc] sm:$0xf]
      %v1514 = vld [vmem:[%s13 + $0x10] sm:$0xf]
      %v1515 = vld [vmem:[%s13 + $0x14] sm:$0xf]
      %v1516 = vld [vmem:[%s13 + $0x18] sm:$0xf]
      %v1517 = vld [vmem:[%s13 + $0x1c] sm:$0xf]
      %v1518 = vld [vmem:[%s14] sm:$0x1]
      %v1519 = vld [vmem:[%s15] sm:$0xf]
      %v1520 = vld [vmem:[%s15 + $0x4] sm:$0xf]
      %v1521 = vld [vmem:[%s15 + $0x8] sm:$0xf]
      %v1522 = vld [vmem:[%s15 + $0xc] sm:$0xf]
      %v1523 = vld [vmem:[%s15 + $0x10] sm:$0xf]
      %v1524 = vld [vmem:[%s15 + $0x14] sm:$0xf]
      %v1525 = vld [vmem:[%s15 + $0x18] sm:$0xf]
      %v1526 = vld [vmem:[%s15 + $0x1c] sm:$0xf]
      %v1527 = vld [vmem:[%s16] sm:$0x1]
      %v1528 = vpack.c.bf16 %v1500, %v1500
      %v1530 = vperm.slane %v1509, 0
      %v1540 = vunpack.c.l.b16 %v1501
      %v1541 = vunpack.c.l.b16 %v1502
      %v1542 = vunpack.c.l.b16 %v1503
      %v1543 = vunpack.c.l.b16 %v1504
      %v1544 = vunpack.c.l.b16 %v1505
      %v1545 = vunpack.c.l.b16 %v1506
      %v1546 = vunpack.c.l.b16 %v1507
      %v1547 = vunpack.c.l.b16 %v1508
      %v1548 = vpack.c.b16 %v1541, %v1540
      %v1549 = vpack.c.b16 %v1543, %v1542
      %v1550 = vpack.c.b16 %v1545, %v1544
      %v1551 = vpack.c.b16 %v1547, %v1546
      %v1557 = vsel %vm853, %v1528, 0
      %1559 = vmatpush.bf16.msra.mxu0 0
      %1560 = vmatpush.bf16.msra.mxu0 0
      %1561 = vmatpush.bf16.msra.mxu0 0
      %1562 = vmatpush.bf16.msra.mxu0 0
      %1563 = vmatpush.bf16.msra.mxu0 %v1551
      %1564 = vmatpush.bf16.msra.mxu0 %v1550
      %1565 = vmatpush.bf16.msra.mxu0 %v1549
      %1566 = vmatpush.bf16.msra.mxu0 %v1548
      %1567 = vmatmul.bf16.gmra.mxu0 %v1557
      %v1568 = vpop.f32.mrf.mxu0
      %v1569 = vadd.f32 %v1530, %v1568
      %v1570 = vpop.f32.mrf.mxu0
      %1571 = vdwg.mxu0
      %v1572 = vpack.c.bf16 %v796, %v796
      %v1574 = vperm.slane %v1518, 0
      %v1584 = vunpack.c.l.b16 %v1510
      %v1585 = vunpack.c.l.b16 %v1511
      %v1586 = vunpack.c.l.b16 %v1512
      %v1587 = vunpack.c.l.b16 %v1513
      %v1588 = vunpack.c.l.b16 %v1514
      %v1589 = vunpack.c.l.b16 %v1515
      %v1590 = vunpack.c.l.b16 %v1516
      %v1591 = vunpack.c.l.b16 %v1517
      %v1592 = vpack.c.b16 %v1585, %v1584
      %v1593 = vpack.c.b16 %v1587, %v1586
      %v1594 = vpack.c.b16 %v1589, %v1588
      %v1595 = vpack.c.b16 %v1591, %v1590
      %v1601 = vsel %vm853, %v1572, 0
      %1603 = vmatpush.bf16.msra.mxu0 0
      %1604 = vmatpush.bf16.msra.mxu0 0
      %1605 = vmatpush.bf16.msra.mxu0 0
      %1606 = vmatpush.bf16.msra.mxu0 0
      %1607 = vmatpush.bf16.msra.mxu0 %v1595
      %1608 = vmatpush.bf16.msra.mxu0 %v1594
      %1609 = vmatpush.bf16.msra.mxu0 %v1593
      %1610 = vmatpush.bf16.msra.mxu0 %v1592
      %1611 = vmatmul.bf16.gmra.mxu0 %v1601
      %v1612 = vpop.f32.mrf.mxu0
      %v1613 = vadd.f32 %v1574, %v1612
      %v1614 = vpop.f32.mrf.mxu0
      %1615 = vdwg.mxu0
      %v1616 = vpack.c.bf16 %v1569, %v1569
      %v1617 = vpack.c.bf16 %v1613, %v1613
      %v1619 = vsel %vm912, %v1616, 0
      %v1622 = vsel %vm912, %v1617, 0
      %1624 = vmatpush.bf16.xpose.msra.mxu0 0
      %1625 = vmatpush.bf16.xpose.msra.mxu0 0
      %1626 = vmatpush.bf16.xpose.msra.mxu0 0
      %1627 = vmatpush.bf16.xpose.msra.mxu0 0
      %1628 = vmatpush.bf16.xpose.msra.mxu0 0
      %1629 = vmatpush.bf16.xpose.msra.mxu0 0
      %1630 = vmatpush.bf16.xpose.msra.mxu0 0
      %1631 = vmatpush.bf16.xpose.msra.mxu0 %v1622
      %1632 = vmatmul.bf16.gmra.mxu0 %v1619
      %v1633 = vpop.f32.mrf.mxu0
      %v1634 = vadd.f32 0.0, %v1633
      %v1635 = vpop.f32.mrf.mxu0
      %1636 = vdwg.mxu0
      %v1637 = vmul.f32 %v1634, 0.35355338
      %v1638 = vsel %vm912, %v1637, -inf
      %1639 = vmax.xlane.f32.xlu0 %v1638
      %v1640 = vpop.xlane.xlu0 %1639
      %v1641 = vsub.f32 %v1637, %v1640
      %v1642 = vmul.f32 %v1641, 1.442695
      %v1643 = vpow.pop %v1642
      %v1644 = vsel %vm912, %v1643, 0.0
      %1645 = vadd.xlane.f32.xlu0 %v1644
      %v1646 = vpop.xlane.xlu0 %1645
      %v1647 = vrcp.pop %v1646
      %v1648 = vmul.f32 %v1643, %v1647
      %v1649 = vpack.c.bf16 %v1648, %v1648
      %1651 = vrot.lane.b32.xlu0 %v1617, 64
      %v1652 = vpop.permute.xlu0 %1651
      %v1654 = vsel %vm912, %v1649, 0
      %v1657 = vsel %vm952, %v1652, 0
      %1659 = vmatpush.bf16.msra.mxu0 0
      %1660 = vmatpush.bf16.msra.mxu0 0
      %1661 = vmatpush.bf16.msra.mxu0 0
      %1662 = vmatpush.bf16.msra.mxu0 0
      %1663 = vmatpush.bf16.msra.mxu0 0
      %1664 = vmatpush.bf16.msra.mxu0 0
      %1665 = vmatpush.bf16.msra.mxu0 0
      %1666 = vmatpush.bf16.msra.mxu0 %v1657
      %1667 = vmatmul.bf16.gmra.mxu0 %v1654
      %v1668 = vpop.f32.mrf.mxu0
      %v1669 = vadd.f32 0.0, %v1668
      %v1670 = vpop.f32.mrf.mxu0
      %1671 = vdwg.mxu0
      %1673 = vrot.lane.b32.xlu0 %v1616, 120
      %v1674 = vpop.permute.xlu0 %1673
      %1675 = vrot.lane.b32.xlu0 %v1617, 120
      %v1676 = vpop.permute.xlu0 %1675
      %v1678 = vsel %vm912, %v1674, 0
      %v1681 = vsel %vm912, %v1676, 0
      %1683 = vmatpush.bf16.xpose.msra.mxu0 0
      %1684 = vmatpush.bf16.xpose.msra.mxu0 0
      %1685 = vmatpush.bf16.xpose.msra.mxu0 0
      %1686 = vmatpush.bf16.xpose.msra.mxu0 0
      %1687 = vmatpush.bf16.xpose.msra.mxu0 0
      %1688 = vmatpush.bf16.xpose.msra.mxu0 0
      %1689 = vmatpush.bf16.xpose.msra.mxu0 0
      %1690 = vmatpush.bf16.xpose.msra.mxu0 %v1681
      %1691 = vmatmul.bf16.gmra.mxu0 %v1678
      %v1692 = vpop.f32.mrf.mxu0
      %v1693 = vadd.f32 0.0, %v1692
      %v1694 = vpop.f32.mrf.mxu0
      %1695 = vdwg.mxu0
      %v1696 = vmul.f32 %v1693, 0.35355338
      %v1697 = vsel %vm912, %v1696, -inf
      %1698 = vmax.xlane.f32.xlu0 %v1697
      %v1699 = vpop.xlane.xlu0 %1698
      %v1700 = vsub.f32 %v1696, %v1699
      %v1701 = vmul.f32 %v1700, 1.442695
      %v1702 = vpow.pop %v1701
      %v1703 = vsel %vm912, %v1702, 0.0
      %1704 = vadd.xlane.f32.xlu0 %v1703
      %v1705 = vpop.xlane.xlu0 %1704
      %v1706 = vrcp.pop %v1705
      %v1707 = vmul.f32 %v1702, %v1706
      %v1708 = vpack.c.bf16 %v1707, %v1707
      %1709 = vrot.lane.b32.xlu0 %v1617, 56
      %v1710 = vpop.permute.xlu0 %1709
      %v1712 = vsel %vm912, %v1708, 0
      %v1715 = vsel %vm952, %v1710, 0
      %1717 = vmatpush.bf16.msra.mxu0 0
      %1718 = vmatpush.bf16.msra.mxu0 0
      %1719 = vmatpush.bf16.msra.mxu0 0
      %1720 = vmatpush.bf16.msra.mxu0 0
      %1721 = vmatpush.bf16.msra.mxu0 0
      %1722 = vmatpush.bf16.msra.mxu0 0
      %1723 = vmatpush.bf16.msra.mxu0 0
      %1724 = vmatpush.bf16.msra.mxu0 %v1715
      %1725 = vmatmul.bf16.gmra.mxu0 %v1712
      %v1726 = vpop.f32.mrf.mxu0
      %v1727 = vadd.f32 0.0, %v1726
      %v1728 = vpop.f32.mrf.mxu0
      %1729 = vdwg.mxu0
      %1730 = vrot.lane.b32.xlu0 %v1616, 112
      %v1731 = vpop.permute.xlu0 %1730
      %1732 = vrot.lane.b32.xlu0 %v1617, 112
      %v1733 = vpop.permute.xlu0 %1732
      %v1735 = vsel %vm912, %v1731, 0
      %v1738 = vsel %vm912, %v1733, 0
      %1740 = vmatpush.bf16.xpose.msra.mxu0 0
      %1741 = vmatpush.bf16.xpose.msra.mxu0 0
      %1742 = vmatpush.bf16.xpose.msra.mxu0 0
      %1743 = vmatpush.bf16.xpose.msra.mxu0 0
      %1744 = vmatpush.bf16.xpose.msra.mxu0 0
      %1745 = vmatpush.bf16.xpose.msra.mxu0 0
      %1746 = vmatpush.bf16.xpose.msra.mxu0 0
      %1747 = vmatpush.bf16.xpose.msra.mxu0 %v1738
      %1748 = vmatmul.bf16.gmra.mxu0 %v1735
      %v1749 = vpop.f32.mrf.mxu0
      %v1750 = vadd.f32 0.0, %v1749
      %v1751 = vpop.f32.mrf.mxu0
      %1752 = vdwg.mxu0
      %v1753 = vmul.f32 %v1750, 0.35355338
      %v1754 = vsel %vm912, %v1753, -inf
      %1755 = vmax.xlane.f32.xlu0 %v1754
      %v1756 = vpop.xlane.xlu0 %1755
      %v1757 = vsub.f32 %v1753, %v1756
      %v1758 = vmul.f32 %v1757, 1.442695
      %v1759 = vpow.pop %v1758
      %v1760 = vsel %vm912, %v1759, 0.0
      %1761 = vadd.xlane.f32.xlu0 %v1760
      %v1762 = vpop.xlane.xlu0 %1761
      %v1763 = vrcp.pop %v1762
      %v1764 = vmul.f32 %v1759, %v1763
      %v1765 = vpack.c.bf16 %v1764, %v1764
      %1766 = vrot.lane.b32.xlu0 %v1617, 48
      %v1767 = vpop.permute.xlu0 %1766
      %v1769 = vsel %vm912, %v1765, 0
      %v1772 = vsel %vm952, %v1767, 0
      %1774 = vmatpush.bf16.msra.mxu0 0
      %1775 = vmatpush.bf16.msra.mxu0 0
      %1776 = vmatpush.bf16.msra.mxu0 0
      %1777 = vmatpush.bf16.msra.mxu0 0
      %1778 = vmatpush.bf16.msra.mxu0 0
      %1779 = vmatpush.bf16.msra.mxu0 0
      %1780 = vmatpush.bf16.msra.mxu0 0
      %1781 = vmatpush.bf16.msra.mxu0 %v1772
      %1782 = vmatmul.bf16.gmra.mxu0 %v1769
      %v1783 = vpop.f32.mrf.mxu0
      %v1784 = vadd.f32 0.0, %v1783
      %v1785 = vpop.f32.mrf.mxu0
      %1786 = vdwg.mxu0
      %1787 = vrot.lane.b32.xlu0 %v1616, 104
      %v1788 = vpop.permute.xlu0 %1787
      %1789 = vrot.lane.b32.xlu0 %v1617, 104
      %v1790 = vpop.permute.xlu0 %1789
      %v1792 = vsel %vm912, %v1788, 0
      %v1795 = vsel %vm912, %v1790, 0
      %1797 = vmatpush.bf16.xpose.msra.mxu0 0
      %1798 = vmatpush.bf16.xpose.msra.mxu0 0
      %1799 = vmatpush.bf16.xpose.msra.mxu0 0
      %1800 = vmatpush.bf16.xpose.msra.mxu0 0
      %1801 = vmatpush.bf16.xpose.msra.mxu0 0
      %1802 = vmatpush.bf16.xpose.msra.mxu0 0
      %1803 = vmatpush.bf16.xpose.msra.mxu0 0
      %1804 = vmatpush.bf16.xpose.msra.mxu0 %v1795
      %1805 = vmatmul.bf16.gmra.mxu0 %v1792
      %v1806 = vpop.f32.mrf.mxu0
      %v1807 = vadd.f32 0.0, %v1806
      %v1808 = vpop.f32.mrf.mxu0
      %1809 = vdwg.mxu0
      %v1810 = vmul.f32 %v1807, 0.35355338
      %v1811 = vsel %vm912, %v1810, -inf
      %1812 = vmax.xlane.f32.xlu0 %v1811
      %v1813 = vpop.xlane.xlu0 %1812
      %v1814 = vsub.f32 %v1810, %v1813
      %v1815 = vmul.f32 %v1814, 1.442695
      %v1816 = vpow.pop %v1815
      %v1817 = vsel %vm912, %v1816, 0.0
      %1818 = vadd.xlane.f32.xlu0 %v1817
      %v1819 = vpop.xlane.xlu0 %1818
      %v1820 = vrcp.pop %v1819
      %v1821 = vmul.f32 %v1816, %v1820
      %v1822 = vpack.c.bf16 %v1821, %v1821
      %1823 = vrot.lane.b32.xlu0 %v1617, 40
      %v1824 = vpop.permute.xlu0 %1823
      %v1826 = vsel %vm912, %v1822, 0
      %v1829 = vsel %vm952, %v1824, 0
      %1831 = vmatpush.bf16.msra.mxu0 0
      %1832 = vmatpush.bf16.msra.mxu0 0
      %1833 = vmatpush.bf16.msra.mxu0 0
      %1834 = vmatpush.bf16.msra.mxu0 0
      %1835 = vmatpush.bf16.msra.mxu0 0
      %1836 = vmatpush.bf16.msra.mxu0 0
      %1837 = vmatpush.bf16.msra.mxu0 0
      %1838 = vmatpush.bf16.msra.mxu0 %v1829
      %1839 = vmatmul.bf16.gmra.mxu0 %v1826
      %v1840 = vpop.f32.mrf.mxu0
      %v1841 = vadd.f32 0.0, %v1840
      %v1842 = vpop.f32.mrf.mxu0
      %1843 = vdwg.mxu0
      %1844 = vrot.lane.b32.xlu0 %v1616, 96
      %v1845 = vpop.permute.xlu0 %1844
      %1846 = vrot.lane.b32.xlu0 %v1617, 96
      %v1847 = vpop.permute.xlu0 %1846
      %v1849 = vsel %vm912, %v1845, 0
      %v1852 = vsel %vm912, %v1847, 0
      %1854 = vmatpush.bf16.xpose.msra.mxu0 0
      %1855 = vmatpush.bf16.xpose.msra.mxu0 0
      %1856 = vmatpush.bf16.xpose.msra.mxu0 0
      %1857 = vmatpush.bf16.xpose.msra.mxu0 0
      %1858 = vmatpush.bf16.xpose.msra.mxu0 0
      %1859 = vmatpush.bf16.xpose.msra.mxu0 0
      %1860 = vmatpush.bf16.xpose.msra.mxu0 0
      %1861 = vmatpush.bf16.xpose.msra.mxu0 %v1852
      %1862 = vmatmul.bf16.gmra.mxu0 %v1849
      %v1863 = vpop.f32.mrf.mxu0
      %v1864 = vadd.f32 0.0, %v1863
      %v1865 = vpop.f32.mrf.mxu0
      %1866 = vdwg.mxu0
      %v1867 = vmul.f32 %v1864, 0.35355338
      %v1868 = vsel %vm912, %v1867, -inf
      %1869 = vmax.xlane.f32.xlu0 %v1868
      %v1870 = vpop.xlane.xlu0 %1869
      %v1871 = vsub.f32 %v1867, %v1870
      %v1872 = vmul.f32 %v1871, 1.442695
      %v1873 = vpow.pop %v1872
      %v1874 = vsel %vm912, %v1873, 0.0
      %1875 = vadd.xlane.f32.xlu0 %v1874
      %v1876 = vpop.xlane.xlu0 %1875
      %v1877 = vrcp.pop %v1876
      %v1878 = vmul.f32 %v1873, %v1877
      %v1879 = vpack.c.bf16 %v1878, %v1878
      %1880 = vrot.lane.b32.xlu0 %v1617, 32
      %v1881 = vpop.permute.xlu0 %1880
      %v1883 = vsel %vm912, %v1879, 0
      %v1886 = vsel %vm952, %v1881, 0
      %1888 = vmatpush.bf16.msra.mxu0 0
      %1889 = vmatpush.bf16.msra.mxu0 0
      %1890 = vmatpush.bf16.msra.mxu0 0
      %1891 = vmatpush.bf16.msra.mxu0 0
      %1892 = vmatpush.bf16.msra.mxu0 0
      %1893 = vmatpush.bf16.msra.mxu0 0
      %1894 = vmatpush.bf16.msra.mxu0 0
      %1895 = vmatpush.bf16.msra.mxu0 %v1886
      %1896 = vmatmul.bf16.gmra.mxu0 %v1883
      %v1897 = vpop.f32.mrf.mxu0
      %v1898 = vadd.f32 0.0, %v1897
      %v1899 = vpop.f32.mrf.mxu0
      %1900 = vdwg.mxu0
      %1901 = vrot.lane.b32.xlu0 %v1616, 88
      %v1902 = vpop.permute.xlu0 %1901
      %1903 = vrot.lane.b32.xlu0 %v1617, 88
      %v1904 = vpop.permute.xlu0 %1903
      %v1906 = vsel %vm912, %v1902, 0
      %v1909 = vsel %vm912, %v1904, 0
      %1911 = vmatpush.bf16.xpose.msra.mxu0 0
      %1912 = vmatpush.bf16.xpose.msra.mxu0 0
      %1913 = vmatpush.bf16.xpose.msra.mxu0 0
      %1914 = vmatpush.bf16.xpose.msra.mxu0 0
      %1915 = vmatpush.bf16.xpose.msra.mxu0 0
      %1916 = vmatpush.bf16.xpose.msra.mxu0 0
      %1917 = vmatpush.bf16.xpose.msra.mxu0 0
      %1918 = vmatpush.bf16.xpose.msra.mxu0 %v1909
      %1919 = vmatmul.bf16.gmra.mxu0 %v1906
      %v1920 = vpop.f32.mrf.mxu0
      %v1921 = vadd.f32 0.0, %v1920
      %v1922 = vpop.f32.mrf.mxu0
      %1923 = vdwg.mxu0
      %v1924 = vmul.f32 %v1921, 0.35355338
      %v1925 = vsel %vm912, %v1924, -inf
      %1926 = vmax.xlane.f32.xlu0 %v1925
      %v1927 = vpop.xlane.xlu0 %1926
      %v1928 = vsub.f32 %v1924, %v1927
      %v1929 = vmul.f32 %v1928, 1.442695
      %v1930 = vpow.pop %v1929
      %v1931 = vsel %vm912, %v1930, 0.0
      %1932 = vadd.xlane.f32.xlu0 %v1931
      %v1933 = vpop.xlane.xlu0 %1932
      %v1934 = vrcp.pop %v1933
      %v1935 = vmul.f32 %v1930, %v1934
      %v1936 = vpack.c.bf16 %v1935, %v1935
      %1937 = vrot.lane.b32.xlu0 %v1617, 24
      %v1938 = vpop.permute.xlu0 %1937
      %v1940 = vsel %vm912, %v1936, 0
      %v1943 = vsel %vm952, %v1938, 0
      %1945 = vmatpush.bf16.msra.mxu0 0
      %1946 = vmatpush.bf16.msra.mxu0 0
      %1947 = vmatpush.bf16.msra.mxu0 0
      %1948 = vmatpush.bf16.msra.mxu0 0
      %1949 = vmatpush.bf16.msra.mxu0 0
      %1950 = vmatpush.bf16.msra.mxu0 0
      %1951 = vmatpush.bf16.msra.mxu0 0
      %1952 = vmatpush.bf16.msra.mxu0 %v1943
      %1953 = vmatmul.bf16.gmra.mxu0 %v1940
      %v1954 = vpop.f32.mrf.mxu0
      %v1955 = vadd.f32 0.0, %v1954
      %v1956 = vpop.f32.mrf.mxu0
      %1957 = vdwg.mxu0
      %1958 = vrot.lane.b32.xlu0 %v1616, 80
      %v1959 = vpop.permute.xlu0 %1958
      %1960 = vrot.lane.b32.xlu0 %v1617, 80
      %v1961 = vpop.permute.xlu0 %1960
      %v1963 = vsel %vm912, %v1959, 0
      %v1966 = vsel %vm912, %v1961, 0
      %1968 = vmatpush.bf16.xpose.msra.mxu0 0
      %1969 = vmatpush.bf16.xpose.msra.mxu0 0
      %1970 = vmatpush.bf16.xpose.msra.mxu0 0
      %1971 = vmatpush.bf16.xpose.msra.mxu0 0
      %1972 = vmatpush.bf16.xpose.msra.mxu0 0
      %1973 = vmatpush.bf16.xpose.msra.mxu0 0
      %1974 = vmatpush.bf16.xpose.msra.mxu0 0
      %1975 = vmatpush.bf16.xpose.msra.mxu0 %v1966
      %1976 = vmatmul.bf16.gmra.mxu0 %v1963
      %v1977 = vpop.f32.mrf.mxu0
      %v1978 = vadd.f32 0.0, %v1977
      %v1979 = vpop.f32.mrf.mxu0
      %1980 = vdwg.mxu0
      %v1981 = vmul.f32 %v1978, 0.35355338
      %v1982 = vsel %vm912, %v1981, -inf
      %1983 = vmax.xlane.f32.xlu0 %v1982
      %v1984 = vpop.xlane.xlu0 %1983
      %v1985 = vsub.f32 %v1981, %v1984
      %v1986 = vmul.f32 %v1985, 1.442695
      %v1987 = vpow.pop %v1986
      %v1988 = vsel %vm912, %v1987, 0.0
      %1989 = vadd.xlane.f32.xlu0 %v1988
      %v1990 = vpop.xlane.xlu0 %1989
      %v1991 = vrcp.pop %v1990
      %v1992 = vmul.f32 %v1987, %v1991
      %v1993 = vpack.c.bf16 %v1992, %v1992
      %1994 = vrot.lane.b32.xlu0 %v1617, 16
      %v1995 = vpop.permute.xlu0 %1994
      %v1997 = vsel %vm912, %v1993, 0
      %v2000 = vsel %vm952, %v1995, 0
      %2002 = vmatpush.bf16.msra.mxu0 0
      %2003 = vmatpush.bf16.msra.mxu0 0
      %2004 = vmatpush.bf16.msra.mxu0 0
      %2005 = vmatpush.bf16.msra.mxu0 0
      %2006 = vmatpush.bf16.msra.mxu0 0
      %2007 = vmatpush.bf16.msra.mxu0 0
      %2008 = vmatpush.bf16.msra.mxu0 0
      %2009 = vmatpush.bf16.msra.mxu0 %v2000
      %2010 = vmatmul.bf16.gmra.mxu0 %v1997
      %v2011 = vpop.f32.mrf.mxu0
      %v2012 = vadd.f32 0.0, %v2011
      %v2013 = vpop.f32.mrf.mxu0
      %2014 = vdwg.mxu0
      %2015 = vrot.lane.b32.xlu0 %v1616, 72
      %v2016 = vpop.permute.xlu0 %2015
      %2017 = vrot.lane.b32.xlu0 %v1617, 72
      %v2018 = vpop.permute.xlu0 %2017
      %v2020 = vsel %vm912, %v2016, 0
      %v2023 = vsel %vm912, %v2018, 0
      %2025 = vmatpush.bf16.xpose.msra.mxu0 0
      %2026 = vmatpush.bf16.xpose.msra.mxu0 0
      %2027 = vmatpush.bf16.xpose.msra.mxu0 0
      %2028 = vmatpush.bf16.xpose.msra.mxu0 0
      %2029 = vmatpush.bf16.xpose.msra.mxu0 0
      %2030 = vmatpush.bf16.xpose.msra.mxu0 0
      %2031 = vmatpush.bf16.xpose.msra.mxu0 0
      %2032 = vmatpush.bf16.xpose.msra.mxu0 %v2023
      %2033 = vmatmul.bf16.gmra.mxu0 %v2020
      %v2034 = vpop.f32.mrf.mxu0
      %v2035 = vadd.f32 0.0, %v2034
      %v2036 = vpop.f32.mrf.mxu0
      %2037 = vdwg.mxu0
      %v2038 = vmul.f32 %v2035, 0.35355338
      %v2039 = vsel %vm912, %v2038, -inf
      %2040 = vmax.xlane.f32.xlu0 %v2039
      %v2041 = vpop.xlane.xlu0 %2040
      %v2042 = vsub.f32 %v2038, %v2041
      %v2043 = vmul.f32 %v2042, 1.442695
      %v2044 = vpow.pop %v2043
      %v2045 = vsel %vm912, %v2044, 0.0
      %2046 = vadd.xlane.f32.xlu0 %v2045
      %v2047 = vpop.xlane.xlu0 %2046
      %v2048 = vrcp.pop %v2047
      %v2049 = vmul.f32 %v2044, %v2048
      %v2050 = vpack.c.bf16 %v2049, %v2049
      %2051 = vrot.lane.b32.xlu0 %v1617, 8
      %v2052 = vpop.permute.xlu0 %2051
      %v2054 = vsel %vm912, %v2050, 0
      %v2057 = vsel %vm952, %v2052, 0
      %2059 = vmatpush.bf16.msra.mxu0 0
      %2060 = vmatpush.bf16.msra.mxu0 0
      %2061 = vmatpush.bf16.msra.mxu0 0
      %2062 = vmatpush.bf16.msra.mxu0 0
      %2063 = vmatpush.bf16.msra.mxu0 0
      %2064 = vmatpush.bf16.msra.mxu0 0
      %2065 = vmatpush.bf16.msra.mxu0 0
      %2066 = vmatpush.bf16.msra.mxu0 %v2057
      %2067 = vmatmul.bf16.gmra.mxu0 %v2054
      %v2068 = vpop.f32.mrf.mxu0
      %v2069 = vadd.f32 0.0, %v2068
      %v2070 = vpop.f32.mrf.mxu0
      %2071 = vdwg.mxu0
      %2073 = vrot.lane.b32.xlu0 %v1727, 8
      %v2074 = vpop.permute.xlu0 %2073
      %2077 = vrot.lane.b32.xlu0 %v1784, 16
      %v2078 = vpop.permute.xlu0 %2077
      %2081 = vrot.lane.b32.xlu0 %v1841, 24
      %v2082 = vpop.permute.xlu0 %2081
      %2085 = vrot.lane.b32.xlu0 %v1898, 32
      %v2086 = vpop.permute.xlu0 %2085
      %2089 = vrot.lane.b32.xlu0 %v1955, 40
      %v2090 = vpop.permute.xlu0 %2089
      %2093 = vrot.lane.b32.xlu0 %v2012, 48
      %v2094 = vpop.permute.xlu0 %2093
      %2097 = vrot.lane.b32.xlu0 %v2069, 56
      %v2098 = vpop.permute.xlu0 %2097
      %v2100 = vsel %vm912, %v1669, %v2074
      %v2101 = vsel %vm1405, %v2100, %v2078
      %v2102 = vsel %vm1407, %v2101, %v2082
      %v2103 = vsel %vm1409, %v2102, %v2086
      %v2104 = vsel %vm1411, %v2103, %v2090
      %v2105 = vsel %vm1413, %v2104, %v2094
      %v2106 = vsel %vm1415, %v2105, %v2098
      %v2107 = vpack.c.bf16 %v2106, %v2106
      %v2109 = vperm.slane %v1527, 0
      %v2119 = vunpack.c.l.b16 %v1519
      %v2120 = vunpack.c.l.b16 %v1520
      %v2121 = vunpack.c.l.b16 %v1521
      %v2122 = vunpack.c.l.b16 %v1522
      %v2123 = vunpack.c.l.b16 %v1523
      %v2124 = vunpack.c.l.b16 %v1524
      %v2125 = vunpack.c.l.b16 %v1525
      %v2126 = vunpack.c.l.b16 %v1526
      %v2127 = vpack.c.b16 %v2120, %v2119
      %v2128 = vpack.c.b16 %v2122, %v2121
      %v2129 = vpack.c.b16 %v2124, %v2123
      %v2130 = vpack.c.b16 %v2126, %v2125
      %v2136 = vsel %vm853, %v2107, 0
      %2138 = vmatpush.bf16.msra.mxu0 0
      %2139 = vmatpush.bf16.msra.mxu0 0
      %2140 = vmatpush.bf16.msra.mxu0 0
      %2141 = vmatpush.bf16.msra.mxu0 0
      %2142 = vmatpush.bf16.msra.mxu0 %v2130
      %2143 = vmatpush.bf16.msra.mxu0 %v2129
      %2144 = vmatpush.bf16.msra.mxu0 %v2128
      %2145 = vmatpush.bf16.msra.mxu0 %v2127
      %2146 = vmatmul.bf16.gmra.mxu0 %v2136
      %v2147 = vpop.f32.mrf.mxu0
      %v2148 = vadd.f32 %v2109, %v2147
      %v2149 = vpop.f32.mrf.mxu0
      %2150 = vdwg.mxu0
      %v2151 = vadd.f32 %v1500, %v2148
      %v2152 = vld [vmem:[%s17] sm:$0x1]
      %v2153 = vld [vmem:[%s18] sm:$0x1]
      %v2154 = vsel %vm853, %v2151, 0.0
      %2155 = vadd.xlane.f32.xlu0 %v2154
      %v2156 = vpop.xlane.xlu0 %2155
      %v2157 = vmul.f32 %v2156, %v1473
      %v2158 = vsub.f32 %v2151, %v2157
      %v2159 = vmul.f32 %v2158, %v2158
      %v2160 = vsel %vm853, %v2159, 0.0
      %2161 = vadd.xlane.f32.xlu0 %v2160
      %v2162 = vpop.xlane.xlu0 %2161
      %v2163 = vmul.f32 %v2162, %v1473
      %v2164 = vadd.f32 %v2163, 1e-05
      %v2165 = vrsqrt.pop %v2164
      %v2166 = vmul.f32 %v2165, %v2164
      %v2167 = vmul.f32 %v2166, %v2165
      %v2168 = vmul.f32 0.5, %v2167
      %v2169 = vsub.f32 1.5, %v2168
      %v2170 = vmul.f32 %v2165, %v2169
      %vm2171 = vweird.f32 %v2164
      %vm2172 = vweird.f32 %v2165
      %vm2173 = vmor %vm2171, %vm2172
      %v2174 = vsel %vm2173, %v2165, %v2170
      %v2175 = vmul.f32 %v2158, %v2174
      %v2177 = vperm.slane %v2152, 0
      %v2179 = vmul.f32 %v2175, %v2177
      %v2181 = vperm.slane %v2153, 0
      %v2183 = vadd.f32 %v2179, %v2181
      %v2184 = vpack.c.bf16 %v2183, %v2183
      %v2185 = vld [vmem:[%s19] sm:$0xff]
      %v2186 = vld [vmem:[%s19 + $0x8] sm:$0xff]
      %v2187 = vld [vmem:[%s19 + $0x10] sm:$0xff]
      %v2188 = vld [vmem:[%s19 + $0x18] sm:$0xff]
      %v2189 = vld [vmem:[%s19 + $0x20] sm:$0xff]
      %v2190 = vld [vmem:[%s19 + $0x28] sm:$0xff]
      %v2191 = vld [vmem:[%s19 + $0x30] sm:$0xff]
      %v2192 = vld [vmem:[%s19 + $0x38] sm:$0xff]
      %v2193 = vld [vmem:[%s19 + $0x40] sm:$0xff]
      %v2194 = vld [vmem:[%s19 + $0x48] sm:$0xff]
      %v2195 = vld [vmem:[%s19 + $0x50] sm:$0xff]
      %v2196 = vld [vmem:[%s19 + $0x58] sm:$0xff]
      %v2197 = vld [vmem:[%s19 + $0x60] sm:$0xff]
      %v2198 = vld [vmem:[%s19 + $0x68] sm:$0xff]
      %v2199 = vld [vmem:[%s19 + $0x70] sm:$0xff]
      %v2200 = vld [vmem:[%s19 + $0x78] sm:$0xff]
      %v2201 = vld [vmem:[%s19 + $0x80] sm:$0xff]
      %v2202 = vld [vmem:[%s19 + $0x88] sm:$0xff]
      %v2203 = vld [vmem:[%s19 + $0x90] sm:$0xff]
      %v2204 = vld [vmem:[%s19 + $0x98] sm:$0xff]
      %v2205 = vld [vmem:[%s19 + $0xa0] sm:$0xff]
      %v2206 = vld [vmem:[%s19 + $0xa8] sm:$0xff]
      %v2207 = vld [vmem:[%s19 + $0xb0] sm:$0xff]
      %v2208 = vld [vmem:[%s19 + $0xb8] sm:$0xff]
      %v2209 = vld [vmem:[%s19 + $0xc0] sm:$0xff]
      %v2210 = vld [vmem:[%s19 + $0xc8] sm:$0xff]
      %v2211 = vld [vmem:[%s19 + $0xd0] sm:$0xff]
      %v2212 = vld [vmem:[%s19 + $0xd8] sm:$0xff]
      %v2213 = vld [vmem:[%s19 + $0xe0] sm:$0xff]
      %v2214 = vld [vmem:[%s19 + $0xe8] sm:$0xff]
      %v2215 = vld [vmem:[%s19 + $0xf0] sm:$0xff]
      %v2216 = vld [vmem:[%s19 + $0xf8] sm:$0xff]
      %v2217 = vld [vmem:[%s19 + $0x100] sm:$0xff]
      %v2218 = vld [vmem:[%s19 + $0x108] sm:$0xff]
      %v2219 = vld [vmem:[%s19 + $0x110] sm:$0xff]
      %v2220 = vld [vmem:[%s19 + $0x118] sm:$0xff]
      %v2221 = vld [vmem:[%s19 + $0x120] sm:$0xff]
      %v2222 = vld [vmem:[%s19 + $0x128] sm:$0xff]
      %v2223 = vld [vmem:[%s19 + $0x130] sm:$0xff]
      %v2224 = vld [vmem:[%s19 + $0x138] sm:$0xff]
      %v2225 = vld [vmem:[%s19 + $0x140] sm:$0xff]
      %v2226 = vld [vmem:[%s19 + $0x148] sm:$0xff]
      %v2227 = vld [vmem:[%s19 + $0x150] sm:$0xff]
      %v2228 = vld [vmem:[%s19 + $0x158] sm:$0xff]
      %v2229 = vld [vmem:[%s19 + $0x160] sm:$0xff]
      %v2230 = vld [vmem:[%s19 + $0x168] sm:$0xff]
      %v2231 = vld [vmem:[%s19 + $0x170] sm:$0xff]
      %v2232 = vld [vmem:[%s19 + $0x178] sm:$0xff]
      %v2233 = vld [vmem:[%s19 + $0x180] sm:$0xff]
      %v2234 = vld [vmem:[%s19 + $0x188] sm:$0xff]
      %v2235 = vld [vmem:[%s19 + $0x190] sm:$0xff]
      %v2236 = vld [vmem:[%s19 + $0x198] sm:$0xff]
      %v2237 = vld [vmem:[%s19 + $0x1a0] sm:$0xff]
      %v2238 = vld [vmem:[%s19 + $0x1a8] sm:$0xff]
      %v2239 = vld [vmem:[%s19 + $0x1b0] sm:$0xff]
      %v2240 = vld [vmem:[%s19 + $0x1b8] sm:$0xff]
      %v2241 = vld [vmem:[%s19 + $0x1c0] sm:$0xff]
      %v2242 = vld [vmem:[%s19 + $0x1c8] sm:$0xff]
      %v2243 = vld [vmem:[%s19 + $0x1d0] sm:$0xff]
      %v2244 = vld [vmem:[%s19 + $0x1d8] sm:$0xff]
      %v2245 = vld [vmem:[%s19 + $0x1e0] sm:$0xff]
      %v2246 = vld [vmem:[%s19 + $0x1e8] sm:$0xff]
      %v2247 = vld [vmem:[%s19 + $0x1f0] sm:$0xff]
      %v2248 = vld [vmem:[%s19 + $0x1f8] sm:$0xff]
      %v2249 = vld [vmem:[%s20] sm:$0xff]
      %v2250 = vld [vmem:[%s20 + $0x8] sm:$0xff]
      %v2253 = vperm.slane %v2249, 0
      %v2254 = vperm.slane %v2249, 1
      %v2255 = vperm.slane %v2249, 2
      %v2256 = vperm.slane %v2249, 3
      %v2257 = vperm.slane %v2249, 4
      %v2258 = vperm.slane %v2249, 5
      %v2259 = vperm.slane %v2249, 6
      %v2260 = vperm.slane %v2249, 7
      %v2261 = vperm.slane %v2250, 0
      %v2262 = vperm.slane %v2250, 1
      %v2263 = vperm.slane %v2250, 2
      %v2264 = vperm.slane %v2250, 3
      %v2265 = vperm.slane %v2250, 4
      %v2266 = vperm.slane %v2250, 5
      %v2267 = vperm.slane %v2250, 6
      %v2268 = vperm.slane %v2250, 7
      %v2349 = vunpack.c.l.b16 %v2185
      %v2350 = vunpack.c.h.b16 %v2185
      %v2351 = vunpack.c.l.b16 %v2186
      %v2352 = vunpack.c.h.b16 %v2186
      %v2353 = vunpack.c.l.b16 %v2187
      %v2354 = vunpack.c.h.b16 %v2187
      %v2355 = vunpack.c.l.b16 %v2188
      %v2356 = vunpack.c.h.b16 %v2188
      %v2357 = vunpack.c.l.b16 %v2189
      %v2358 = vunpack.c.h.b16 %v2189
      %v2359 = vunpack.c.l.b16 %v2190
      %v2360 = vunpack.c.h.b16 %v2190
      %v2361 = vunpack.c.l.b16 %v2191
      %v2362 = vunpack.c.h.b16 %v2191
      %v2363 = vunpack.c.l.b16 %v2192
      %v2364 = vunpack.c.h.b16 %v2192
      %v2365 = vunpack.c.l.b16 %v2193
      %v2366 = vunpack.c.h.b16 %v2193
      %v2367 = vunpack.c.l.b16 %v2194
      %v2368 = vunpack.c.h.b16 %v2194
      %v2369 = vunpack.c.l.b16 %v2195
      %v2370 = vunpack.c.h.b16 %v2195
      %v2371 = vunpack.c.l.b16 %v2196
      %v2372 = vunpack.c.h.b16 %v2196
      %v2373 = vunpack.c.l.b16 %v2197
      %v2374 = vunpack.c.h.b16 %v2197
      %v2375 = vunpack.c.l.b16 %v2198
      %v2376 = vunpack.c.h.b16 %v2198
      %v2377 = vunpack.c.l.b16 %v2199
      %v2378 = vunpack.c.h.b16 %v2199
      %v2379 = vunpack.c.l.b16 %v2200
      %v2380 = vunpack.c.h.b16 %v2200
      %v2381 = vunpack.c.l.b16 %v2201
      %v2382 = vunpack.c.h.b16 %v2201
      %v2383 = vunpack.c.l.b16 %v2202
      %v2384 = vunpack.c.h.b16 %v2202
      %v2385 = vunpack.c.l.b16 %v2203
      %v2386 = vunpack.c.h.b16 %v2203
      %v2387 = vunpack.c.l.b16 %v2204
      %v2388 = vunpack.c.h.b16 %v2204
      %v2389 = vunpack.c.l.b16 %v2205
      %v2390 = vunpack.c.h.b16 %v2205
      %v2391 = vunpack.c.l.b16 %v2206
      %v2392 = vunpack.c.h.b16 %v2206
      %v2393 = vunpack.c.l.b16 %v2207
      %v2394 = vunpack.c.h.b16 %v2207
      %v2395 = vunpack.c.l.b16 %v2208
      %v2396 = vunpack.c.h.b16 %v2208
      %v2397 = vunpack.c.l.b16 %v2209
      %v2398 = vunpack.c.h.b16 %v2209
      %v2399 = vunpack.c.l.b16 %v2210
      %v2400 = vunpack.c.h.b16 %v2210
      %v2401 = vunpack.c.l.b16 %v2211
      %v2402 = vunpack.c.h.b16 %v2211
      %v2403 = vunpack.c.l.b16 %v2212
      %v2404 = vunpack.c.h.b16 %v2212
      %v2405 = vunpack.c.l.b16 %v2213
      %v2406 = vunpack.c.h.b16 %v2213
      %v2407 = vunpack.c.l.b16 %v2214
      %v2408 = vunpack.c.h.b16 %v2214
      %v2409 = vunpack.c.l.b16 %v2215
      %v2410 = vunpack.c.h.b16 %v2215
      %v2411 = vunpack.c.l.b16 %v2216
      %v2412 = vunpack.c.h.b16 %v2216
      %v2413 = vunpack.c.l.b16 %v2217
      %v2414 = vunpack.c.h.b16 %v2217
      %v2415 = vunpack.c.l.b16 %v2218
      %v2416 = vunpack.c.h.b16 %v2218
      %v2417 = vunpack.c.l.b16 %v2219
      %v2418 = vunpack.c.h.b16 %v2219
      %v2419 = vunpack.c.l.b16 %v2220
      %v2420 = vunpack.c.h.b16 %v2220
      %v2421 = vunpack.c.l.b16 %v2221
      %v2422 = vunpack.c.h.b16 %v2221
      %v2423 = vunpack.c.l.b16 %v2222
      %v2424 = vunpack.c.h.b16 %v2222
      %v2425 = vunpack.c.l.b16 %v2223
      %v2426 = vunpack.c.h.b16 %v2223
      %v2427 = vunpack.c.l.b16 %v2224
      %v2428 = vunpack.c.h.b16 %v2224
      %v2429 = vunpack.c.l.b16 %v2225
      %v2430 = vunpack.c.h.b16 %v2225
      %v2431 = vunpack.c.l.b16 %v2226
      %v2432 = vunpack.c.h.b16 %v2226
      %v2433 = vunpack.c.l.b16 %v2227
      %v2434 = vunpack.c.h.b16 %v2227
      %v2435 = vunpack.c.l.b16 %v2228
      %v2436 = vunpack.c.h.b16 %v2228
      %v2437 = vunpack.c.l.b16 %v2229
      %v2438 = vunpack.c.h.b16 %v2229
      %v2439 = vunpack.c.l.b16 %v2230
      %v2440 = vunpack.c.h.b16 %v2230
      %v2441 = vunpack.c.l.b16 %v2231
      %v2442 = vunpack.c.h.b16 %v2231
      %v2443 = vunpack.c.l.b16 %v2232
      %v2444 = vunpack.c.h.b16 %v2232
      %v2445 = vunpack.c.l.b16 %v2233
      %v2446 = vunpack.c.h.b16 %v2233
      %v2447 = vunpack.c.l.b16 %v2234
      %v2448 = vunpack.c.h.b16 %v2234
      %v2449 = vunpack.c.l.b16 %v2235
      %v2450 = vunpack.c.h.b16 %v2235
      %v2451 = vunpack.c.l.b16 %v2236
      %v2452 = vunpack.c.h.b16 %v2236
      %v2453 = vunpack.c.l.b16 %v2237
      %v2454 = vunpack.c.h.b16 %v2237
      %v2455 = vunpack.c.l.b16 %v2238
      %v2456 = vunpack.c.h.b16 %v2238
      %v2457 = vunpack.c.l.b16 %v2239
      %v2458 = vunpack.c.h.b16 %v2239
      %v2459 = vunpack.c.l.b16 %v2240
      %v2460 = vunpack.c.h.b16 %v2240
      %v2461 = vunpack.c.l.b16 %v2241
      %v2462 = vunpack.c.h.b16 %v2241
      %v2463 = vunpack.c.l.b16 %v2242
      %v2464 = vunpack.c.h.b16 %v2242
      %v2465 = vunpack.c.l.b16 %v2243
      %v2466 = vunpack.c.h.b16 %v2243
      %v2467 = vunpack.c.l.b16 %v2244
      %v2468 = vunpack.c.h.b16 %v2244
      %v2469 = vunpack.c.l.b16 %v2245
      %v2470 = vunpack.c.h.b16 %v2245
      %v2471 = vunpack.c.l.b16 %v2246
      %v2472 = vunpack.c.h.b16 %v2246
      %v2473 = vunpack.c.l.b16 %v2247
      %v2474 = vunpack.c.h.b16 %v2247
      %v2475 = vunpack.c.l.b16 %v2248
      %v2476 = vunpack.c.h.b16 %v2248
      %v2477 = vpack.c.b16 %v2365, %v2349
      %v2478 = vpack.c.b16 %v2366, %v2350
      %v2479 = vpack.c.b16 %v2367, %v2351
      %v2480 = vpack.c.b16 %v2368, %v2352
      %v2481 = vpack.c.b16 %v2369, %v2353
      %v2482 = vpack.c.b16 %v2370, %v2354
      %v2483 = vpack.c.b16 %v2371, %v2355
      %v2484 = vpack.c.b16 %v2372, %v2356
      %v2485 = vpack.c.b16 %v2373, %v2357
      %v2486 = vpack.c.b16 %v2374, %v2358
      %v2487 = vpack.c.b16 %v2375, %v2359
      %v2488 = vpack.c.b16 %v2376, %v2360
      %v2489 = vpack.c.b16 %v2377, %v2361
      %v2490 = vpack.c.b16 %v2378, %v2362
      %v2491 = vpack.c.b16 %v2379, %v2363
      %v2492 = vpack.c.b16 %v2380, %v2364
      %v2493 = vpack.c.b16 %v2397, %v2381
      %v2494 = vpack.c.b16 %v2398, %v2382
      %v2495 = vpack.c.b16 %v2399, %v2383
      %v2496 = vpack.c.b16 %v2400, %v2384
      %v2497 = vpack.c.b16 %v2401, %v2385
      %v2498 = vpack.c.b16 %v2402, %v2386
      %v2499 = vpack.c.b16 %v2403, %v2387
      %v2500 = vpack.c.b16 %v2404, %v2388
      %v2501 = vpack.c.b16 %v2405, %v2389
      %v2502 = vpack.c.b16 %v2406, %v2390
      %v2503 = vpack.c.b16 %v2407, %v2391
      %v2504 = vpack.c.b16 %v2408, %v2392
      %v2505 = vpack.c.b16 %v2409, %v2393
      %v2506 = vpack.c.b16 %v2410, %v2394
      %v2507 = vpack.c.b16 %v2411, %v2395
      %v2508 = vpack.c.b16 %v2412, %v2396
      %v2509 = vpack.c.b16 %v2429, %v2413
      %v2510 = vpack.c.b16 %v2430, %v2414
      %v2511 = vpack.c.b16 %v2431, %v2415
      %v2512 = vpack.c.b16 %v2432, %v2416
      %v2513 = vpack.c.b16 %v2433, %v2417
      %v2514 = vpack.c.b16 %v2434, %v2418
      %v2515 = vpack.c.b16 %v2435, %v2419
      %v2516 = vpack.c.b16 %v2436, %v2420
      %v2517 = vpack.c.b16 %v2437, %v2421
      %v2518 = vpack.c.b16 %v2438, %v2422
      %v2519 = vpack.c.b16 %v2439, %v2423
      %v2520 = vpack.c.b16 %v2440, %v2424
      %v2521 = vpack.c.b16 %v2441, %v2425
      %v2522 = vpack.c.b16 %v2442, %v2426
      %v2523 = vpack.c.b16 %v2443, %v2427
      %v2524 = vpack.c.b16 %v2444, %v2428
      %v2525 = vpack.c.b16 %v2461, %v2445
      %v2526 = vpack.c.b16 %v2462, %v2446
      %v2527 = vpack.c.b16 %v2463, %v2447
      %v2528 = vpack.c.b16 %v2464, %v2448
      %v2529 = vpack.c.b16 %v2465, %v2449
      %v2530 = vpack.c.b16 %v2466, %v2450
      %v2531 = vpack.c.b16 %v2467, %v2451
      %v2532 = vpack.c.b16 %v2468, %v2452
      %v2533 = vpack.c.b16 %v2469, %v2453
      %v2534 = vpack.c.b16 %v2470, %v2454
      %v2535 = vpack.c.b16 %v2471, %v2455
      %v2536 = vpack.c.b16 %v2472, %v2456
      %v2537 = vpack.c.b16 %v2473, %v2457
      %v2538 = vpack.c.b16 %v2474, %v2458
      %v2539 = vpack.c.b16 %v2475, %v2459
      %v2540 = vpack.c.b16 %v2476, %v2460
      %v2606 = vsel %vm853, %v2184, 0
      %2608 = vmatpush.bf16.msra.mxu0 0
      %2609 = vmatpush.bf16.msra.mxu0 0
      %2610 = vmatpush.bf16.msra.mxu0 0
      %2611 = vmatpush.bf16.msra.mxu0 0
      %2612 = vmatpush.bf16.msra.mxu0 %v2525
      %2613 = vmatpush.bf16.msra.mxu0 %v2509
      %2614 = vmatpush.bf16.msra.mxu0 %v2493
      %2615 = vmatpush.bf16.msra.mxu0 %v2477
      %2616 = vmatmul.bf16.gmra.mxu0 %v2606
      %v2617 = vpop.f32.mrf.mxu0
      %v2618 = vadd.f32 %v2253, %v2617
      %v2619 = vpop.f32.mrf.mxu0
      %2620 = vdwg.mxu0
      %2621 = vmatpush.bf16.msra.mxu0 0
      %2622 = vmatpush.bf16.msra.mxu0 0
      %2623 = vmatpush.bf16.msra.mxu0 0
      %2624 = vmatpush.bf16.msra.mxu0 0
      %2625 = vmatpush.bf16.msra.mxu0 %v2526
      %2626 = vmatpush.bf16.msra.mxu0 %v2510
      %2627 = vmatpush.bf16.msra.mxu0 %v2494
      %2628 = vmatpush.bf16.msra.mxu0 %v2478
      %2629 = vmatmul.bf16.gmra.mxu0 %v2606
      %v2630 = vpop.f32.mrf.mxu0
      %v2631 = vadd.f32 %v2254, %v2630
      %v2632 = vpop.f32.mrf.mxu0
      %2633 = vdwg.mxu0
      %2634 = vmatpush.bf16.msra.mxu0 0
      %2635 = vmatpush.bf16.msra.mxu0 0
      %2636 = vmatpush.bf16.msra.mxu0 0
      %2637 = vmatpush.bf16.msra.mxu0 0
      %2638 = vmatpush.bf16.msra.mxu0 %v2527
      %2639 = vmatpush.bf16.msra.mxu0 %v2511
      %2640 = vmatpush.bf16.msra.mxu0 %v2495
      %2641 = vmatpush.bf16.msra.mxu0 %v2479
      %2642 = vmatmul.bf16.gmra.mxu0 %v2606
      %v2643 = vpop.f32.mrf.mxu0
      %v2644 = vadd.f32 %v2255, %v2643
      %v2645 = vpop.f32.mrf.mxu0
      %2646 = vdwg.mxu0
      %2647 = vmatpush.bf16.msra.mxu0 0
      %2648 = vmatpush.bf16.msra.mxu0 0
      %2649 = vmatpush.bf16.msra.mxu0 0
      %2650 = vmatpush.bf16.msra.mxu0 0
      %2651 = vmatpush.bf16.msra.mxu0 %v2528
      %2652 = vmatpush.bf16.msra.mxu0 %v2512
      %2653 = vmatpush.bf16.msra.mxu0 %v2496
      %2654 = vmatpush.bf16.msra.mxu0 %v2480
      %2655 = vmatmul.bf16.gmra.mxu0 %v2606
      %v2656 = vpop.f32.mrf.mxu0
      %v2657 = vadd.f32 %v2256, %v2656
      %v2658 = vpop.f32.mrf.mxu0
      %2659 = vdwg.mxu0
      %2660 = vmatpush.bf16.msra.mxu0 0
      %2661 = vmatpush.bf16.msra.mxu0 0
      %2662 = vmatpush.bf16.msra.mxu0 0
      %2663 = vmatpush.bf16.msra.mxu0 0
      %2664 = vmatpush.bf16.msra.mxu0 %v2529
      %2665 = vmatpush.bf16.msra.mxu0 %v2513
      %2666 = vmatpush.bf16.msra.mxu0 %v2497
      %2667 = vmatpush.bf16.msra.mxu0 %v2481
      %2668 = vmatmul.bf16.gmra.mxu0 %v2606
      %v2669 = vpop.f32.mrf.mxu0
      %v2670 = vadd.f32 %v2257, %v2669
      %v2671 = vpop.f32.mrf.mxu0
      %2672 = vdwg.mxu0
      %2673 = vmatpush.bf16.msra.mxu0 0
      %2674 = vmatpush.bf16.msra.mxu0 0
      %2675 = vmatpush.bf16.msra.mxu0 0
      %2676 = vmatpush.bf16.msra.mxu0 0
      %2677 = vmatpush.bf16.msra.mxu0 %v2530
      %2678 = vmatpush.bf16.msra.mxu0 %v2514
      %2679 = vmatpush.bf16.msra.mxu0 %v2498
      %2680 = vmatpush.bf16.msra.mxu0 %v2482
      %2681 = vmatmul.bf16.gmra.mxu0 %v2606
      %v2682 = vpop.f32.mrf.mxu0
      %v2683 = vadd.f32 %v2258, %v2682
      %v2684 = vpop.f32.mrf.mxu0
      %2685 = vdwg.mxu0
      %2686 = vmatpush.bf16.msra.mxu0 0
      %2687 = vmatpush.bf16.msra.mxu0 0
      %2688 = vmatpush.bf16.msra.mxu0 0
      %2689 = vmatpush.bf16.msra.mxu0 0
      %2690 = vmatpush.bf16.msra.mxu0 %v2531
      %2691 = vmatpush.bf16.msra.mxu0 %v2515
      %2692 = vmatpush.bf16.msra.mxu0 %v2499
      %2693 = vmatpush.bf16.msra.mxu0 %v2483
      %2694 = vmatmul.bf16.gmra.mxu0 %v2606
      %v2695 = vpop.f32.mrf.mxu0
      %v2696 = vadd.f32 %v2259, %v2695
      %v2697 = vpop.f32.mrf.mxu0
      %2698 = vdwg.mxu0
      %2699 = vmatpush.bf16.msra.mxu0 0
      %2700 = vmatpush.bf16.msra.mxu0 0
      %2701 = vmatpush.bf16.msra.mxu0 0
      %2702 = vmatpush.bf16.msra.mxu0 0
      %2703 = vmatpush.bf16.msra.mxu0 %v2532
      %2704 = vmatpush.bf16.msra.mxu0 %v2516
      %2705 = vmatpush.bf16.msra.mxu0 %v2500
      %2706 = vmatpush.bf16.msra.mxu0 %v2484
      %2707 = vmatmul.bf16.gmra.mxu0 %v2606
      %v2708 = vpop.f32.mrf.mxu0
      %v2709 = vadd.f32 %v2260, %v2708
      %v2710 = vpop.f32.mrf.mxu0
      %2711 = vdwg.mxu0
      %2712 = vmatpush.bf16.msra.mxu0 0
      %2713 = vmatpush.bf16.msra.mxu0 0
      %2714 = vmatpush.bf16.msra.mxu0 0
      %2715 = vmatpush.bf16.msra.mxu0 0
      %2716 = vmatpush.bf16.msra.mxu0 %v2533
      %2717 = vmatpush.bf16.msra.mxu0 %v2517
      %2718 = vmatpush.bf16.msra.mxu0 %v2501
      %2719 = vmatpush.bf16.msra.mxu0 %v2485
      %2720 = vmatmul.bf16.gmra.mxu0 %v2606
      %v2721 = vpop.f32.mrf.mxu0
      %v2722 = vadd.f32 %v2261, %v2721
      %v2723 = vpop.f32.mrf.mxu0
      %2724 = vdwg.mxu0
      %2725 = vmatpush.bf16.msra.mxu0 0
      %2726 = vmatpush.bf16.msra.mxu0 0
      %2727 = vmatpush.bf16.msra.mxu0 0
      %2728 = vmatpush.bf16.msra.mxu0 0
      %2729 = vmatpush.bf16.msra.mxu0 %v2534
      %2730 = vmatpush.bf16.msra.mxu0 %v2518
      %2731 = vmatpush.bf16.msra.mxu0 %v2502
      %2732 = vmatpush.bf16.msra.mxu0 %v2486
      %2733 = vmatmul.bf16.gmra.mxu0 %v2606
      %v2734 = vpop.f32.mrf.mxu0
      %v2735 = vadd.f32 %v2262, %v2734
      %v2736 = vpop.f32.mrf.mxu0
      %2737 = vdwg.mxu0
      %2738 = vmatpush.bf16.msra.mxu0 0
      %2739 = vmatpush.bf16.msra.mxu0 0
      %2740 = vmatpush.bf16.msra.mxu0 0
      %2741 = vmatpush.bf16.msra.mxu0 0
      %2742 = vmatpush.bf16.msra.mxu0 %v2535
      %2743 = vmatpush.bf16.msra.mxu0 %v2519
      %2744 = vmatpush.bf16.msra.mxu0 %v2503
      %2745 = vmatpush.bf16.msra.mxu0 %v2487
      %2746 = vmatmul.bf16.gmra.mxu0 %v2606
      %v2747 = vpop.f32.mrf.mxu0
      %v2748 = vadd.f32 %v2263, %v2747
      %v2749 = vpop.f32.mrf.mxu0
      %2750 = vdwg.mxu0
      %2751 = vmatpush.bf16.msra.mxu0 0
      %2752 = vmatpush.bf16.msra.mxu0 0
      %2753 = vmatpush.bf16.msra.mxu0 0
      %2754 = vmatpush.bf16.msra.mxu0 0
      %2755 = vmatpush.bf16.msra.mxu0 %v2536
      %2756 = vmatpush.bf16.msra.mxu0 %v2520
      %2757 = vmatpush.bf16.msra.mxu0 %v2504
      %2758 = vmatpush.bf16.msra.mxu0 %v2488
      %2759 = vmatmul.bf16.gmra.mxu0 %v2606
      %v2760 = vpop.f32.mrf.mxu0
      %v2761 = vadd.f32 %v2264, %v2760
      %v2762 = vpop.f32.mrf.mxu0
      %2763 = vdwg.mxu0
      %2764 = vmatpush.bf16.msra.mxu0 0
      %2765 = vmatpush.bf16.msra.mxu0 0
      %2766 = vmatpush.bf16.msra.mxu0 0
      %2767 = vmatpush.bf16.msra.mxu0 0
      %2768 = vmatpush.bf16.msra.mxu0 %v2537
      %2769 = vmatpush.bf16.msra.mxu0 %v2521
      %2770 = vmatpush.bf16.msra.mxu0 %v2505
      %2771 = vmatpush.bf16.msra.mxu0 %v2489
      %2772 = vmatmul.bf16.gmra.mxu0 %v2606
      %v2773 = vpop.f32.mrf.mxu0
      %v2774 = vadd.f32 %v2265, %v2773
      %v2775 = vpop.f32.mrf.mxu0
      %2776 = vdwg.mxu0
      %2777 = vmatpush.bf16.msra.mxu0 0
      %2778 = vmatpush.bf16.msra.mxu0 0
      %2779 = vmatpush.bf16.msra.mxu0 0
      %2780 = vmatpush.bf16.msra.mxu0 0
      %2781 = vmatpush.bf16.msra.mxu0 %v2538
      %2782 = vmatpush.bf16.msra.mxu0 %v2522
      %2783 = vmatpush.bf16.msra.mxu0 %v2506
      %2784 = vmatpush.bf16.msra.mxu0 %v2490
      %2785 = vmatmul.bf16.gmra.mxu0 %v2606
      %v2786 = vpop.f32.mrf.mxu0
      %v2787 = vadd.f32 %v2266, %v2786
      %v2788 = vpop.f32.mrf.mxu0
      %2789 = vdwg.mxu0
      %2790 = vmatpush.bf16.msra.mxu0 0
      %2791 = vmatpush.bf16.msra.mxu0 0
      %2792 = vmatpush.bf16.msra.mxu0 0
      %2793 = vmatpush.bf16.msra.mxu0 0
      %2794 = vmatpush.bf16.msra.mxu0 %v2539
      %2795 = vmatpush.bf16.msra.mxu0 %v2523
      %2796 = vmatpush.bf16.msra.mxu0 %v2507
      %2797 = vmatpush.bf16.msra.mxu0 %v2491
      %2798 = vmatmul.bf16.gmra.mxu0 %v2606
      %v2799 = vpop.f32.mrf.mxu0
      %v2800 = vadd.f32 %v2267, %v2799
      %v2801 = vpop.f32.mrf.mxu0
      %2802 = vdwg.mxu0
      %2803 = vmatpush.bf16.msra.mxu0 0
      %2804 = vmatpush.bf16.msra.mxu0 0
      %2805 = vmatpush.bf16.msra.mxu0 0
      %2806 = vmatpush.bf16.msra.mxu0 0
      %2807 = vmatpush.bf16.msra.mxu0 %v2540
      %2808 = vmatpush.bf16.msra.mxu0 %v2524
      %2809 = vmatpush.bf16.msra.mxu0 %v2508
      %2810 = vmatpush.bf16.msra.mxu0 %v2492
      %2811 = vmatmul.bf16.gmra.mxu0 %v2606
      %v2812 = vpop.f32.mrf.mxu0
      %v2813 = vadd.f32 %v2268, %v2812
      %v2814 = vpop.f32.mrf.mxu0
      %2815 = vdwg.mxu0
      %v2816 = vmax.f32 %v2618, 0.0
      %v2817 = vmax.f32 %v2631, 0.0
      %v2818 = vmax.f32 %v2644, 0.0
      %v2819 = vmax.f32 %v2657, 0.0
      %v2820 = vmax.f32 %v2670, 0.0
      %v2821 = vmax.f32 %v2683, 0.0
      %v2822 = vmax.f32 %v2696, 0.0
      %v2823 = vmax.f32 %v2709, 0.0
      %v2824 = vmax.f32 %v2722, 0.0
      %v2825 = vmax.f32 %v2735, 0.0
      %v2826 = vmax.f32 %v2748, 0.0
      %v2827 = vmax.f32 %v2761, 0.0
      %v2828 = vmax.f32 %v2774, 0.0
      %v2829 = vmax.f32 %v2787, 0.0
      %v2830 = vmax.f32 %v2800, 0.0
      %v2831 = vmax.f32 %v2813, 0.0
      %v2832 = vpack.c.bf16 %v2816, %v2816
      %v2833 = vpack.c.bf16 %v2817, %v2817
      %v2834 = vpack.c.bf16 %v2818, %v2818
      %v2835 = vpack.c.bf16 %v2819, %v2819
      %v2836 = vpack.c.bf16 %v2820, %v2820
      %v2837 = vpack.c.bf16 %v2821, %v2821
      %v2838 = vpack.c.bf16 %v2822, %v2822
      %v2839 = vpack.c.bf16 %v2823, %v2823
      %v2840 = vpack.c.bf16 %v2824, %v2824
      %v2841 = vpack.c.bf16 %v2825, %v2825
      %v2842 = vpack.c.bf16 %v2826, %v2826
      %v2843 = vpack.c.bf16 %v2827, %v2827
      %v2844 = vpack.c.bf16 %v2828, %v2828
      %v2845 = vpack.c.bf16 %v2829, %v2829
      %v2846 = vpack.c.bf16 %v2830, %v2830
      %v2847 = vpack.c.bf16 %v2831, %v2831
      %v2848 = vld [vmem:[%s21] sm:$0xf]
      %v2849 = vld [vmem:[%s21 + $0x4] sm:$0xf]
      %v2850 = vld [vmem:[%s21 + $0x8] sm:$0xf]
      %v2851 = vld [vmem:[%s21 + $0xc] sm:$0xf]
      %v2852 = vld [vmem:[%s21 + $0x10] sm:$0xf]
      %v2853 = vld [vmem:[%s21 + $0x14] sm:$0xf]
      %v2854 = vld [vmem:[%s21 + $0x18] sm:$0xf]
      %v2855 = vld [vmem:[%s21 + $0x1c] sm:$0xf]
      %v2856 = vld [vmem:[%s21 + $0x20] sm:$0xf]
      %v2857 = vld [vmem:[%s21 + $0x24] sm:$0xf]
      %v2858 = vld [vmem:[%s21 + $0x28] sm:$0xf]
      %v2859 = vld [vmem:[%s21 + $0x2c] sm:$0xf]
      %v2860 = vld [vmem:[%s21 + $0x30] sm:$0xf]
      %v2861 = vld [vmem:[%s21 + $0x34] sm:$0xf]
      %v2862 = vld [vmem:[%s21 + $0x38] sm:$0xf]
      %v2863 = vld [vmem:[%s21 + $0x3c] sm:$0xf]
      %v2864 = vld [vmem:[%s21 + $0x40] sm:$0xf]
      %v2865 = vld [vmem:[%s21 + $0x44] sm:$0xf]
      %v2866 = vld [vmem:[%s21 + $0x48] sm:$0xf]
      %v2867 = vld [vmem:[%s21 + $0x4c] sm:$0xf]
      %v2868 = vld [vmem:[%s21 + $0x50] sm:$0xf]
      %v2869 = vld [vmem:[%s21 + $0x54] sm:$0xf]
      %v2870 = vld [vmem:[%s21 + $0x58] sm:$0xf]
      %v2871 = vld [vmem:[%s21 + $0x5c] sm:$0xf]
      %v2872 = vld [vmem:[%s21 + $0x60] sm:$0xf]
      %v2873 = vld [vmem:[%s21 + $0x64] sm:$0xf]
      %v2874 = vld [vmem:[%s21 + $0x68] sm:$0xf]
      %v2875 = vld [vmem:[%s21 + $0x6c] sm:$0xf]
      %v2876 = vld [vmem:[%s21 + $0x70] sm:$0xf]
      %v2877 = vld [vmem:[%s21 + $0x74] sm:$0xf]
      %v2878 = vld [vmem:[%s21 + $0x78] sm:$0xf]
      %v2879 = vld [vmem:[%s21 + $0x7c] sm:$0xf]
      %v2880 = vld [vmem:[%s21 + $0x80] sm:$0xf]
      %v2881 = vld [vmem:[%s21 + $0x84] sm:$0xf]
      %v2882 = vld [vmem:[%s21 + $0x88] sm:$0xf]
      %v2883 = vld [vmem:[%s21 + $0x8c] sm:$0xf]
      %v2884 = vld [vmem:[%s21 + $0x90] sm:$0xf]
      %v2885 = vld [vmem:[%s21 + $0x94] sm:$0xf]
      %v2886 = vld [vmem:[%s21 + $0x98] sm:$0xf]
      %v2887 = vld [vmem:[%s21 + $0x9c] sm:$0xf]
      %v2888 = vld [vmem:[%s21 + $0xa0] sm:$0xf]
      %v2889 = vld [vmem:[%s21 + $0xa4] sm:$0xf]
      %v2890 = vld [vmem:[%s21 + $0xa8] sm:$0xf]
      %v2891 = vld [vmem:[%s21 + $0xac] sm:$0xf]
      %v2892 = vld [vmem:[%s21 + $0xb0] sm:$0xf]
      %v2893 = vld [vmem:[%s21 + $0xb4] sm:$0xf]
      %v2894 = vld [vmem:[%s21 + $0xb8] sm:$0xf]
      %v2895 = vld [vmem:[%s21 + $0xbc] sm:$0xf]
      %v2896 = vld [vmem:[%s21 + $0xc0] sm:$0xf]
      %v2897 = vld [vmem:[%s21 + $0xc4] sm:$0xf]
      %v2898 = vld [vmem:[%s21 + $0xc8] sm:$0xf]
      %v2899 = vld [vmem:[%s21 + $0xcc] sm:$0xf]
      %v2900 = vld [vmem:[%s21 + $0xd0] sm:$0xf]
      %v2901 = vld [vmem:[%s21 + $0xd4] sm:$0xf]
      %v2902 = vld [vmem:[%s21 + $0xd8] sm:$0xf]
      %v2903 = vld [vmem:[%s21 + $0xdc] sm:$0xf]
      %v2904 = vld [vmem:[%s21 + $0xe0] sm:$0xf]
      %v2905 = vld [vmem:[%s21 + $0xe4] sm:$0xf]
      %v2906 = vld [vmem:[%s21 + $0xe8] sm:$0xf]
      %v2907 = vld [vmem:[%s21 + $0xec] sm:$0xf]
      %v2908 = vld [vmem:[%s21 + $0xf0] sm:$0xf]
      %v2909 = vld [vmem:[%s21 + $0xf4] sm:$0xf]
      %v2910 = vld [vmem:[%s21 + $0xf8] sm:$0xf]
      %v2911 = vld [vmem:[%s21 + $0xfc] sm:$0xf]
      %v2912 = vld [vmem:[%s21 + $0x100] sm:$0xf]
      %v2913 = vld [vmem:[%s21 + $0x104] sm:$0xf]
      %v2914 = vld [vmem:[%s21 + $0x108] sm:$0xf]
      %v2915 = vld [vmem:[%s21 + $0x10c] sm:$0xf]
      %v2916 = vld [vmem:[%s21 + $0x110] sm:$0xf]
      %v2917 = vld [vmem:[%s21 + $0x114] sm:$0xf]
      %v2918 = vld [vmem:[%s21 + $0x118] sm:$0xf]
      %v2919 = vld [vmem:[%s21 + $0x11c] sm:$0xf]
      %v2920 = vld [vmem:[%s21 + $0x120] sm:$0xf]
      %v2921 = vld [vmem:[%s21 + $0x124] sm:$0xf]
      %v2922 = vld [vmem:[%s21 + $0x128] sm:$0xf]
      %v2923 = vld [vmem:[%s21 + $0x12c] sm:$0xf]
      %v2924 = vld [vmem:[%s21 + $0x130] sm:$0xf]
      %v2925 = vld [vmem:[%s21 + $0x134] sm:$0xf]
      %v2926 = vld [vmem:[%s21 + $0x138] sm:$0xf]
      %v2927 = vld [vmem:[%s21 + $0x13c] sm:$0xf]
      %v2928 = vld [vmem:[%s21 + $0x140] sm:$0xf]
      %v2929 = vld [vmem:[%s21 + $0x144] sm:$0xf]
      %v2930 = vld [vmem:[%s21 + $0x148] sm:$0xf]
      %v2931 = vld [vmem:[%s21 + $0x14c] sm:$0xf]
      %v2932 = vld [vmem:[%s21 + $0x150] sm:$0xf]
      %v2933 = vld [vmem:[%s21 + $0x154] sm:$0xf]
      %v2934 = vld [vmem:[%s21 + $0x158] sm:$0xf]
      %v2935 = vld [vmem:[%s21 + $0x15c] sm:$0xf]
      %v2936 = vld [vmem:[%s21 + $0x160] sm:$0xf]
      %v2937 = vld [vmem:[%s21 + $0x164] sm:$0xf]
      %v2938 = vld [vmem:[%s21 + $0x168] sm:$0xf]
      %v2939 = vld [vmem:[%s21 + $0x16c] sm:$0xf]
      %v2940 = vld [vmem:[%s21 + $0x170] sm:$0xf]
      %v2941 = vld [vmem:[%s21 + $0x174] sm:$0xf]
      %v2942 = vld [vmem:[%s21 + $0x178] sm:$0xf]
      %v2943 = vld [vmem:[%s21 + $0x17c] sm:$0xf]
      %v2944 = vld [vmem:[%s21 + $0x180] sm:$0xf]
      %v2945 = vld [vmem:[%s21 + $0x184] sm:$0xf]
      %v2946 = vld [vmem:[%s21 + $0x188] sm:$0xf]
      %v2947 = vld [vmem:[%s21 + $0x18c] sm:$0xf]
      %v2948 = vld [vmem:[%s21 + $0x190] sm:$0xf]
      %v2949 = vld [vmem:[%s21 + $0x194] sm:$0xf]
      %v2950 = vld [vmem:[%s21 + $0x198] sm:$0xf]
      %v2951 = vld [vmem:[%s21 + $0x19c] sm:$0xf]
      %v2952 = vld [vmem:[%s21 + $0x1a0] sm:$0xf]
      %v2953 = vld [vmem:[%s21 + $0x1a4] sm:$0xf]
      %v2954 = vld [vmem:[%s21 + $0x1a8] sm:$0xf]
      %v2955 = vld [vmem:[%s21 + $0x1ac] sm:$0xf]
      %v2956 = vld [vmem:[%s21 + $0x1b0] sm:$0xf]
      %v2957 = vld [vmem:[%s21 + $0x1b4] sm:$0xf]
      %v2958 = vld [vmem:[%s21 + $0x1b8] sm:$0xf]
      %v2959 = vld [vmem:[%s21 + $0x1bc] sm:$0xf]
      %v2960 = vld [vmem:[%s21 + $0x1c0] sm:$0xf]
      %v2961 = vld [vmem:[%s21 + $0x1c4] sm:$0xf]
      %v2962 = vld [vmem:[%s21 + $0x1c8] sm:$0xf]
      %v2963 = vld [vmem:[%s21 + $0x1cc] sm:$0xf]
      %v2964 = vld [vmem:[%s21 + $0x1d0] sm:$0xf]
      %v2965 = vld [vmem:[%s21 + $0x1d4] sm:$0xf]
      %v2966 = vld [vmem:[%s21 + $0x1d8] sm:$0xf]
      %v2967 = vld [vmem:[%s21 + $0x1dc] sm:$0xf]
      %v2968 = vld [vmem:[%s21 + $0x1e0] sm:$0xf]
      %v2969 = vld [vmem:[%s21 + $0x1e4] sm:$0xf]
      %v2970 = vld [vmem:[%s21 + $0x1e8] sm:$0xf]
      %v2971 = vld [vmem:[%s21 + $0x1ec] sm:$0xf]
      %v2972 = vld [vmem:[%s21 + $0x1f0] sm:$0xf]
      %v2973 = vld [vmem:[%s21 + $0x1f4] sm:$0xf]
      %v2974 = vld [vmem:[%s21 + $0x1f8] sm:$0xf]
      %v2975 = vld [vmem:[%s21 + $0x1fc] sm:$0xf]
      %v2976 = vld [vmem:[%s21 + $0x200] sm:$0xf]
      %v2977 = vld [vmem:[%s21 + $0x204] sm:$0xf]
      %v2978 = vld [vmem:[%s21 + $0x208] sm:$0xf]
      %v2979 = vld [vmem:[%s21 + $0x20c] sm:$0xf]
      %v2980 = vld [vmem:[%s21 + $0x210] sm:$0xf]
      %v2981 = vld [vmem:[%s21 + $0x214] sm:$0xf]
      %v2982 = vld [vmem:[%s21 + $0x218] sm:$0xf]
      %v2983 = vld [vmem:[%s21 + $0x21c] sm:$0xf]
      %v2984 = vld [vmem:[%s21 + $0x220] sm:$0xf]
      %v2985 = vld [vmem:[%s21 + $0x224] sm:$0xf]
      %v2986 = vld [vmem:[%s21 + $0x228] sm:$0xf]
      %v2987 = vld [vmem:[%s21 + $0x22c] sm:$0xf]
      %v2988 = vld [vmem:[%s21 + $0x230] sm:$0xf]
      %v2989 = vld [vmem:[%s21 + $0x234] sm:$0xf]
      %v2990 = vld [vmem:[%s21 + $0x238] sm:$0xf]
      %v2991 = vld [vmem:[%s21 + $0x23c] sm:$0xf]
      %v2992 = vld [vmem:[%s21 + $0x240] sm:$0xf]
      %v2993 = vld [vmem:[%s21 + $0x244] sm:$0xf]
      %v2994 = vld [vmem:[%s21 + $0x248] sm:$0xf]
      %v2995 = vld [vmem:[%s21 + $0x24c] sm:$0xf]
      %v2996 = vld [vmem:[%s21 + $0x250] sm:$0xf]
      %v2997 = vld [vmem:[%s21 + $0x254] sm:$0xf]
      %v2998 = vld [vmem:[%s21 + $0x258] sm:$0xf]
      %v2999 = vld [vmem:[%s21 + $0x25c] sm:$0xf]
      %v3000 = vld [vmem:[%s21 + $0x260] sm:$0xf]
      %v3001 = vld [vmem:[%s21 + $0x264] sm:$0xf]
      %v3002 = vld [vmem:[%s21 + $0x268] sm:$0xf]
      %v3003 = vld [vmem:[%s21 + $0x26c] sm:$0xf]
      %v3004 = vld [vmem:[%s21 + $0x270] sm:$0xf]
      %v3005 = vld [vmem:[%s21 + $0x274] sm:$0xf]
      %v3006 = vld [vmem:[%s21 + $0x278] sm:$0xf]
      %v3007 = vld [vmem:[%s21 + $0x27c] sm:$0xf]
      %v3008 = vld [vmem:[%s21 + $0x280] sm:$0xf]
      %v3009 = vld [vmem:[%s21 + $0x284] sm:$0xf]
      %v3010 = vld [vmem:[%s21 + $0x288] sm:$0xf]
      %v3011 = vld [vmem:[%s21 + $0x28c] sm:$0xf]
      %v3012 = vld [vmem:[%s21 + $0x290] sm:$0xf]
      %v3013 = vld [vmem:[%s21 + $0x294] sm:$0xf]
      %v3014 = vld [vmem:[%s21 + $0x298] sm:$0xf]
      %v3015 = vld [vmem:[%s21 + $0x29c] sm:$0xf]
      %v3016 = vld [vmem:[%s21 + $0x2a0] sm:$0xf]
      %v3017 = vld [vmem:[%s21 + $0x2a4] sm:$0xf]
      %v3018 = vld [vmem:[%s21 + $0x2a8] sm:$0xf]
      %v3019 = vld [vmem:[%s21 + $0x2ac] sm:$0xf]
      %v3020 = vld [vmem:[%s21 + $0x2b0] sm:$0xf]
      %v3021 = vld [vmem:[%s21 + $0x2b4] sm:$0xf]
      %v3022 = vld [vmem:[%s21 + $0x2b8] sm:$0xf]
      %v3023 = vld [vmem:[%s21 + $0x2bc] sm:$0xf]
      %v3024 = vld [vmem:[%s21 + $0x2c0] sm:$0xf]
      %v3025 = vld [vmem:[%s21 + $0x2c4] sm:$0xf]
      %v3026 = vld [vmem:[%s21 + $0x2c8] sm:$0xf]
      %v3027 = vld [vmem:[%s21 + $0x2cc] sm:$0xf]
      %v3028 = vld [vmem:[%s21 + $0x2d0] sm:$0xf]
      %v3029 = vld [vmem:[%s21 + $0x2d4] sm:$0xf]
      %v3030 = vld [vmem:[%s21 + $0x2d8] sm:$0xf]
      %v3031 = vld [vmem:[%s21 + $0x2dc] sm:$0xf]
      %v3032 = vld [vmem:[%s21 + $0x2e0] sm:$0xf]
      %v3033 = vld [vmem:[%s21 + $0x2e4] sm:$0xf]
      %v3034 = vld [vmem:[%s21 + $0x2e8] sm:$0xf]
      %v3035 = vld [vmem:[%s21 + $0x2ec] sm:$0xf]
      %v3036 = vld [vmem:[%s21 + $0x2f0] sm:$0xf]
      %v3037 = vld [vmem:[%s21 + $0x2f4] sm:$0xf]
      %v3038 = vld [vmem:[%s21 + $0x2f8] sm:$0xf]
      %v3039 = vld [vmem:[%s21 + $0x2fc] sm:$0xf]
      %v3040 = vld [vmem:[%s21 + $0x300] sm:$0xf]
      %v3041 = vld [vmem:[%s21 + $0x304] sm:$0xf]
      %v3042 = vld [vmem:[%s21 + $0x308] sm:$0xf]
      %v3043 = vld [vmem:[%s21 + $0x30c] sm:$0xf]
      %v3044 = vld [vmem:[%s21 + $0x310] sm:$0xf]
      %v3045 = vld [vmem:[%s21 + $0x314] sm:$0xf]
      %v3046 = vld [vmem:[%s21 + $0x318] sm:$0xf]
      %v3047 = vld [vmem:[%s21 + $0x31c] sm:$0xf]
      %v3048 = vld [vmem:[%s21 + $0x320] sm:$0xf]
      %v3049 = vld [vmem:[%s21 + $0x324] sm:$0xf]
      %v3050 = vld [vmem:[%s21 + $0x328] sm:$0xf]
      %v3051 = vld [vmem:[%s21 + $0x32c] sm:$0xf]
      %v3052 = vld [vmem:[%s21 + $0x330] sm:$0xf]
      %v3053 = vld [vmem:[%s21 + $0x334] sm:$0xf]
      %v3054 = vld [vmem:[%s21 + $0x338] sm:$0xf]
      %v3055 = vld [vmem:[%s21 + $0x33c] sm:$0xf]
      %v3056 = vld [vmem:[%s21 + $0x340] sm:$0xf]
      %v3057 = vld [vmem:[%s21 + $0x344] sm:$0xf]
      %v3058 = vld [vmem:[%s21 + $0x348] sm:$0xf]
      %v3059 = vld [vmem:[%s21 + $0x34c] sm:$0xf]
      %v3060 = vld [vmem:[%s21 + $0x350] sm:$0xf]
      %v3061 = vld [vmem:[%s21 + $0x354] sm:$0xf]
      %v3062 = vld [vmem:[%s21 + $0x358] sm:$0xf]
      %v3063 = vld [vmem:[%s21 + $0x35c] sm:$0xf]
      %v3064 = vld [vmem:[%s21 + $0x360] sm:$0xf]
      %v3065 = vld [vmem:[%s21 + $0x364] sm:$0xf]
      %v3066 = vld [vmem:[%s21 + $0x368] sm:$0xf]
      %v3067 = vld [vmem:[%s21 + $0x36c] sm:$0xf]
      %v3068 = vld [vmem:[%s21 + $0x370] sm:$0xf]
      %v3069 = vld [vmem:[%s21 + $0x374] sm:$0xf]
      %v3070 = vld [vmem:[%s21 + $0x378] sm:$0xf]
      %v3071 = vld [vmem:[%s21 + $0x37c] sm:$0xf]
      %v3072 = vld [vmem:[%s21 + $0x380] sm:$0xf]
      %v3073 = vld [vmem:[%s21 + $0x384] sm:$0xf]
      %v3074 = vld [vmem:[%s21 + $0x388] sm:$0xf]
      %v3075 = vld [vmem:[%s21 + $0x38c] sm:$0xf]
      %v3076 = vld [vmem:[%s21 + $0x390] sm:$0xf]
      %v3077 = vld [vmem:[%s21 + $0x394] sm:$0xf]
      %v3078 = vld [vmem:[%s21 + $0x398] sm:$0xf]
      %v3079 = vld [vmem:[%s21 + $0x39c] sm:$0xf]
      %v3080 = vld [vmem:[%s21 + $0x3a0] sm:$0xf]
      %v3081 = vld [vmem:[%s21 + $0x3a4] sm:$0xf]
      %v3082 = vld [vmem:[%s21 + $0x3a8] sm:$0xf]
      %v3083 = vld [vmem:[%s21 + $0x3ac] sm:$0xf]
      %v3084 = vld [vmem:[%s21 + $0x3b0] sm:$0xf]
      %v3085 = vld [vmem:[%s21 + $0x3b4] sm:$0xf]
      %v3086 = vld [vmem:[%s21 + $0x3b8] sm:$0xf]
      %v3087 = vld [vmem:[%s21 + $0x3bc] sm:$0xf]
      %v3088 = vld [vmem:[%s21 + $0x3c0] sm:$0xf]
      %v3089 = vld [vmem:[%s21 + $0x3c4] sm:$0xf]
      %v3090 = vld [vmem:[%s21 + $0x3c8] sm:$0xf]
      %v3091 = vld [vmem:[%s21 + $0x3cc] sm:$0xf]
      %v3092 = vld [vmem:[%s21 + $0x3d0] sm:$0xf]
      %v3093 = vld [vmem:[%s21 + $0x3d4] sm:$0xf]
      %v3094 = vld [vmem:[%s21 + $0x3d8] sm:$0xf]
      %v3095 = vld [vmem:[%s21 + $0x3dc] sm:$0xf]
      %v3096 = vld [vmem:[%s21 + $0x3e0] sm:$0xf]
      %v3097 = vld [vmem:[%s21 + $0x3e4] sm:$0xf]
      %v3098 = vld [vmem:[%s21 + $0x3e8] sm:$0xf]
      %v3099 = vld [vmem:[%s21 + $0x3ec] sm:$0xf]
      %v3100 = vld [vmem:[%s21 + $0x3f0] sm:$0xf]
      %v3101 = vld [vmem:[%s21 + $0x3f4] sm:$0xf]
      %v3102 = vld [vmem:[%s21 + $0x3f8] sm:$0xf]
      %v3103 = vld [vmem:[%s21 + $0x3fc] sm:$0xf]
      %v3104 = vld [vmem:[%s22] sm:$0x1]
      %v3106 = vperm.slane %v3104, 0
      %v3364 = vunpack.c.l.b16 %v2848
      %v3365 = vunpack.c.l.b16 %v2849
      %v3366 = vunpack.c.l.b16 %v2850
      %v3367 = vunpack.c.l.b16 %v2851
      %v3368 = vunpack.c.l.b16 %v2852
      %v3369 = vunpack.c.l.b16 %v2853
      %v3370 = vunpack.c.l.b16 %v2854
      %v3371 = vunpack.c.l.b16 %v2855
      %v3372 = vunpack.c.l.b16 %v2856
      %v3373 = vunpack.c.l.b16 %v2857
      %v3374 = vunpack.c.l.b16 %v2858
      %v3375 = vunpack.c.l.b16 %v2859
      %v3376 = vunpack.c.l.b16 %v2860
      %v3377 = vunpack.c.l.b16 %v2861
      %v3378 = vunpack.c.l.b16 %v2862
      %v3379 = vunpack.c.l.b16 %v2863
      %v3380 = vunpack.c.l.b16 %v2864
      %v3381 = vunpack.c.l.b16 %v2865
      %v3382 = vunpack.c.l.b16 %v2866
      %v3383 = vunpack.c.l.b16 %v2867
      %v3384 = vunpack.c.l.b16 %v2868
      %v3385 = vunpack.c.l.b16 %v2869
      %v3386 = vunpack.c.l.b16 %v2870
      %v3387 = vunpack.c.l.b16 %v2871
      %v3388 = vunpack.c.l.b16 %v2872
      %v3389 = vunpack.c.l.b16 %v2873
      %v3390 = vunpack.c.l.b16 %v2874
      %v3391 = vunpack.c.l.b16 %v2875
      %v3392 = vunpack.c.l.b16 %v2876
      %v3393 = vunpack.c.l.b16 %v2877
      %v3394 = vunpack.c.l.b16 %v2878
      %v3395 = vunpack.c.l.b16 %v2879
      %v3396 = vunpack.c.l.b16 %v2880
      %v3397 = vunpack.c.l.b16 %v2881
      %v3398 = vunpack.c.l.b16 %v2882
      %v3399 = vunpack.c.l.b16 %v2883
      %v3400 = vunpack.c.l.b16 %v2884
      %v3401 = vunpack.c.l.b16 %v2885
      %v3402 = vunpack.c.l.b16 %v2886
      %v3403 = vunpack.c.l.b16 %v2887
      %v3404 = vunpack.c.l.b16 %v2888
      %v3405 = vunpack.c.l.b16 %v2889
      %v3406 = vunpack.c.l.b16 %v2890
      %v3407 = vunpack.c.l.b16 %v2891
      %v3408 = vunpack.c.l.b16 %v2892
      %v3409 = vunpack.c.l.b16 %v2893
      %v3410 = vunpack.c.l.b16 %v2894
      %v3411 = vunpack.c.l.b16 %v2895
      %v3412 = vunpack.c.l.b16 %v2896
      %v3413 = vunpack.c.l.b16 %v2897
      %v3414 = vunpack.c.l.b16 %v2898
      %v3415 = vunpack.c.l.b16 %v2899
      %v3416 = vunpack.c.l.b16 %v2900
      %v3417 = vunpack.c.l.b16 %v2901
      %v3418 = vunpack.c.l.b16 %v2902
      %v3419 = vunpack.c.l.b16 %v2903
      %v3420 = vunpack.c.l.b16 %v2904
      %v3421 = vunpack.c.l.b16 %v2905
      %v3422 = vunpack.c.l.b16 %v2906
      %v3423 = vunpack.c.l.b16 %v2907
      %v3424 = vunpack.c.l.b16 %v2908
      %v3425 = vunpack.c.l.b16 %v2909
      %v3426 = vunpack.c.l.b16 %v2910
      %v3427 = vunpack.c.l.b16 %v2911
      %v3428 = vunpack.c.l.b16 %v2912
      %v3429 = vunpack.c.l.b16 %v2913
      %v3430 = vunpack.c.l.b16 %v2914
      %v3431 = vunpack.c.l.b16 %v2915
      %v3432 = vunpack.c.l.b16 %v2916
      %v3433 = vunpack.c.l.b16 %v2917
      %v3434 = vunpack.c.l.b16 %v2918
      %v3435 = vunpack.c.l.b16 %v2919
      %v3436 = vunpack.c.l.b16 %v2920
      %v3437 = vunpack.c.l.b16 %v2921
      %v3438 = vunpack.c.l.b16 %v2922
      %v3439 = vunpack.c.l.b16 %v2923
      %v3440 = vunpack.c.l.b16 %v2924
      %v3441 = vunpack.c.l.b16 %v2925
      %v3442 = vunpack.c.l.b16 %v2926
      %v3443 = vunpack.c.l.b16 %v2927
      %v3444 = vunpack.c.l.b16 %v2928
      %v3445 = vunpack.c.l.b16 %v2929
      %v3446 = vunpack.c.l.b16 %v2930
      %v3447 = vunpack.c.l.b16 %v2931
      %v3448 = vunpack.c.l.b16 %v2932
      %v3449 = vunpack.c.l.b16 %v2933
      %v3450 = vunpack.c.l.b16 %v2934
      %v3451 = vunpack.c.l.b16 %v2935
      %v3452 = vunpack.c.l.b16 %v2936
      %v3453 = vunpack.c.l.b16 %v2937
      %v3454 = vunpack.c.l.b16 %v2938
      %v3455 = vunpack.c.l.b16 %v2939
      %v3456 = vunpack.c.l.b16 %v2940
      %v3457 = vunpack.c.l.b16 %v2941
      %v3458 = vunpack.c.l.b16 %v2942
      %v3459 = vunpack.c.l.b16 %v2943
      %v3460 = vunpack.c.l.b16 %v2944
      %v3461 = vunpack.c.l.b16 %v2945
      %v3462 = vunpack.c.l.b16 %v2946
      %v3463 = vunpack.c.l.b16 %v2947
      %v3464 = vunpack.c.l.b16 %v2948
      %v3465 = vunpack.c.l.b16 %v2949
      %v3466 = vunpack.c.l.b16 %v2950
      %v3467 = vunpack.c.l.b16 %v2951
      %v3468 = vunpack.c.l.b16 %v2952
      %v3469 = vunpack.c.l.b16 %v2953
      %v3470 = vunpack.c.l.b16 %v2954
      %v3471 = vunpack.c.l.b16 %v2955
      %v3472 = vunpack.c.l.b16 %v2956
      %v3473 = vunpack.c.l.b16 %v2957
      %v3474 = vunpack.c.l.b16 %v2958
      %v3475 = vunpack.c.l.b16 %v2959
      %v3476 = vunpack.c.l.b16 %v2960
      %v3477 = vunpack.c.l.b16 %v2961
      %v3478 = vunpack.c.l.b16 %v2962
      %v3479 = vunpack.c.l.b16 %v2963
      %v3480 = vunpack.c.l.b16 %v2964
      %v3481 = vunpack.c.l.b16 %v2965
      %v3482 = vunpack.c.l.b16 %v2966
      %v3483 = vunpack.c.l.b16 %v2967
      %v3484 = vunpack.c.l.b16 %v2968
      %v3485 = vunpack.c.l.b16 %v2969
      %v3486 = vunpack.c.l.b16 %v2970
      %v3487 = vunpack.c.l.b16 %v2971
      %v3488 = vunpack.c.l.b16 %v2972
      %v3489 = vunpack.c.l.b16 %v2973
      %v3490 = vunpack.c.l.b16 %v2974
      %v3491 = vunpack.c.l.b16 %v2975
      %v3492 = vunpack.c.l.b16 %v2976
      %v3493 = vunpack.c.l.b16 %v2977
      %v3494 = vunpack.c.l.b16 %v2978
      %v3495 = vunpack.c.l.b16 %v2979
      %v3496 = vunpack.c.l.b16 %v2980
      %v3497 = vunpack.c.l.b16 %v2981
      %v3498 = vunpack.c.l.b16 %v2982
      %v3499 = vunpack.c.l.b16 %v2983
      %v3500 = vunpack.c.l.b16 %v2984
      %v3501 = vunpack.c.l.b16 %v2985
      %v3502 = vunpack.c.l.b16 %v2986
      %v3503 = vunpack.c.l.b16 %v2987
      %v3504 = vunpack.c.l.b16 %v2988
      %v3505 = vunpack.c.l.b16 %v2989
      %v3506 = vunpack.c.l.b16 %v2990
      %v3507 = vunpack.c.l.b16 %v2991
      %v3508 = vunpack.c.l.b16 %v2992
      %v3509 = vunpack.c.l.b16 %v2993
      %v3510 = vunpack.c.l.b16 %v2994
      %v3511 = vunpack.c.l.b16 %v2995
      %v3512 = vunpack.c.l.b16 %v2996
      %v3513 = vunpack.c.l.b16 %v2997
      %v3514 = vunpack.c.l.b16 %v2998
      %v3515 = vunpack.c.l.b16 %v2999
      %v3516 = vunpack.c.l.b16 %v3000
      %v3517 = vunpack.c.l.b16 %v3001
      %v3518 = vunpack.c.l.b16 %v3002
      %v3519 = vunpack.c.l.b16 %v3003
      %v3520 = vunpack.c.l.b16 %v3004
      %v3521 = vunpack.c.l.b16 %v3005
      %v3522 = vunpack.c.l.b16 %v3006
      %v3523 = vunpack.c.l.b16 %v3007
      %v3524 = vunpack.c.l.b16 %v3008
      %v3525 = vunpack.c.l.b16 %v3009
      %v3526 = vunpack.c.l.b16 %v3010
      %v3527 = vunpack.c.l.b16 %v3011
      %v3528 = vunpack.c.l.b16 %v3012
      %v3529 = vunpack.c.l.b16 %v3013
      %v3530 = vunpack.c.l.b16 %v3014
      %v3531 = vunpack.c.l.b16 %v3015
      %v3532 = vunpack.c.l.b16 %v3016
      %v3533 = vunpack.c.l.b16 %v3017
      %v3534 = vunpack.c.l.b16 %v3018
      %v3535 = vunpack.c.l.b16 %v3019
      %v3536 = vunpack.c.l.b16 %v3020
      %v3537 = vunpack.c.l.b16 %v3021
      %v3538 = vunpack.c.l.b16 %v3022
      %v3539 = vunpack.c.l.b16 %v3023
      %v3540 = vunpack.c.l.b16 %v3024
      %v3541 = vunpack.c.l.b16 %v3025
      %v3542 = vunpack.c.l.b16 %v3026
      %v3543 = vunpack.c.l.b16 %v3027
      %v3544 = vunpack.c.l.b16 %v3028
      %v3545 = vunpack.c.l.b16 %v3029
      %v3546 = vunpack.c.l.b16 %v3030
      %v3547 = vunpack.c.l.b16 %v3031
      %v3548 = vunpack.c.l.b16 %v3032
      %v3549 = vunpack.c.l.b16 %v3033
      %v3550 = vunpack.c.l.b16 %v3034
      %v3551 = vunpack.c.l.b16 %v3035
      %v3552 = vunpack.c.l.b16 %v3036
      %v3553 = vunpack.c.l.b16 %v3037
      %v3554 = vunpack.c.l.b16 %v3038
      %v3555 = vunpack.c.l.b16 %v3039
      %v3556 = vunpack.c.l.b16 %v3040
      %v3557 = vunpack.c.l.b16 %v3041
      %v3558 = vunpack.c.l.b16 %v3042
      %v3559 = vunpack.c.l.b16 %v3043
      %v3560 = vunpack.c.l.b16 %v3044
      %v3561 = vunpack.c.l.b16 %v3045
      %v3562 = vunpack.c.l.b16 %v3046
      %v3563 = vunpack.c.l.b16 %v3047
      %v3564 = vunpack.c.l.b16 %v3048
      %v3565 = vunpack.c.l.b16 %v3049
      %v3566 = vunpack.c.l.b16 %v3050
      %v3567 = vunpack.c.l.b16 %v3051
      %v3568 = vunpack.c.l.b16 %v3052
      %v3569 = vunpack.c.l.b16 %v3053
      %v3570 = vunpack.c.l.b16 %v3054
      %v3571 = vunpack.c.l.b16 %v3055
      %v3572 = vunpack.c.l.b16 %v3056
      %v3573 = vunpack.c.l.b16 %v3057
      %v3574 = vunpack.c.l.b16 %v3058
      %v3575 = vunpack.c.l.b16 %v3059
      %v3576 = vunpack.c.l.b16 %v3060
      %v3577 = vunpack.c.l.b16 %v3061
      %v3578 = vunpack.c.l.b16 %v3062
      %v3579 = vunpack.c.l.b16 %v3063
      %v3580 = vunpack.c.l.b16 %v3064
      %v3581 = vunpack.c.l.b16 %v3065
      %v3582 = vunpack.c.l.b16 %v3066
      %v3583 = vunpack.c.l.b16 %v3067
      %v3584 = vunpack.c.l.b16 %v3068
      %v3585 = vunpack.c.l.b16 %v3069
      %v3586 = vunpack.c.l.b16 %v3070
      %v3587 = vunpack.c.l.b16 %v3071
      %v3588 = vunpack.c.l.b16 %v3072
      %v3589 = vunpack.c.l.b16 %v3073
      %v3590 = vunpack.c.l.b16 %v3074
      %v3591 = vunpack.c.l.b16 %v3075
      %v3592 = vunpack.c.l.b16 %v3076
      %v3593 = vunpack.c.l.b16 %v3077
      %v3594 = vunpack.c.l.b16 %v3078
      %v3595 = vunpack.c.l.b16 %v3079
      %v3596 = vunpack.c.l.b16 %v3080
      %v3597 = vunpack.c.l.b16 %v3081
      %v3598 = vunpack.c.l.b16 %v3082
      %v3599 = vunpack.c.l.b16 %v3083
      %v3600 = vunpack.c.l.b16 %v3084
      %v3601 = vunpack.c.l.b16 %v3085
      %v3602 = vunpack.c.l.b16 %v3086
      %v3603 = vunpack.c.l.b16 %v3087
      %v3604 = vunpack.c.l.b16 %v3088
      %v3605 = vunpack.c.l.b16 %v3089
      %v3606 = vunpack.c.l.b16 %v3090
      %v3607 = vunpack.c.l.b16 %v3091
      %v3608 = vunpack.c.l.b16 %v3092
      %v3609 = vunpack.c.l.b16 %v3093
      %v3610 = vunpack.c.l.b16 %v3094
      %v3611 = vunpack.c.l.b16 %v3095
      %v3612 = vunpack.c.l.b16 %v3096
      %v3613 = vunpack.c.l.b16 %v3097
      %v3614 = vunpack.c.l.b16 %v3098
      %v3615 = vunpack.c.l.b16 %v3099
      %v3616 = vunpack.c.l.b16 %v3100
      %v3617 = vunpack.c.l.b16 %v3101
      %v3618 = vunpack.c.l.b16 %v3102
      %v3619 = vunpack.c.l.b16 %v3103
      %v3620 = vpack.c.b16 %v3365, %v3364
      %v3621 = vpack.c.b16 %v3367, %v3366
      %v3622 = vpack.c.b16 %v3369, %v3368
      %v3623 = vpack.c.b16 %v3371, %v3370
      %v3624 = vpack.c.b16 %v3373, %v3372
      %v3625 = vpack.c.b16 %v3375, %v3374
      %v3626 = vpack.c.b16 %v3377, %v3376
      %v3627 = vpack.c.b16 %v3379, %v3378
      %v3628 = vpack.c.b16 %v3381, %v3380
      %v3629 = vpack.c.b16 %v3383, %v3382
      %v3630 = vpack.c.b16 %v3385, %v3384
      %v3631 = vpack.c.b16 %v3387, %v3386
      %v3632 = vpack.c.b16 %v3389, %v3388
      %v3633 = vpack.c.b16 %v3391, %v3390
      %v3634 = vpack.c.b16 %v3393, %v3392
      %v3635 = vpack.c.b16 %v3395, %v3394
      %v3636 = vpack.c.b16 %v3397, %v3396
      %v3637 = vpack.c.b16 %v3399, %v3398
      %v3638 = vpack.c.b16 %v3401, %v3400
      %v3639 = vpack.c.b16 %v3403, %v3402
      %v3640 = vpack.c.b16 %v3405, %v3404
      %v3641 = vpack.c.b16 %v3407, %v3406
      %v3642 = vpack.c.b16 %v3409, %v3408
      %v3643 = vpack.c.b16 %v3411, %v3410
      %v3644 = vpack.c.b16 %v3413, %v3412
      %v3645 = vpack.c.b16 %v3415, %v3414
      %v3646 = vpack.c.b16 %v3417, %v3416
      %v3647 = vpack.c.b16 %v3419, %v3418
      %v3648 = vpack.c.b16 %v3421, %v3420
      %v3649 = vpack.c.b16 %v3423, %v3422
      %v3650 = vpack.c.b16 %v3425, %v3424
      %v3651 = vpack.c.b16 %v3427, %v3426
      %v3652 = vpack.c.b16 %v3429, %v3428
      %v3653 = vpack.c.b16 %v3431, %v3430
      %v3654 = vpack.c.b16 %v3433, %v3432
      %v3655 = vpack.c.b16 %v3435, %v3434
      %v3656 = vpack.c.b16 %v3437, %v3436
      %v3657 = vpack.c.b16 %v3439, %v3438
      %v3658 = vpack.c.b16 %v3441, %v3440
      %v3659 = vpack.c.b16 %v3443, %v3442
      %v3660 = vpack.c.b16 %v3445, %v3444
      %v3661 = vpack.c.b16 %v3447, %v3446
      %v3662 = vpack.c.b16 %v3449, %v3448
      %v3663 = vpack.c.b16 %v3451, %v3450
      %v3664 = vpack.c.b16 %v3453, %v3452
      %v3665 = vpack.c.b16 %v3455, %v3454
      %v3666 = vpack.c.b16 %v3457, %v3456
      %v3667 = vpack.c.b16 %v3459, %v3458
      %v3668 = vpack.c.b16 %v3461, %v3460
      %v3669 = vpack.c.b16 %v3463, %v3462
      %v3670 = vpack.c.b16 %v3465, %v3464
      %v3671 = vpack.c.b16 %v3467, %v3466
      %v3672 = vpack.c.b16 %v3469, %v3468
      %v3673 = vpack.c.b16 %v3471, %v3470
      %v3674 = vpack.c.b16 %v3473, %v3472
      %v3675 = vpack.c.b16 %v3475, %v3474
      %v3676 = vpack.c.b16 %v3477, %v3476
      %v3677 = vpack.c.b16 %v3479, %v3478
      %v3678 = vpack.c.b16 %v3481, %v3480
      %v3679 = vpack.c.b16 %v3483, %v3482
      %v3680 = vpack.c.b16 %v3485, %v3484
      %v3681 = vpack.c.b16 %v3487, %v3486
      %v3682 = vpack.c.b16 %v3489, %v3488
      %v3683 = vpack.c.b16 %v3491, %v3490
      %v3684 = vpack.c.b16 %v3493, %v3492
      %v3685 = vpack.c.b16 %v3495, %v3494
      %v3686 = vpack.c.b16 %v3497, %v3496
      %v3687 = vpack.c.b16 %v3499, %v3498
      %v3688 = vpack.c.b16 %v3501, %v3500
      %v3689 = vpack.c.b16 %v3503, %v3502
      %v3690 = vpack.c.b16 %v3505, %v3504
      %v3691 = vpack.c.b16 %v3507, %v3506
      %v3692 = vpack.c.b16 %v3509, %v3508
      %v3693 = vpack.c.b16 %v3511, %v3510
      %v3694 = vpack.c.b16 %v3513, %v3512
      %v3695 = vpack.c.b16 %v3515, %v3514
      %v3696 = vpack.c.b16 %v3517, %v3516
      %v3697 = vpack.c.b16 %v3519, %v3518
      %v3698 = vpack.c.b16 %v3521, %v3520
      %v3699 = vpack.c.b16 %v3523, %v3522
      %v3700 = vpack.c.b16 %v3525, %v3524
      %v3701 = vpack.c.b16 %v3527, %v3526
      %v3702 = vpack.c.b16 %v3529, %v3528
      %v3703 = vpack.c.b16 %v3531, %v3530
      %v3704 = vpack.c.b16 %v3533, %v3532
      %v3705 = vpack.c.b16 %v3535, %v3534
      %v3706 = vpack.c.b16 %v3537, %v3536
      %v3707 = vpack.c.b16 %v3539, %v3538
      %v3708 = vpack.c.b16 %v3541, %v3540
      %v3709 = vpack.c.b16 %v3543, %v3542
      %v3710 = vpack.c.b16 %v3545, %v3544
      %v3711 = vpack.c.b16 %v3547, %v3546
      %v3712 = vpack.c.b16 %v3549, %v3548
      %v3713 = vpack.c.b16 %v3551, %v3550
      %v3714 = vpack.c.b16 %v3553, %v3552
      %v3715 = vpack.c.b16 %v3555, %v3554
      %v3716 = vpack.c.b16 %v3557, %v3556
      %v3717 = vpack.c.b16 %v3559, %v3558
      %v3718 = vpack.c.b16 %v3561, %v3560
      %v3719 = vpack.c.b16 %v3563, %v3562
      %v3720 = vpack.c.b16 %v3565, %v3564
      %v3721 = vpack.c.b16 %v3567, %v3566
      %v3722 = vpack.c.b16 %v3569, %v3568
      %v3723 = vpack.c.b16 %v3571, %v3570
      %v3724 = vpack.c.b16 %v3573, %v3572
      %v3725 = vpack.c.b16 %v3575, %v3574
      %v3726 = vpack.c.b16 %v3577, %v3576
      %v3727 = vpack.c.b16 %v3579, %v3578
      %v3728 = vpack.c.b16 %v3581, %v3580
      %v3729 = vpack.c.b16 %v3583, %v3582
      %v3730 = vpack.c.b16 %v3585, %v3584
      %v3731 = vpack.c.b16 %v3587, %v3586
      %v3732 = vpack.c.b16 %v3589, %v3588
      %v3733 = vpack.c.b16 %v3591, %v3590
      %v3734 = vpack.c.b16 %v3593, %v3592
      %v3735 = vpack.c.b16 %v3595, %v3594
      %v3736 = vpack.c.b16 %v3597, %v3596
      %v3737 = vpack.c.b16 %v3599, %v3598
      %v3738 = vpack.c.b16 %v3601, %v3600
      %v3739 = vpack.c.b16 %v3603, %v3602
      %v3740 = vpack.c.b16 %v3605, %v3604
      %v3741 = vpack.c.b16 %v3607, %v3606
      %v3742 = vpack.c.b16 %v3609, %v3608
      %v3743 = vpack.c.b16 %v3611, %v3610
      %v3744 = vpack.c.b16 %v3613, %v3612
      %v3745 = vpack.c.b16 %v3615, %v3614
      %v3746 = vpack.c.b16 %v3617, %v3616
      %v3747 = vpack.c.b16 %v3619, %v3618
      %3876 = vmatpush.bf16.msra.mxu0 %v3627
      %3877 = vmatpush.bf16.msra.mxu0 %v3626
      %3878 = vmatpush.bf16.msra.mxu0 %v3625
      %3879 = vmatpush.bf16.msra.mxu0 %v3624
      %3880 = vmatpush.bf16.msra.mxu0 %v3623
      %3881 = vmatpush.bf16.msra.mxu0 %v3622
      %3882 = vmatpush.bf16.msra.mxu0 %v3621
      %3883 = vmatpush.bf16.msra.mxu0 %v3620
      %3884 = vmatmul.bf16.gmra.mxu0 %v2832
      %v3885 = vpop.f32.mrf.mxu0
      %v3886 = vadd.f32 %v3106, %v3885
      %v3887 = vpop.f32.mrf.mxu0
      %3888 = vdwg.mxu0
      %3889 = vmatpush.bf16.msra.mxu0 %v3635
      %3890 = vmatpush.bf16.msra.mxu0 %v3634
      %3891 = vmatpush.bf16.msra.mxu0 %v3633
      %3892 = vmatpush.bf16.msra.mxu0 %v3632
      %3893 = vmatpush.bf16.msra.mxu0 %v3631
      %3894 = vmatpush.bf16.msra.mxu0 %v3630
      %3895 = vmatpush.bf16.msra.mxu0 %v3629
      %3896 = vmatpush.bf16.msra.mxu0 %v3628
      %3897 = vmatmul.bf16.gmra.mxu0 %v2833
      %v3898 = vpop.f32.mrf.mxu0
      %v3899 = vadd.f32 %v3886, %v3898
      %v3900 = vpop.f32.mrf.mxu0
      %3901 = vdwg.mxu0
      %3902 = vmatpush.bf16.msra.mxu0 %v3643
      %3903 = vmatpush.bf16.msra.mxu0 %v3642
      %3904 = vmatpush.bf16.msra.mxu0 %v3641
      %3905 = vmatpush.bf16.msra.mxu0 %v3640
      %3906 = vmatpush.bf16.msra.mxu0 %v3639
      %3907 = vmatpush.bf16.msra.mxu0 %v3638
      %3908 = vmatpush.bf16.msra.mxu0 %v3637
      %3909 = vmatpush.bf16.msra.mxu0 %v3636
      %3910 = vmatmul.bf16.gmra.mxu0 %v2834
      %v3911 = vpop.f32.mrf.mxu0
      %v3912 = vadd.f32 %v3899, %v3911
      %v3913 = vpop.f32.mrf.mxu0
      %3914 = vdwg.mxu0
      %3915 = vmatpush.bf16.msra.mxu0 %v3651
      %3916 = vmatpush.bf16.msra.mxu0 %v3650
      %3917 = vmatpush.bf16.msra.mxu0 %v3649
      %3918 = vmatpush.bf16.msra.mxu0 %v3648
      %3919 = vmatpush.bf16.msra.mxu0 %v3647
      %3920 = vmatpush.bf16.msra.mxu0 %v3646
      %3921 = vmatpush.bf16.msra.mxu0 %v3645
      %3922 = vmatpush.bf16.msra.mxu0 %v3644
      %3923 = vmatmul.bf16.gmra.mxu0 %v2835
      %v3924 = vpop.f32.mrf.mxu0
      %v3925 = vadd.f32 %v3912, %v3924
      %v3926 = vpop.f32.mrf.mxu0
      %3927 = vdwg.mxu0
      %3928 = vmatpush.bf16.msra.mxu0 %v3659
      %3929 = vmatpush.bf16.msra.mxu0 %v3658
      %3930 = vmatpush.bf16.msra.mxu0 %v3657
      %3931 = vmatpush.bf16.msra.mxu0 %v3656
      %3932 = vmatpush.bf16.msra.mxu0 %v3655
      %3933 = vmatpush.bf16.msra.mxu0 %v3654
      %3934 = vmatpush.bf16.msra.mxu0 %v3653
      %3935 = vmatpush.bf16.msra.mxu0 %v3652
      %3936 = vmatmul.bf16.gmra.mxu0 %v2836
      %v3937 = vpop.f32.mrf.mxu0
      %v3938 = vadd.f32 %v3925, %v3937
      %v3939 = vpop.f32.mrf.mxu0
      %3940 = vdwg.mxu0
      %3941 = vmatpush.bf16.msra.mxu0 %v3667
      %3942 = vmatpush.bf16.msra.mxu0 %v3666
      %3943 = vmatpush.bf16.msra.mxu0 %v3665
      %3944 = vmatpush.bf16.msra.mxu0 %v3664
      %3945 = vmatpush.bf16.msra.mxu0 %v3663
      %3946 = vmatpush.bf16.msra.mxu0 %v3662
      %3947 = vmatpush.bf16.msra.mxu0 %v3661
      %3948 = vmatpush.bf16.msra.mxu0 %v3660
      %3949 = vmatmul.bf16.gmra.mxu0 %v2837
      %v3950 = vpop.f32.mrf.mxu0
      %v3951 = vadd.f32 %v3938, %v3950
      %v3952 = vpop.f32.mrf.mxu0
      %3953 = vdwg.mxu0
      %3954 = vmatpush.bf16.msra.mxu0 %v3675
      %3955 = vmatpush.bf16.msra.mxu0 %v3674
      %3956 = vmatpush.bf16.msra.mxu0 %v3673
      %3957 = vmatpush.bf16.msra.mxu0 %v3672
      %3958 = vmatpush.bf16.msra.mxu0 %v3671
      %3959 = vmatpush.bf16.msra.mxu0 %v3670
      %3960 = vmatpush.bf16.msra.mxu0 %v3669
      %3961 = vmatpush.bf16.msra.mxu0 %v3668
      %3962 = vmatmul.bf16.gmra.mxu0 %v2838
      %v3963 = vpop.f32.mrf.mxu0
      %v3964 = vadd.f32 %v3951, %v3963
      %v3965 = vpop.f32.mrf.mxu0
      %3966 = vdwg.mxu0
      %3967 = vmatpush.bf16.msra.mxu0 %v3683
      %3968 = vmatpush.bf16.msra.mxu0 %v3682
      %3969 = vmatpush.bf16.msra.mxu0 %v3681
      %3970 = vmatpush.bf16.msra.mxu0 %v3680
      %3971 = vmatpush.bf16.msra.mxu0 %v3679
      %3972 = vmatpush.bf16.msra.mxu0 %v3678
      %3973 = vmatpush.bf16.msra.mxu0 %v3677
      %3974 = vmatpush.bf16.msra.mxu0 %v3676
      %3975 = vmatmul.bf16.gmra.mxu0 %v2839
      %v3976 = vpop.f32.mrf.mxu0
      %v3977 = vadd.f32 %v3964, %v3976
      %v3978 = vpop.f32.mrf.mxu0
      %3979 = vdwg.mxu0
      %3980 = vmatpush.bf16.msra.mxu0 %v3691
      %3981 = vmatpush.bf16.msra.mxu0 %v3690
      %3982 = vmatpush.bf16.msra.mxu0 %v3689
      %3983 = vmatpush.bf16.msra.mxu0 %v3688
      %3984 = vmatpush.bf16.msra.mxu0 %v3687
      %3985 = vmatpush.bf16.msra.mxu0 %v3686
      %3986 = vmatpush.bf16.msra.mxu0 %v3685
      %3987 = vmatpush.bf16.msra.mxu0 %v3684
      %3988 = vmatmul.bf16.gmra.mxu0 %v2840
      %v3989 = vpop.f32.mrf.mxu0
      %v3990 = vadd.f32 %v3977, %v3989
      %v3991 = vpop.f32.mrf.mxu0
      %3992 = vdwg.mxu0
      %3993 = vmatpush.bf16.msra.mxu0 %v3699
      %3994 = vmatpush.bf16.msra.mxu0 %v3698
      %3995 = vmatpush.bf16.msra.mxu0 %v3697
      %3996 = vmatpush.bf16.msra.mxu0 %v3696
      %3997 = vmatpush.bf16.msra.mxu0 %v3695
      %3998 = vmatpush.bf16.msra.mxu0 %v3694
      %3999 = vmatpush.bf16.msra.mxu0 %v3693
      %4000 = vmatpush.bf16.msra.mxu0 %v3692
      %4001 = vmatmul.bf16.gmra.mxu0 %v2841
      %v4002 = vpop.f32.mrf.mxu0
      %v4003 = vadd.f32 %v3990, %v4002
      %v4004 = vpop.f32.mrf.mxu0
      %4005 = vdwg.mxu0
      %4006 = vmatpush.bf16.msra.mxu0 %v3707
      %4007 = vmatpush.bf16.msra.mxu0 %v3706
      %4008 = vmatpush.bf16.msra.mxu0 %v3705
      %4009 = vmatpush.bf16.msra.mxu0 %v3704
      %4010 = vmatpush.bf16.msra.mxu0 %v3703
      %4011 = vmatpush.bf16.msra.mxu0 %v3702
      %4012 = vmatpush.bf16.msra.mxu0 %v3701
      %4013 = vmatpush.bf16.msra.mxu0 %v3700
      %4014 = vmatmul.bf16.gmra.mxu0 %v2842
      %v4015 = vpop.f32.mrf.mxu0
      %v4016 = vadd.f32 %v4003, %v4015
      %v4017 = vpop.f32.mrf.mxu0
      %4018 = vdwg.mxu0
      %4019 = vmatpush.bf16.msra.mxu0 %v3715
      %4020 = vmatpush.bf16.msra.mxu0 %v3714
      %4021 = vmatpush.bf16.msra.mxu0 %v3713
      %4022 = vmatpush.bf16.msra.mxu0 %v3712
      %4023 = vmatpush.bf16.msra.mxu0 %v3711
      %4024 = vmatpush.bf16.msra.mxu0 %v3710
      %4025 = vmatpush.bf16.msra.mxu0 %v3709
      %4026 = vmatpush.bf16.msra.mxu0 %v3708
      %4027 = vmatmul.bf16.gmra.mxu0 %v2843
      %v4028 = vpop.f32.mrf.mxu0
      %v4029 = vadd.f32 %v4016, %v4028
      %v4030 = vpop.f32.mrf.mxu0
      %4031 = vdwg.mxu0
      %4032 = vmatpush.bf16.msra.mxu0 %v3723
      %4033 = vmatpush.bf16.msra.mxu0 %v3722
      %4034 = vmatpush.bf16.msra.mxu0 %v3721
      %4035 = vmatpush.bf16.msra.mxu0 %v3720
      %4036 = vmatpush.bf16.msra.mxu0 %v3719
      %4037 = vmatpush.bf16.msra.mxu0 %v3718
      %4038 = vmatpush.bf16.msra.mxu0 %v3717
      %4039 = vmatpush.bf16.msra.mxu0 %v3716
      %4040 = vmatmul.bf16.gmra.mxu0 %v2844
      %v4041 = vpop.f32.mrf.mxu0
      %v4042 = vadd.f32 %v4029, %v4041
      %v4043 = vpop.f32.mrf.mxu0
      %4044 = vdwg.mxu0
      %4045 = vmatpush.bf16.msra.mxu0 %v3731
      %4046 = vmatpush.bf16.msra.mxu0 %v3730
      %4047 = vmatpush.bf16.msra.mxu0 %v3729
      %4048 = vmatpush.bf16.msra.mxu0 %v3728
      %4049 = vmatpush.bf16.msra.mxu0 %v3727
      %4050 = vmatpush.bf16.msra.mxu0 %v3726
      %4051 = vmatpush.bf16.msra.mxu0 %v3725
      %4052 = vmatpush.bf16.msra.mxu0 %v3724
      %4053 = vmatmul.bf16.gmra.mxu0 %v2845
      %v4054 = vpop.f32.mrf.mxu0
      %v4055 = vadd.f32 %v4042, %v4054
      %v4056 = vpop.f32.mrf.mxu0
      %4057 = vdwg.mxu0
      %4058 = vmatpush.bf16.msra.mxu0 %v3739
      %4059 = vmatpush.bf16.msra.mxu0 %v3738
      %4060 = vmatpush.bf16.msra.mxu0 %v3737
      %4061 = vmatpush.bf16.msra.mxu0 %v3736
      %4062 = vmatpush.bf16.msra.mxu0 %v3735
      %4063 = vmatpush.bf16.msra.mxu0 %v3734
      %4064 = vmatpush.bf16.msra.mxu0 %v3733
      %4065 = vmatpush.bf16.msra.mxu0 %v3732
      %4066 = vmatmul.bf16.gmra.mxu0 %v2846
      %v4067 = vpop.f32.mrf.mxu0
      %v4068 = vadd.f32 %v4055, %v4067
      %v4069 = vpop.f32.mrf.mxu0
      %4070 = vdwg.mxu0
      %4071 = vmatpush.bf16.msra.mxu0 %v3747
      %4072 = vmatpush.bf16.msra.mxu0 %v3746
      %4073 = vmatpush.bf16.msra.mxu0 %v3745
      %4074 = vmatpush.bf16.msra.mxu0 %v3744
      %4075 = vmatpush.bf16.msra.mxu0 %v3743
      %4076 = vmatpush.bf16.msra.mxu0 %v3742
      %4077 = vmatpush.bf16.msra.mxu0 %v3741
      %4078 = vmatpush.bf16.msra.mxu0 %v3740
      %4079 = vmatmul.bf16.gmra.mxu0 %v2847
      %v4080 = vpop.f32.mrf.mxu0
      %v4081 = vadd.f32 %v4068, %v4080
      %v4082 = vpop.f32.mrf.mxu0
      %4083 = vdwg.mxu0
      %v4084 = vadd.f32 %v2183, %v4081
      %v4085 = vld [vmem:[%s23] sm:$0x1]
      %v4086 = vld [vmem:[%s24] sm:$0x1]
      %v4087 = vsel %vm853, %v4084, 0.0
      %4088 = vadd.xlane.f32.xlu0 %v4087
      %v4089 = vpop.xlane.xlu0 %4088
      %v4090 = vmul.f32 %v4089, %v1473
      %v4091 = vsub.f32 %v4084, %v4090
      %v4092 = vmul.f32 %v4091, %v4091
      %v4093 = vsel %vm853, %v4092, 0.0
      %4094 = vadd.xlane.f32.xlu0 %v4093
      %v4095 = vpop.xlane.xlu0 %4094
      %v4096 = vmul.f32 %v4095, %v1473
      %v4097 = vadd.f32 %v4096, 1e-05
      %v4098 = vrsqrt.pop %v4097
      %v4099 = vmul.f32 %v4098, %v4097
      %v4100 = vmul.f32 %v4099, %v4098
      %v4101 = vmul.f32 0.5, %v4100
      %v4102 = vsub.f32 1.5, %v4101
      %v4103 = vmul.f32 %v4098, %v4102
      %vm4104 = vweird.f32 %v4097
      %vm4105 = vweird.f32 %v4098
      %vm4106 = vmor %vm4104, %vm4105
      %v4107 = vsel %vm4106, %v4098, %v4103
      %v4108 = vmul.f32 %v4091, %v4107
      %v4110 = vperm.slane %v4085, 0
      %v4112 = vmul.f32 %v4108, %v4110
      %v4114 = vperm.slane %v4086, 0
      %v4116 = vadd.f32 %v4112, %v4114
      %4117 = vst.msk [vmem:[%s793] sm:$0xff] %vm853, %v4116
      %p4118 = scmp.lt.s32.totalorder %s36, 1
      %s4119 = scalar_select %p4118, %s36, 1
      %s4120 = smul.addr %s4119, 8
      %s4121 = scalar_lea.vmem %s25, %s4120
      // Predicated region
      $region121: #{model_forward.5} parent=119 // pred_check
        %p4122 = pneg %p594
      $region122: #{model_forward.5} parent=119 // pred_check_branch
        %4124 = sbr.rel (%p4122) target = $region124
      $region123: #{model_forward.5} parent=119 // pred_region
        _
      $region124: #{model_forward.5} parent=119 // pred_fallthru
        _
    $region120: #{model_forward.5} parent=5 // pred_fallthru
      _
    %p4125 = scmp.le.s32.totalorder 2, %s31
    // Predicated region
    $region125: #{model_forward.5} parent=5 // pred_check
      %p4126 = pneg %p4125
    $region126: #{model_forward.5} parent=5 // pred_check_branch
      %4128 = sbr.rel (%p4126) target = $region128
    $region127: #{model_forward.5} parent=5 // pred_region
      %s4129 = ssub.s32 %s31, 2
      // Predicated region
      $region129: #{model_forward.5} parent=127 // pred_check
        %p4130 = pneg %p600
      $region130: #{model_forward.5} parent=127 // pred_check_branch
        %4132 = sbr.rel (%p4130) target = $region132
      $region131: #{model_forward.5} parent=127 // pred_region
        %p4133 = scmp.lt.s32.totalorder %s37, 1
        %s4134 = scalar_select %p4133, %s37, 1
        %s4135 = smul.addr %s4134, 8
        %s4136 = scalar_lea.vmem %s25, %s4135
      $region132: #{model_forward.5} parent=127 // pred_fallthru
        _
    $region128: #{model_forward.5} parent=5 // pred_fallthru
      _
  $region6: #{model_forward.5} parent=0 // loop_footer
    %s35 = sadd.s32 1, %s31
  $region7: #{model_forward.5} parent=0 // loop_footer_branch
    %30 = sbr.rel target = $region3
  $region8: #{model_forward.5} parent=0 // loop_exit
    _

</llo_original>
